<compile_context>
chip_gen: v5e
topology: v5e:2x2
jax: 0.10.0
libtpu: 0.0.40
codegen_flags: <defaults>
</compile_context>

<pallas_src>
import functools

import jax
import jax.numpy as jnp
from jax.experimental import pallas as pl
from jax.experimental.pallas import tpu as pltpu

P_DROP = 0.3
NEG_SLOPE = 0.2
_KEEP_SCALE = 1.0 / (1.0 - P_DROP)   # hoisted dropout scale
OUT_PAD = 128                        # lane-dense padded width of the 1-wide head

DIMS = [(28 * 28, 1024), (1024, 512), (512, 256), (256, 1)]


def _leaky_relu(x):
    return jnp.where(x > 0, x, NEG_SLOPE * x)


def _dropout(x, u):
    # Inverted dropout with host-provided uniforms in [0, 1): P(keep) = 1 - p.
    keep = u >= P_DROP
    return jnp.where(keep, x * _KEEP_SCALE, jnp.zeros_like(x))


def discriminator_kernel(x_ref, u1_ref, u2_ref, u3_ref,
                         w1_ref, b1_ref, w2_ref, b2_ref,
                         w3_ref, b3_ref, w4_ref, b4_ref,
                         o_ref, *, training):
    def dense(h, w_ref, b_ref):
        # bf16 x bf16 MXU matmul, f32 accumulation, f32 bias.
        return jnp.dot(h.astype(jnp.bfloat16), w_ref[...],
                       preferred_element_type=jnp.float32) + b_ref[...]

    h = x_ref[...]
    h = _leaky_relu(dense(h, w1_ref, b1_ref))
    if training:
        h = _dropout(h, u1_ref[...])
    h = _leaky_relu(dense(h, w2_ref, b2_ref))
    if training:
        h = _dropout(h, u2_ref[...])
    h = _leaky_relu(dense(h, w3_ref, b3_ref))
    if training:
        h = _dropout(h, u3_ref[...])
    # fc4 over a 128-lane padded slab (only column 0 is real, rest are zeros
    # -> sigmoid(0)=0.5, sliced off by the wrapper).  Lane-dense store.
    o_ref[...] = jax.nn.sigmoid(dense(h, w4_ref, b4_ref))


def discriminator_forward(x, params, *, dropout_key, training=True, block_m=None):
    """x: (B, 784) f32 -> (B, 1) f32 (sigmoid probabilities)."""
    B, d_in = x.shape
    w1, b1, w2, b2, w3, b3, w4, b4 = params
    d1, d2, d3 = w1.shape[1], w2.shape[1], w3.shape[1]

    # Pad the 1-wide head to a lane-dense 128-wide slab.
    if w4.shape[1] != OUT_PAD:
        w4 = jnp.pad(w4, ((0, 0), (0, OUT_PAD - w4.shape[1])))
        b4 = jnp.pad(b4, ((0, 0), (0, OUT_PAD - b4.shape[1])))

    # Dropout uniforms (tiny: B x (1024+512+256) f32).  Always materialized so
    # the kernel signature is static; ignored when training=False.
    k1, k2, k3 = jax.random.split(dropout_key, 3)
    u1 = jax.random.uniform(k1, (B, d1), jnp.float32)
    u2 = jax.random.uniform(k2, (B, d2), jnp.float32)
    u3 = jax.random.uniform(k3, (B, d3), jnp.float32)

    if block_m is None:
        block_m = B if B <= 256 else 256
    assert B % block_m == 0, "batch must divide the batch tile"
    grid = (B // block_m,)

    row = lambda d: pl.BlockSpec((block_m, d), lambda i: (i, 0))   # batch-tiled
    full = lambda arr: pl.BlockSpec(arr.shape, lambda i: (0, 0))   # weights: resident

    out = pl.pallas_call(
        functools.partial(discriminator_kernel, training=training),
        out_shape=jax.ShapeDtypeStruct((B, OUT_PAD), jnp.float32),
        grid=grid,
        in_specs=[row(d_in), row(d1), row(d2), row(d3),
                  full(w1), full(b1),
                  full(w2), full(b2),
                  full(w3), full(b3),
                  full(w4), full(b4)],
        out_specs=pl.BlockSpec((block_m, OUT_PAD), lambda i: (i, 0)),
        compiler_params=pltpu.CompilerParams(
            dimension_semantics=("parallel",)),
    )(x, u1, u2, u3, w1, b1, w2, b2, w3, b3, w4, b4)

    return out[:, :1]


def init_params(key):
    """Torch-Linear-like init U(-1/sqrt(fan_in), +1/sqrt(fan_in)).

    Weights are stored bf16 (shipped bf16, f32 accumulation); biases f32.
    """
    params = []
    for fan_in, fan_out in DIMS:
        key, kw, kb = jax.random.split(key, 3)
        bound = 1.0 / jnp.sqrt(fan_in)
        w = jax.random.uniform(kw, (fan_in, fan_out), jnp.float32, -bound, bound)
        b = jax.random.uniform(kb, (1, fan_out), jnp.float32, -bound, bound)
        params += [w.astype(jnp.bfloat16), b]
    return params


def _reference_forward(x, params, u1, u2, u3, training=True):
    """Pure-JAX reference with identical bf16 casts and dropout uniforms."""
    w1, b1, w2, b2, w3, b3, w4, b4 = params
    def dense(h, w, b):
        return jnp.dot(h.astype(jnp.bfloat16), w,
                       preferred_element_type=jnp.float32) + b
    h = _leaky_relu(dense(x, w1, b1))
    if training:
        h = _dropout(h, u1)
    h = _leaky_relu(dense(h, w2, b2))
    if training:
        h = _dropout(h, u2)
    h = _leaky_relu(dense(h, w3, b3))
    if training:
        h = _dropout(h, u3)
    return jax.nn.sigmoid(dense(h, w4, b4))


if __name__ == "__main__":
    key = jax.random.PRNGKey(0)
    key, kx, kdrop = jax.random.split(key, 3)

    B = 8  # small batch (flattened 28x28 MNIST images)
    x = jax.random.normal(kx, (B, 28 * 28), dtype=jnp.float32)
    params = init_params(key)

    out = discriminator_forward(x, params, dropout_key=kdrop, training=True)
    out = jax.block_until_ready(out)

    assert out.shape == (B, 1), out.shape
    assert out.dtype == jnp.float32
    assert bool(jnp.all(out >= 0.0)) and bool(jnp.all(out <= 1.0))   # sigmoid range
    assert bool(jnp.all(jnp.isfinite(out)))

    # Cross-check against a pure-JAX reference using the same dropout uniforms.
    k1, k2, k3 = jax.random.split(kdrop, 3)
    u1 = jax.random.uniform(k1, (B, DIMS[0][1]), jnp.float32)
    u2 = jax.random.uniform(k2, (B, DIMS[1][1]), jnp.float32)
    u3 = jax.random.uniform(k3, (B, DIMS[2][1]), jnp.float32)
    ref = _reference_forward(x, params, u1, u2, u3, training=True)
    assert bool(jnp.all(jnp.abs(out - ref) < 2e-2)), float(jnp.max(jnp.abs(out - ref)))

    print("KERNEL_OK")
</pallas_src>

<mosaic_0001>
module attributes {stable_mosaic.version = 11 : i64} {
  func.func @discriminator_kernel(%arg0: i32, %arg1: memref<8x784xf32, #tpu.memory_space<vmem>>, %arg2: memref<8x1024xf32, #tpu.memory_space<vmem>>, %arg3: memref<8x512xf32, #tpu.memory_space<vmem>>, %arg4: memref<8x256xf32, #tpu.memory_space<vmem>>, %arg5: memref<784x1024xbf16, #tpu.memory_space<vmem>>, %arg6: memref<1x1024xf32, #tpu.memory_space<vmem>>, %arg7: memref<1024x512xbf16, #tpu.memory_space<vmem>>, %arg8: memref<1x512xf32, #tpu.memory_space<vmem>>, %arg9: memref<512x256xbf16, #tpu.memory_space<vmem>>, %arg10: memref<1x256xf32, #tpu.memory_space<vmem>>, %arg11: memref<256x128xbf16, #tpu.memory_space<vmem>>, %arg12: memref<1x128xf32, #tpu.memory_space<vmem>>, %arg13: memref<8x128xf32, #tpu.memory_space<vmem>>) attributes {dimension_semantics = [#tpu.dimension_semantics<parallel>], iteration_bounds = array<i64: 1>, scalar_prefetch = 0 : i64, scratch_operands = 0 : i64, tpu.core_type = #tpu.core_type<tc>, window_params = [{transform_indices = @transform_0, window_bounds = array<i64: 8, 784>}, {transform_indices = @transform_1, window_bounds = array<i64: 8, 1024>}, {transform_indices = @transform_2, window_bounds = array<i64: 8, 512>}, {transform_indices = @transform_3, window_bounds = array<i64: 8, 256>}, {pipeline_mode = #tpu.pipeline_mode<synchronous>, transform_indices = @transform_4, window_bounds = array<i64: 784, 1024>}, {pipeline_mode = #tpu.pipeline_mode<synchronous>, transform_indices = @transform_5, window_bounds = array<i64: 1, 1024>}, {pipeline_mode = #tpu.pipeline_mode<synchronous>, transform_indices = @transform_6, window_bounds = array<i64: 1024, 512>}, {pipeline_mode = #tpu.pipeline_mode<synchronous>, transform_indices = @transform_7, window_bounds = array<i64: 1, 512>}, {pipeline_mode = #tpu.pipeline_mode<synchronous>, transform_indices = @transform_8, window_bounds = array<i64: 512, 256>}, {pipeline_mode = #tpu.pipeline_mode<synchronous>, transform_indices = @transform_9, window_bounds = array<i64: 1, 256>}, {pipeline_mode = #tpu.pipeline_mode<synchronous>, transform_indices = @transform_10, window_bounds = array<i64: 256, 128>}, {pipeline_mode = #tpu.pipeline_mode<synchronous>, transform_indices = @transform_11, window_bounds = array<i64: 1, 128>}, {transform_indices = @transform_12, window_bounds = array<i64: 8, 128>}]} {
    %c0 = arith.constant 0 : index
    %c0_0 = arith.constant 0 : index
    %0 = vector.load %arg1[%c0, %c0_0] : memref<8x784xf32, #tpu.memory_space<vmem>>, vector<8x784xf32>
    %1 = arith.truncf %0 : vector<8x784xf32> to vector<8x784xbf16>
    %c0_1 = arith.constant 0 : index
    %c0_2 = arith.constant 0 : index
    %2 = vector.load %arg5[%c0_1, %c0_2] : memref<784x1024xbf16, #tpu.memory_space<vmem>>, vector<784x1024xbf16>
    %cst = arith.constant dense<0.000000e+00> : vector<8x1024xf32>
    %3 = tpu.matmul %1, %2, %cst {dimension_numbers = #tpu.dot_dimension_numbers<[1], [0], [0], [1], [0, 0, 1, 1], [], []>} : vector<8x784xbf16>, vector<784x1024xbf16>, vector<8x1024xf32> -> vector<8x1024xf32>
    %c0_3 = arith.constant 0 : index
    %c0_4 = arith.constant 0 : index
    %4 = vector.load %arg6[%c0_3, %c0_4] : memref<1x1024xf32, #tpu.memory_space<vmem>>, vector<1x1024xf32>
    %5 = vector.broadcast %4 : vector<1x1024xf32> to vector<8x1024xf32>
    %6 = arith.addf %3, %5 : vector<8x1024xf32>
    %cst_5 = arith.constant 0.000000e+00 : f32
    %7 = vector.broadcast %cst_5 : f32 to vector<8x1024xf32>
    %8 = arith.cmpf ogt, %6, %7 : vector<8x1024xf32>
    %cst_6 = arith.constant 2.000000e-01 : f32
    %9 = vector.broadcast %cst_6 : f32 to vector<8x1024xf32>
    %10 = arith.mulf %9, %6 : vector<8x1024xf32>
    %11 = arith.select %8, %6, %10 : vector<8x1024xi1>, vector<8x1024xf32>
    %c0_7 = arith.constant 0 : index
    %c0_8 = arith.constant 0 : index
    %12 = vector.load %arg2[%c0_7, %c0_8] : memref<8x1024xf32, #tpu.memory_space<vmem>>, vector<8x1024xf32>
    %cst_9 = arith.constant 3.000000e-01 : f32
    %13 = vector.broadcast %cst_9 : f32 to vector<8x1024xf32>
    %14 = arith.cmpf oge, %12, %13 : vector<8x1024xf32>
    %cst_10 = arith.constant 1.42857146 : f32
    %15 = vector.broadcast %cst_10 : f32 to vector<8x1024xf32>
    %16 = arith.mulf %11, %15 : vector<8x1024xf32>
    %cst_11 = arith.constant 0.000000e+00 : f32
    %17 = vector.broadcast %cst_11 : f32 to vector<8x1024xf32>
    %18 = arith.select %14, %16, %17 : vector<8x1024xi1>, vector<8x1024xf32>
    %19 = arith.truncf %18 : vector<8x1024xf32> to vector<8x1024xbf16>
    %c0_12 = arith.constant 0 : index
    %c0_13 = arith.constant 0 : index
    %20 = vector.load %arg7[%c0_12, %c0_13] : memref<1024x512xbf16, #tpu.memory_space<vmem>>, vector<1024x512xbf16>
    %cst_14 = arith.constant dense<0.000000e+00> : vector<8x512xf32>
    %21 = tpu.matmul %19, %20, %cst_14 {dimension_numbers = #tpu.dot_dimension_numbers<[1], [0], [0], [1], [0, 0, 1, 1], [], []>} : vector<8x1024xbf16>, vector<1024x512xbf16>, vector<8x512xf32> -> vector<8x512xf32>
    %c0_15 = arith.constant 0 : index
    %c0_16 = arith.constant 0 : index
    %22 = vector.load %arg8[%c0_15, %c0_16] : memref<1x512xf32, #tpu.memory_space<vmem>>, vector<1x512xf32>
    %23 = vector.broadcast %22 : vector<1x512xf32> to vector<8x512xf32>
    %24 = arith.addf %21, %23 : vector<8x512xf32>
    %cst_17 = arith.constant 0.000000e+00 : f32
    %25 = vector.broadcast %cst_17 : f32 to vector<8x512xf32>
    %26 = arith.cmpf ogt, %24, %25 : vector<8x512xf32>
    %cst_18 = arith.constant 2.000000e-01 : f32
    %27 = vector.broadcast %cst_18 : f32 to vector<8x512xf32>
    %28 = arith.mulf %27, %24 : vector<8x512xf32>
    %29 = arith.select %26, %24, %28 : vector<8x512xi1>, vector<8x512xf32>
    %c0_19 = arith.constant 0 : index
    %c0_20 = arith.constant 0 : index
    %30 = vector.load %arg3[%c0_19, %c0_20] : memref<8x512xf32, #tpu.memory_space<vmem>>, vector<8x512xf32>
    %cst_21 = arith.constant 3.000000e-01 : f32
    %31 = vector.broadcast %cst_21 : f32 to vector<8x512xf32>
    %32 = arith.cmpf oge, %30, %31 : vector<8x512xf32>
    %cst_22 = arith.constant 1.42857146 : f32
    %33 = vector.broadcast %cst_22 : f32 to vector<8x512xf32>
    %34 = arith.mulf %29, %33 : vector<8x512xf32>
    %cst_23 = arith.constant 0.000000e+00 : f32
    %35 = vector.broadcast %cst_23 : f32 to vector<8x512xf32>
    %36 = arith.select %32, %34, %35 : vector<8x512xi1>, vector<8x512xf32>
    %37 = arith.truncf %36 : vector<8x512xf32> to vector<8x512xbf16>
    %c0_24 = arith.constant 0 : index
    %c0_25 = arith.constant 0 : index
    %38 = vector.load %arg9[%c0_24, %c0_25] : memref<512x256xbf16, #tpu.memory_space<vmem>>, vector<512x256xbf16>
    %cst_26 = arith.constant dense<0.000000e+00> : vector<8x256xf32>
    %39 = tpu.matmul %37, %38, %cst_26 {dimension_numbers = #tpu.dot_dimension_numbers<[1], [0], [0], [1], [0, 0, 1, 1], [], []>} : vector<8x512xbf16>, vector<512x256xbf16>, vector<8x256xf32> -> vector<8x256xf32>
    %c0_27 = arith.constant 0 : index
    %c0_28 = arith.constant 0 : index
    %40 = vector.load %arg10[%c0_27, %c0_28] : memref<1x256xf32, #tpu.memory_space<vmem>>, vector<1x256xf32>
    %41 = vector.broadcast %40 : vector<1x256xf32> to vector<8x256xf32>
    %42 = arith.addf %39, %41 : vector<8x256xf32>
    %cst_29 = arith.constant 0.000000e+00 : f32
    %43 = vector.broadcast %cst_29 : f32 to vector<8x256xf32>
    %44 = arith.cmpf ogt, %42, %43 : vector<8x256xf32>
    %cst_30 = arith.constant 2.000000e-01 : f32
    %45 = vector.broadcast %cst_30 : f32 to vector<8x256xf32>
    %46 = arith.mulf %45, %42 : vector<8x256xf32>
    %47 = arith.select %44, %42, %46 : vector<8x256xi1>, vector<8x256xf32>
    %c0_31 = arith.constant 0 : index
    %c0_32 = arith.constant 0 : index
    %48 = vector.load %arg4[%c0_31, %c0_32] : memref<8x256xf32, #tpu.memory_space<vmem>>, vector<8x256xf32>
    %cst_33 = arith.constant 3.000000e-01 : f32
    %49 = vector.broadcast %cst_33 : f32 to vector<8x256xf32>
    %50 = arith.cmpf oge, %48, %49 : vector<8x256xf32>
    %cst_34 = arith.constant 1.42857146 : f32
    %51 = vector.broadcast %cst_34 : f32 to vector<8x256xf32>
    %52 = arith.mulf %47, %51 : vector<8x256xf32>
    %cst_35 = arith.constant 0.000000e+00 : f32
    %53 = vector.broadcast %cst_35 : f32 to vector<8x256xf32>
    %54 = arith.select %50, %52, %53 : vector<8x256xi1>, vector<8x256xf32>
    %55 = arith.truncf %54 : vector<8x256xf32> to vector<8x256xbf16>
    %c0_36 = arith.constant 0 : index
    %c0_37 = arith.constant 0 : index
    %56 = vector.load %arg11[%c0_36, %c0_37] : memref<256x128xbf16, #tpu.memory_space<vmem>>, vector<256x128xbf16>
    %cst_38 = arith.constant dense<0.000000e+00> : vector<8x128xf32>
    %57 = tpu.matmul %55, %56, %cst_38 {dimension_numbers = #tpu.dot_dimension_numbers<[1], [0], [0], [1], [0, 0, 1, 1], [], []>} : vector<8x256xbf16>, vector<256x128xbf16>, vector<8x128xf32> -> vector<8x128xf32>
    %c0_39 = arith.constant 0 : index
    %c0_40 = arith.constant 0 : index
    %58 = vector.load %arg12[%c0_39, %c0_40] : memref<1x128xf32, #tpu.memory_space<vmem>>, vector<1x128xf32>
    %59 = vector.broadcast %58 : vector<1x128xf32> to vector<8x128xf32>
    %60 = arith.addf %57, %59 : vector<8x128xf32>
    %61 = arith.negf %60 : vector<8x128xf32>
    %62 = math.exp %61 : vector<8x128xf32>
    %cst_41 = arith.constant 1.000000e+00 : f32
    %63 = vector.broadcast %cst_41 : f32 to vector<8x128xf32>
    %64 = arith.addf %63, %62 : vector<8x128xf32>
    %65 = arith.divf %63, %64 : vector<8x128xf32>
    %c0_42 = arith.constant 0 : index
    %c0_43 = arith.constant 0 : index
    %66 = vector.load %arg13[%c0_42, %c0_43] : memref<8x128xf32, #tpu.memory_space<vmem>>, vector<8x128xf32>
    tpu.vector_store %arg13[%c0_42, %c0_43], %65 {strides = array<i32>} : memref<8x128xf32, #tpu.memory_space<vmem>>, vector<8x128xf32>,
    return
  }
  func.func @transform_0(%arg0: i32) -> (i32, i32) {
    %c0_i32 = arith.constant 0 : i32
    %c0_i32_0 = arith.constant 0 : i32
    return %arg0, %c0_i32 : i32, i32
  }
  func.func @transform_1(%arg0: i32) -> (i32, i32) {
    %c0_i32 = arith.constant 0 : i32
    %c0_i32_0 = arith.constant 0 : i32
    return %arg0, %c0_i32 : i32, i32
  }
  func.func @transform_2(%arg0: i32) -> (i32, i32) {
    %c0_i32 = arith.constant 0 : i32
    %c0_i32_0 = arith.constant 0 : i32
    return %arg0, %c0_i32 : i32, i32
  }
  func.func @transform_3(%arg0: i32) -> (i32, i32) {
    %c0_i32 = arith.constant 0 : i32
    %c0_i32_0 = arith.constant 0 : i32
    return %arg0, %c0_i32 : i32, i32
  }
  func.func @transform_4(%arg0: i32) -> (i32, i32) {
    %c0_i32 = arith.constant 0 : i32
    %c0_i32_0 = arith.constant 0 : i32
    %c0_i32_1 = arith.constant 0 : i32
    return %c0_i32, %c0_i32_0 : i32, i32
  }
  func.func @transform_5(%arg0: i32) -> (i32, i32) {
    %c0_i32 = arith.constant 0 : i32
    %c0_i32_0 = arith.constant 0 : i32
    %c0_i32_1 = arith.constant 0 : i32
    return %c0_i32, %c0_i32_0 : i32, i32
  }
  func.func @transform_6(%arg0: i32) -> (i32, i32) {
    %c0_i32 = arith.constant 0 : i32
    %c0_i32_0 = arith.constant 0 : i32
    %c0_i32_1 = arith.constant 0 : i32
    return %c0_i32, %c0_i32_0 : i32, i32
  }
  func.func @transform_7(%arg0: i32) -> (i32, i32) {
    %c0_i32 = arith.constant 0 : i32
    %c0_i32_0 = arith.constant 0 : i32
    %c0_i32_1 = arith.constant 0 : i32
    return %c0_i32, %c0_i32_0 : i32, i32
  }
  func.func @transform_8(%arg0: i32) -> (i32, i32) {
    %c0_i32 = arith.constant 0 : i32
    %c0_i32_0 = arith.constant 0 : i32
    %c0_i32_1 = arith.constant 0 : i32
    return %c0_i32, %c0_i32_0 : i32, i32
  }
  func.func @transform_9(%arg0: i32) -> (i32, i32) {
    %c0_i32 = arith.constant 0 : i32
    %c0_i32_0 = arith.constant 0 : i32
    %c0_i32_1 = arith.constant 0 : i32
    return %c0_i32, %c0_i32_0 : i32, i32
  }
  func.func @transform_10(%arg0: i32) -> (i32, i32) {
    %c0_i32 = arith.constant 0 : i32
    %c0_i32_0 = arith.constant 0 : i32
    %c0_i32_1 = arith.constant 0 : i32
    return %c0_i32, %c0_i32_0 : i32, i32
  }
  func.func @transform_11(%arg0: i32) -> (i32, i32) {
    %c0_i32 = arith.constant 0 : i32
    %c0_i32_0 = arith.constant 0 : i32
    %c0_i32_1 = arith.constant 0 : i32
    return %c0_i32, %c0_i32_0 : i32, i32
  }
  func.func @transform_12(%arg0: i32) -> (i32, i32) {
    %c0_i32 = arith.constant 0 : i32
    %c0_i32_0 = arith.constant 0 : i32
    return %arg0, %c0_i32 : i32, i32
  }
}

</mosaic_0001>

<llo_original>
// kernel: tpu_custom_call.1
$region0: #{tpu_custom_call.1}
  #allocation0 [shape = 'u32[]', space=smem, size = 0x4, offset = 0x4, fixed_abs, tag = 'smem constant byte address 0x4 - core index']
  #allocation1 [shape = 'u32[72,128]{1,0:T(1,128)}', space=vmem, size = 0x9000, scoped, tag = 'internal scratch']
  %s0 = inlined_call_operand.hbm [shape: f32[8,784], index: 0, kind: input, shape index: {}]
  %s1 = inlined_call_operand.hbm [shape: f32[8,1024], index: 1, kind: input, shape index: {}]
  %s2 = inlined_call_operand.hbm [shape: f32[8,512], index: 2, kind: input, shape index: {}]
  %s3 = inlined_call_operand.hbm [shape: f32[8,256], index: 3, kind: input, shape index: {}]
  %s4 = inlined_call_operand.hbm [shape: bf16[784,1024], index: 4, kind: input, shape index: {}]
  %s5 = inlined_call_operand.hbm [shape: f32[1,1024], index: 5, kind: input, shape index: {}]
  %s6 = inlined_call_operand.hbm [shape: bf16[1024,512], index: 6, kind: input, shape index: {}]
  %s7 = inlined_call_operand.hbm [shape: f32[1,512], index: 7, kind: input, shape index: {}]
  %s8 = inlined_call_operand.hbm [shape: bf16[512,256], index: 8, kind: input, shape index: {}]
  %s9 = inlined_call_operand.hbm [shape: f32[1,256], index: 9, kind: input, shape index: {}]
  %s10 = inlined_call_operand.hbm [shape: bf16[256,128], index: 10, kind: input, shape index: {}]
  %s11 = inlined_call_operand.hbm [shape: f32[1,128], index: 11, kind: input, shape index: {}]
  %s12 = inlined_call_operand.hbm [shape: f32[8,128], index: 12, kind: output, shape index: {}]
  %s13 = sld [smem:[#allocation0]]
  $region106: #{tpu_custom_call.1} parent=0
    _
  %s15 = ssub.s32 1, %s13
  %s16 = scalar_select 0, %s15, %s13
  $region1: #{tpu_custom_call.1} parent=0
    #allocation2 [shape = 'u8[28672]{0}', space=vmem, size = 0x7000, scoped, tag = 'input window, operand 0, single buffered']
    #allocation3 [shape = 's32[1]{0}', space=sflag, size = 0x4, scoped, tag = 'scoped memory for tpu_custom_call.1']
    #allocation4 [shape = 's32[1]{0}', space=sflag, size = 0x4, scoped, tag = 'scoped memory for tpu_custom_call.1']
    #allocation5 [shape = 'u8[32768]{0}', space=vmem, size = 0x8000, scoped, tag = 'input window, operand 1, single buffered']
    #allocation6 [shape = 's32[1]{0}', space=sflag, size = 0x4, scoped, tag = 'scoped memory for tpu_custom_call.1']
    #allocation7 [shape = 'u8[16384]{0}', space=vmem, size = 0x4000, scoped, tag = 'input window, operand 2, single buffered']
    #allocation8 [shape = 'u8[8192]{0}', space=vmem, size = 0x2000, scoped, tag = 'input window, operand 3, single buffered']
    #allocation9 [shape = 's32[1]{0}', space=sflag, size = 0x4, scoped, tag = 'scoped memory for tpu_custom_call.1']
    #allocation10 [shape = 'u8[1605632]{0}', space=vmem, size = 0x188000, scoped, tag = 'input window, operand 4, single buffered']
    #allocation11 [shape = 'u8[4096]{0}', space=vmem, size = 0x1000, scoped, tag = 'input window, operand 5, single buffered']
    #allocation12 [shape = 's32[1]{0}', space=sflag, size = 0x4, scoped, tag = 'scoped memory for tpu_custom_call.1']
    #allocation13 [shape = 'u8[1048576]{0}', space=vmem, size = 0x100000, scoped, tag = 'input window, operand 6, single buffered']
    #allocation14 [shape = 'u8[2048]{0}', space=vmem, size = 0x800, scoped, tag = 'input window, operand 7, single buffered']
    #allocation15 [shape = 's32[1]{0}', space=sflag, size = 0x4, scoped, tag = 'scoped memory for tpu_custom_call.1']
    #allocation16 [shape = 'u8[262144]{0}', space=vmem, size = 0x40000, scoped, tag = 'input window, operand 8, single buffered']
    #allocation17 [shape = 'u8[1024]{0}', space=vmem, size = 0x400, scoped, tag = 'input window, operand 9, single buffered']
    #allocation18 [shape = 's32[1]{0}', space=sflag, size = 0x4, scoped, tag = 'scoped memory for tpu_custom_call.1']
    #allocation19 [shape = 'u8[65536]{0}', space=vmem, size = 0x10000, scoped, tag = 'input window, operand 10, single buffered']
    #allocation20 [shape = 'u8[512]{0}', space=vmem, size = 0x400, scoped, tag = 'input window, operand 11, single buffered']
    #allocation21 [shape = 's32[1]{0}', space=sflag, size = 0x4, scoped, tag = 'scoped memory for tpu_custom_call.1']
    #allocation22 [shape = 'u8[4096]{0}', space=vmem, size = 0x1000, scoped, tag = 'output window, operand 0, single buffered']
    %17 = vsyncpa [#allocation3], 0
    %18 = vsyncpa [#allocation6], 0
    %19 = vsyncpa [#allocation9], 0
    %20 = vsyncpa [#allocation12], 0
    %21 = vsyncpa [#allocation15], 0
    %22 = vsyncpa [#allocation18], 0
    %23 = vsyncpa [#allocation21], 0
    %24 = vsyncpa [#allocation4], 0
    // Predicated region
    $region2: #{tpu_custom_call.1} parent=1 // pred_check
      _
    $region3: #{tpu_custom_call.1} parent=1 // pred_check_branch
      %26 = sbr.rel (0) target = $region5
    $region4: #{tpu_custom_call.1} parent=1 // pred_region
      %28 = vsyncadd [#allocation3], 0
      %s30 = sshll.u32 %s0, 4
      %s31 = int_to_ptr.hbm [resolvable:$true] %s30
      %s32 = sshll.u32 [#allocation2], 4
      %s33 = int_to_ptr.vmem [resolvable:$true] %s32
      %35 = dma.hbm_to_vmem [thread:$0]  %s31, 896, %s33, [#allocation3]
    $region5: #{tpu_custom_call.1} parent=1 // pred_fallthru
      _
    // Predicated region
    $region6: #{tpu_custom_call.1} parent=1 // pred_check
      _
    $region7: #{tpu_custom_call.1} parent=1 // pred_check_branch
      %37 = sbr.rel (0) target = $region9
    $region8: #{tpu_custom_call.1} parent=1 // pred_region
      %39 = vsyncadd [#allocation6], 0
      %s41 = sshll.u32 %s1, 4
      %s42 = int_to_ptr.hbm [resolvable:$true] %s41
      %s43 = sshll.u32 [#allocation5], 4
      %s44 = int_to_ptr.vmem [resolvable:$true] %s43
      %46 = dma.hbm_to_vmem [thread:$0]  %s42, 1024, %s44, [#allocation6]
    $region9: #{tpu_custom_call.1} parent=1 // pred_fallthru
      _
    // Predicated region
    $region10: #{tpu_custom_call.1} parent=1 // pred_check
      _
    $region11: #{tpu_custom_call.1} parent=1 // pred_check_branch
      %48 = sbr.rel (0) target = $region13
    $region12: #{tpu_custom_call.1} parent=1 // pred_region
      %50 = vsyncadd [#allocation6], 0
      %s52 = sshll.u32 %s2, 4
      %s53 = int_to_ptr.hbm [resolvable:$true] %s52
      %s54 = sshll.u32 [#allocation7], 4
      %s55 = int_to_ptr.vmem [resolvable:$true] %s54
      %57 = dma.hbm_to_vmem [thread:$0]  %s53, 512, %s55, [#allocation6]
    $region13: #{tpu_custom_call.1} parent=1 // pred_fallthru
      _
    // Predicated region
    $region14: #{tpu_custom_call.1} parent=1 // pred_check
      _
    $region15: #{tpu_custom_call.1} parent=1 // pred_check_branch
      %59 = sbr.rel (0) target = $region17
    $region16: #{tpu_custom_call.1} parent=1 // pred_region
      %61 = vsyncadd [#allocation9], 0
      %s63 = sshll.u32 %s3, 4
      %s64 = int_to_ptr.hbm [resolvable:$true] %s63
      %s65 = sshll.u32 [#allocation8], 4
      %s66 = int_to_ptr.vmem [resolvable:$true] %s65
      %68 = dma.hbm_to_vmem [thread:$0]  %s64, 256, %s66, [#allocation9]
    $region17: #{tpu_custom_call.1} parent=1 // pred_fallthru
      _
    // Predicated region
    $region18: #{tpu_custom_call.1} parent=1 // pred_check
      _
    $region19: #{tpu_custom_call.1} parent=1 // pred_check_branch
      %70 = sbr.rel (0) target = $region21
    $region20: #{tpu_custom_call.1} parent=1 // pred_region
      %72 = vsyncadd [#allocation9], 0
      %s73 = sshll.u32 %s4, 4
      %s74 = int_to_ptr.hbm [resolvable:$true] %s73
      %s75 = sshll.u32 [#allocation10], 4
      %s76 = int_to_ptr.vmem [resolvable:$true] %s75
      %81 = dma.hbm_to_vmem [thread:$0]  %s74, 50176, %s76, [#allocation9], 512, 512, 32
    $region21: #{tpu_custom_call.1} parent=1 // pred_fallthru
      _
    // Predicated region
    $region22: #{tpu_custom_call.1} parent=1 // pred_check
      _
    $region23: #{tpu_custom_call.1} parent=1 // pred_check_branch
      %83 = sbr.rel (0) target = $region25
    $region24: #{tpu_custom_call.1} parent=1 // pred_region
      %85 = vsyncadd [#allocation12], 0
      %s87 = sshll.u32 %s5, 4
      %s88 = int_to_ptr.hbm [resolvable:$true] %s87
      %s89 = sshll.u32 [#allocation11], 4
      %s90 = int_to_ptr.vmem [resolvable:$true] %s89
      %92 = dma.hbm_to_vmem [thread:$0]  %s88, 128, %s90, [#allocation12]
    $region25: #{tpu_custom_call.1} parent=1 // pred_fallthru
      _
    // Predicated region
    $region26: #{tpu_custom_call.1} parent=1 // pred_check
      _
    $region27: #{tpu_custom_call.1} parent=1 // pred_check_branch
      %94 = sbr.rel (0) target = $region29
    $region28: #{tpu_custom_call.1} parent=1 // pred_region
      %96 = vsyncadd [#allocation12], 0
      %s97 = sshll.u32 %s6, 4
      %s98 = int_to_ptr.hbm [resolvable:$true] %s97
      %s99 = sshll.u32 [#allocation13], 4
      %s100 = int_to_ptr.vmem [resolvable:$true] %s99
      %105 = dma.hbm_to_vmem [thread:$0]  %s98, 32768, %s100, [#allocation12], 256, 256, 16
    $region29: #{tpu_custom_call.1} parent=1 // pred_fallthru
      _
    // Predicated region
    $region30: #{tpu_custom_call.1} parent=1 // pred_check
      _
    $region31: #{tpu_custom_call.1} parent=1 // pred_check_branch
      %107 = sbr.rel (0) target = $region33
    $region32: #{tpu_custom_call.1} parent=1 // pred_region
      %109 = vsyncadd [#allocation15], 0
      %s111 = sshll.u32 %s7, 4
      %s112 = int_to_ptr.hbm [resolvable:$true] %s111
      %s113 = sshll.u32 [#allocation14], 4
      %s114 = int_to_ptr.vmem [resolvable:$true] %s113
      %116 = dma.hbm_to_vmem [thread:$0]  %s112, 64, %s114, [#allocation15]
    $region33: #{tpu_custom_call.1} parent=1 // pred_fallthru
      _
    // Predicated region
    $region34: #{tpu_custom_call.1} parent=1 // pred_check
      _
    $region35: #{tpu_custom_call.1} parent=1 // pred_check_branch
      %118 = sbr.rel (0) target = $region37
    $region36: #{tpu_custom_call.1} parent=1 // pred_region
      %120 = vsyncadd [#allocation15], 0
      %s121 = sshll.u32 %s8, 4
      %s122 = int_to_ptr.hbm [resolvable:$true] %s121
      %s123 = sshll.u32 [#allocation16], 4
      %s124 = int_to_ptr.vmem [resolvable:$true] %s123
      %129 = dma.hbm_to_vmem [thread:$0]  %s122, 8192, %s124, [#allocation15], 128, 128, 8
    $region37: #{tpu_custom_call.1} parent=1 // pred_fallthru
      _
    // Predicated region
    $region38: #{tpu_custom_call.1} parent=1 // pred_check
      _
    $region39: #{tpu_custom_call.1} parent=1 // pred_check_branch
      %131 = sbr.rel (0) target = $region41
    $region40: #{tpu_custom_call.1} parent=1 // pred_region
      %133 = vsyncadd [#allocation18], 0
      %s135 = sshll.u32 %s9, 4
      %s136 = int_to_ptr.hbm [resolvable:$true] %s135
      %s137 = sshll.u32 [#allocation17], 4
      %s138 = int_to_ptr.vmem [resolvable:$true] %s137
      %140 = dma.hbm_to_vmem [thread:$0]  %s136, 32, %s138, [#allocation18]
    $region41: #{tpu_custom_call.1} parent=1 // pred_fallthru
      _
    // Predicated region
    $region42: #{tpu_custom_call.1} parent=1 // pred_check
      _
    $region43: #{tpu_custom_call.1} parent=1 // pred_check_branch
      %142 = sbr.rel (0) target = $region45
    $region44: #{tpu_custom_call.1} parent=1 // pred_region
      %144 = vsyncadd [#allocation18], 0
      %s145 = sshll.u32 %s10, 4
      %s146 = int_to_ptr.hbm [resolvable:$true] %s145
      %s147 = sshll.u32 [#allocation19], 4
      %s148 = int_to_ptr.vmem [resolvable:$true] %s147
      %153 = dma.hbm_to_vmem [thread:$0]  %s146, 2048, %s148, [#allocation18], 64, 64, 4
    $region45: #{tpu_custom_call.1} parent=1 // pred_fallthru
      _
    // Predicated region
    $region46: #{tpu_custom_call.1} parent=1 // pred_check
      _
    $region47: #{tpu_custom_call.1} parent=1 // pred_check_branch
      %155 = sbr.rel (0) target = $region49
    $region48: #{tpu_custom_call.1} parent=1 // pred_region
      %157 = vsyncadd [#allocation21], 0
      %s159 = sshll.u32 %s11, 4
      %s160 = int_to_ptr.hbm [resolvable:$true] %s159
      %s161 = sshll.u32 [#allocation20], 4
      %s162 = int_to_ptr.vmem [resolvable:$true] %s161
      %164 = dma.hbm_to_vmem [thread:$0]  %s160, 16, %s162, [#allocation21]
    $region49: #{tpu_custom_call.1} parent=1 // pred_fallthru
      _
    // Predicated region
    $region50: #{tpu_custom_call.1} parent=1 // pred_check
      _
    $region51: #{tpu_custom_call.1} parent=1 // pred_check_branch
      %166 = sbr.rel (0) target = $region53
    $region52: #{tpu_custom_call.1} parent=1 // pred_region
      %168 = dma.done [#allocation3], 896
    $region53: #{tpu_custom_call.1} parent=1 // pred_fallthru
      _
    // Predicated region
    $region54: #{tpu_custom_call.1} parent=1 // pred_check
      _
    $region55: #{tpu_custom_call.1} parent=1 // pred_check_branch
      %170 = sbr.rel (0) target = $region57
    $region56: #{tpu_custom_call.1} parent=1 // pred_region
      %172 = dma.done [#allocation6], 1024
    $region57: #{tpu_custom_call.1} parent=1 // pred_fallthru
      _
    // Predicated region
    $region58: #{tpu_custom_call.1} parent=1 // pred_check
      _
    $region59: #{tpu_custom_call.1} parent=1 // pred_check_branch
      %174 = sbr.rel (0) target = $region61
    $region60: #{tpu_custom_call.1} parent=1 // pred_region
      %176 = dma.done [#allocation6], 512
    $region61: #{tpu_custom_call.1} parent=1 // pred_fallthru
      _
    // Predicated region
    $region62: #{tpu_custom_call.1} parent=1 // pred_check
      _
    $region63: #{tpu_custom_call.1} parent=1 // pred_check_branch
      %178 = sbr.rel (0) target = $region65
    $region64: #{tpu_custom_call.1} parent=1 // pred_region
      %180 = dma.done [#allocation9], 256
    $region65: #{tpu_custom_call.1} parent=1 // pred_fallthru
      _
    // Predicated region
    $region66: #{tpu_custom_call.1} parent=1 // pred_check
      _
    $region67: #{tpu_custom_call.1} parent=1 // pred_check_branch
      %182 = sbr.rel (0) target = $region69
    $region68: #{tpu_custom_call.1} parent=1 // pred_region
      %184 = dma.done [#allocation9], 50176
    $region69: #{tpu_custom_call.1} parent=1 // pred_fallthru
      _
    // Predicated region
    $region70: #{tpu_custom_call.1} parent=1 // pred_check
      _
    $region71: #{tpu_custom_call.1} parent=1 // pred_check_branch
      %186 = sbr.rel (0) target = $region73
    $region72: #{tpu_custom_call.1} parent=1 // pred_region
      %188 = dma.done [#allocation12], 128
    $region73: #{tpu_custom_call.1} parent=1 // pred_fallthru
      _
    // Predicated region
    $region74: #{tpu_custom_call.1} parent=1 // pred_check
      _
    $region75: #{tpu_custom_call.1} parent=1 // pred_check_branch
      %190 = sbr.rel (0) target = $region77
    $region76: #{tpu_custom_call.1} parent=1 // pred_region
      %192 = dma.done [#allocation12], 32768
    $region77: #{tpu_custom_call.1} parent=1 // pred_fallthru
      _
    // Predicated region
    $region78: #{tpu_custom_call.1} parent=1 // pred_check
      _
    $region79: #{tpu_custom_call.1} parent=1 // pred_check_branch
      %194 = sbr.rel (0) target = $region81
    $region80: #{tpu_custom_call.1} parent=1 // pred_region
      %196 = dma.done [#allocation15], 64
    $region81: #{tpu_custom_call.1} parent=1 // pred_fallthru
      _
    // Predicated region
    $region82: #{tpu_custom_call.1} parent=1 // pred_check
      _
    $region83: #{tpu_custom_call.1} parent=1 // pred_check_branch
      %198 = sbr.rel (0) target = $region85
    $region84: #{tpu_custom_call.1} parent=1 // pred_region
      %200 = dma.done [#allocation15], 8192
    $region85: #{tpu_custom_call.1} parent=1 // pred_fallthru
      _
    // Predicated region
    $region86: #{tpu_custom_call.1} parent=1 // pred_check
      _
    $region87: #{tpu_custom_call.1} parent=1 // pred_check_branch
      %202 = sbr.rel (0) target = $region89
    $region88: #{tpu_custom_call.1} parent=1 // pred_region
      %204 = dma.done [#allocation18], 32
    $region89: #{tpu_custom_call.1} parent=1 // pred_fallthru
      _
    // Predicated region
    $region90: #{tpu_custom_call.1} parent=1 // pred_check
      _
    $region91: #{tpu_custom_call.1} parent=1 // pred_check_branch
      %206 = sbr.rel (0) target = $region93
    $region92: #{tpu_custom_call.1} parent=1 // pred_region
      %208 = dma.done [#allocation18], 2048
    $region93: #{tpu_custom_call.1} parent=1 // pred_fallthru
      _
    // Predicated region
    $region94: #{tpu_custom_call.1} parent=1 // pred_check
      _
    $region95: #{tpu_custom_call.1} parent=1 // pred_check_branch
      %210 = sbr.rel (0) target = $region97
    $region96: #{tpu_custom_call.1} parent=1 // pred_region
      %212 = dma.done [#allocation21], 16
    $region97: #{tpu_custom_call.1} parent=1 // pred_fallthru
      _
    %v214 = vld [vmem:[#allocation2] sm:$0xff]
    %v215 = vld [vmem:[#allocation2 + $0x8] sm:$0xff]
    %v216 = vld [vmem:[#allocation2 + $0x10] sm:$0xff]
    %v217 = vld [vmem:[#allocation2 + $0x18] sm:$0xff]
    %v218 = vld [vmem:[#allocation2 + $0x20] sm:$0xff]
    %v219 = vld [vmem:[#allocation2 + $0x28] sm:$0xff]
    %v220 = vld [vmem:[#allocation2 + $0x30] sm:$0xff]
    %v221 = vpack.c.bf16 %v214, %v214
    %v222 = vpack.c.bf16 %v215, %v215
    %v223 = vpack.c.bf16 %v216, %v216
    %v224 = vpack.c.bf16 %v217, %v217
    %v225 = vpack.c.bf16 %v218, %v218
    %v226 = vpack.c.bf16 %v219, %v219
    %v227 = vpack.c.bf16 %v220, %v220
    %v228 = vld [vmem:[#allocation10] sm:$0xff]
    %v229 = vld [vmem:[#allocation10 + $0x8] sm:$0xff]
    %v230 = vld [vmem:[#allocation10 + $0x10] sm:$0xff]
    %v231 = vld [vmem:[#allocation10 + $0x18] sm:$0xff]
    %v232 = vld [vmem:[#allocation10 + $0x20] sm:$0xff]
    %v233 = vld [vmem:[#allocation10 + $0x28] sm:$0xff]
    %v234 = vld [vmem:[#allocation10 + $0x30] sm:$0xff]
    %v235 = vld [vmem:[#allocation10 + $0x38] sm:$0xff]
    %v236 = vld [vmem:[#allocation10 + $0x40] sm:$0xff]
    %v237 = vld [vmem:[#allocation10 + $0x48] sm:$0xff]
    %v238 = vld [vmem:[#allocation10 + $0x50] sm:$0xff]
    %v239 = vld [vmem:[#allocation10 + $0x58] sm:$0xff]
    %v240 = vld [vmem:[#allocation10 + $0x60] sm:$0xff]
    %v241 = vld [vmem:[#allocation10 + $0x68] sm:$0xff]
    %v242 = vld [vmem:[#allocation10 + $0x70] sm:$0xff]
    %v243 = vld [vmem:[#allocation10 + $0x78] sm:$0xff]
    %v244 = vld [vmem:[#allocation10 + $0x80] sm:$0xff]
    %v245 = vld [vmem:[#allocation10 + $0x88] sm:$0xff]
    %v246 = vld [vmem:[#allocation10 + $0x90] sm:$0xff]
    %v247 = vld [vmem:[#allocation10 + $0x98] sm:$0xff]
    %v248 = vld [vmem:[#allocation10 + $0xa0] sm:$0xff]
    %v249 = vld [vmem:[#allocation10 + $0xa8] sm:$0xff]
    %v250 = vld [vmem:[#allocation10 + $0xb0] sm:$0xff]
    %v251 = vld [vmem:[#allocation10 + $0xb8] sm:$0xff]
    %v252 = vld [vmem:[#allocation10 + $0xc0] sm:$0xff]
    %v253 = vld [vmem:[#allocation10 + $0xc8] sm:$0xff]
    %v254 = vld [vmem:[#allocation10 + $0xd0] sm:$0xff]
    %v255 = vld [vmem:[#allocation10 + $0xd8] sm:$0xff]
    %v256 = vld [vmem:[#allocation10 + $0xe0] sm:$0xff]
    %v257 = vld [vmem:[#allocation10 + $0xe8] sm:$0xff]
    %v258 = vld [vmem:[#allocation10 + $0xf0] sm:$0xff]
    %v259 = vld [vmem:[#allocation10 + $0xf8] sm:$0xff]
    %v260 = vld [vmem:[#allocation10 + $0x100] sm:$0xff]
    %v261 = vld [vmem:[#allocation10 + $0x108] sm:$0xff]
    %v262 = vld [vmem:[#allocation10 + $0x110] sm:$0xff]
    %v263 = vld [vmem:[#allocation10 + $0x118] sm:$0xff]
    %v264 = vld [vmem:[#allocation10 + $0x120] sm:$0xff]
    %v265 = vld [vmem:[#allocation10 + $0x128] sm:$0xff]
    %v266 = vld [vmem:[#allocation10 + $0x130] sm:$0xff]
    %v267 = vld [vmem:[#allocation10 + $0x138] sm:$0xff]
    %v268 = vld [vmem:[#allocation10 + $0x140] sm:$0xff]
    %v269 = vld [vmem:[#allocation10 + $0x148] sm:$0xff]
    %v270 = vld [vmem:[#allocation10 + $0x150] sm:$0xff]
    %v271 = vld [vmem:[#allocation10 + $0x158] sm:$0xff]
    %v272 = vld [vmem:[#allocation10 + $0x160] sm:$0xff]
    %v273 = vld [vmem:[#allocation10 + $0x168] sm:$0xff]
    %v274 = vld [vmem:[#allocation10 + $0x170] sm:$0xff]
    %v275 = vld [vmem:[#allocation10 + $0x178] sm:$0xff]
    %v276 = vld [vmem:[#allocation10 + $0x180] sm:$0xff]
    %v277 = vld [vmem:[#allocation10 + $0x188] sm:$0xff]
    %v278 = vld [vmem:[#allocation10 + $0x190] sm:$0xff]
    %v279 = vld [vmem:[#allocation10 + $0x198] sm:$0xff]
    %v280 = vld [vmem:[#allocation10 + $0x1a0] sm:$0xff]
    %v281 = vld [vmem:[#allocation10 + $0x1a8] sm:$0xff]
    %v282 = vld [vmem:[#allocation10 + $0x1b0] sm:$0xff]
    %v283 = vld [vmem:[#allocation10 + $0x1b8] sm:$0xff]
    %v284 = vld [vmem:[#allocation10 + $0x1c0] sm:$0xff]
    %v285 = vld [vmem:[#allocation10 + $0x1c8] sm:$0xff]
    %v286 = vld [vmem:[#allocation10 + $0x1d0] sm:$0xff]
    %v287 = vld [vmem:[#allocation10 + $0x1d8] sm:$0xff]
    %v288 = vld [vmem:[#allocation10 + $0x1e0] sm:$0xff]
    %v289 = vld [vmem:[#allocation10 + $0x1e8] sm:$0xff]
    %v290 = vld [vmem:[#allocation10 + $0x1f0] sm:$0xff]
    %v291 = vld [vmem:[#allocation10 + $0x1f8] sm:$0xff]
    %v292 = vld [vmem:[#allocation10 + $0x200] sm:$0xff]
    %v293 = vld [vmem:[#allocation10 + $0x208] sm:$0xff]
    %v294 = vld [vmem:[#allocation10 + $0x210] sm:$0xff]
    %v295 = vld [vmem:[#allocation10 + $0x218] sm:$0xff]
    %v296 = vld [vmem:[#allocation10 + $0x220] sm:$0xff]
    %v297 = vld [vmem:[#allocation10 + $0x228] sm:$0xff]
    %v298 = vld [vmem:[#allocation10 + $0x230] sm:$0xff]
    %v299 = vld [vmem:[#allocation10 + $0x238] sm:$0xff]
    %v300 = vld [vmem:[#allocation10 + $0x240] sm:$0xff]
    %v301 = vld [vmem:[#allocation10 + $0x248] sm:$0xff]
    %v302 = vld [vmem:[#allocation10 + $0x250] sm:$0xff]
    %v303 = vld [vmem:[#allocation10 + $0x258] sm:$0xff]
    %v304 = vld [vmem:[#allocation10 + $0x260] sm:$0xff]
    %v305 = vld [vmem:[#allocation10 + $0x268] sm:$0xff]
    %v306 = vld [vmem:[#allocation10 + $0x270] sm:$0xff]
    %v307 = vld [vmem:[#allocation10 + $0x278] sm:$0xff]
    %v308 = vld [vmem:[#allocation10 + $0x280] sm:$0xff]
    %v309 = vld [vmem:[#allocation10 + $0x288] sm:$0xff]
    %v310 = vld [vmem:[#allocation10 + $0x290] sm:$0xff]
    %v311 = vld [vmem:[#allocation10 + $0x298] sm:$0xff]
    %v312 = vld [vmem:[#allocation10 + $0x2a0] sm:$0xff]
    %v313 = vld [vmem:[#allocation10 + $0x2a8] sm:$0xff]
    %v314 = vld [vmem:[#allocation10 + $0x2b0] sm:$0xff]
    %v315 = vld [vmem:[#allocation10 + $0x2b8] sm:$0xff]
    %v316 = vld [vmem:[#allocation10 + $0x2c0] sm:$0xff]
    %v317 = vld [vmem:[#allocation10 + $0x2c8] sm:$0xff]
    %v318 = vld [vmem:[#allocation10 + $0x2d0] sm:$0xff]
    %v319 = vld [vmem:[#allocation10 + $0x2d8] sm:$0xff]
    %v320 = vld [vmem:[#allocation10 + $0x2e0] sm:$0xff]
    %v321 = vld [vmem:[#allocation10 + $0x2e8] sm:$0xff]
    %v322 = vld [vmem:[#allocation10 + $0x2f0] sm:$0xff]
    %v323 = vld [vmem:[#allocation10 + $0x2f8] sm:$0xff]
    %v324 = vld [vmem:[#allocation10 + $0x300] sm:$0xff]
    %v325 = vld [vmem:[#allocation10 + $0x308] sm:$0xff]
    %v326 = vld [vmem:[#allocation10 + $0x310] sm:$0xff]
    %v327 = vld [vmem:[#allocation10 + $0x318] sm:$0xff]
    %v328 = vld [vmem:[#allocation10 + $0x320] sm:$0xff]
    %v329 = vld [vmem:[#allocation10 + $0x328] sm:$0xff]
    %v330 = vld [vmem:[#allocation10 + $0x330] sm:$0xff]
    %v331 = vld [vmem:[#allocation10 + $0x338] sm:$0xff]
    %v332 = vld [vmem:[#allocation10 + $0x340] sm:$0xff]
    %v333 = vld [vmem:[#allocation10 + $0x348] sm:$0xff]
    %v334 = vld [vmem:[#allocation10 + $0x350] sm:$0xff]
    %v335 = vld [vmem:[#allocation10 + $0x358] sm:$0xff]
    %v336 = vld [vmem:[#allocation10 + $0x360] sm:$0xff]
    %v337 = vld [vmem:[#allocation10 + $0x368] sm:$0xff]
    %v338 = vld [vmem:[#allocation10 + $0x370] sm:$0xff]
    %v339 = vld [vmem:[#allocation10 + $0x378] sm:$0xff]
    %v340 = vld [vmem:[#allocation10 + $0x380] sm:$0xff]
    %v341 = vld [vmem:[#allocation10 + $0x388] sm:$0xff]
    %v342 = vld [vmem:[#allocation10 + $0x390] sm:$0xff]
    %v343 = vld [vmem:[#allocation10 + $0x398] sm:$0xff]
    %v344 = vld [vmem:[#allocation10 + $0x3a0] sm:$0xff]
    %v345 = vld [vmem:[#allocation10 + $0x3a8] sm:$0xff]
    %v346 = vld [vmem:[#allocation10 + $0x3b0] sm:$0xff]
    %v347 = vld [vmem:[#allocation10 + $0x3b8] sm:$0xff]
    %v348 = vld [vmem:[#allocation10 + $0x3c0] sm:$0xff]
    %v349 = vld [vmem:[#allocation10 + $0x3c8] sm:$0xff]
    %v350 = vld [vmem:[#allocation10 + $0x3d0] sm:$0xff]
    %v351 = vld [vmem:[#allocation10 + $0x3d8] sm:$0xff]
    %v352 = vld [vmem:[#allocation10 + $0x3e0] sm:$0xff]
    %v353 = vld [vmem:[#allocation10 + $0x3e8] sm:$0xff]
    %v354 = vld [vmem:[#allocation10 + $0x3f0] sm:$0xff]
    %v355 = vld [vmem:[#allocation10 + $0x3f8] sm:$0xff]
    %v356 = vld [vmem:[#allocation10 + $0x400] sm:$0xff]
    %v357 = vld [vmem:[#allocation10 + $0x408] sm:$0xff]
    %v358 = vld [vmem:[#allocation10 + $0x410] sm:$0xff]
    %v359 = vld [vmem:[#allocation10 + $0x418] sm:$0xff]
    %v360 = vld [vmem:[#allocation10 + $0x420] sm:$0xff]
    %v361 = vld [vmem:[#allocation10 + $0x428] sm:$0xff]
    %v362 = vld [vmem:[#allocation10 + $0x430] sm:$0xff]
    %v363 = vld [vmem:[#allocation10 + $0x438] sm:$0xff]
    %v364 = vld [vmem:[#allocation10 + $0x440] sm:$0xff]
    %v365 = vld [vmem:[#allocation10 + $0x448] sm:$0xff]
    %v366 = vld [vmem:[#allocation10 + $0x450] sm:$0xff]
    %v367 = vld [vmem:[#allocation10 + $0x458] sm:$0xff]
    %v368 = vld [vmem:[#allocation10 + $0x460] sm:$0xff]
    %v369 = vld [vmem:[#allocation10 + $0x468] sm:$0xff]
    %v370 = vld [vmem:[#allocation10 + $0x470] sm:$0xff]
    %v371 = vld [vmem:[#allocation10 + $0x478] sm:$0xff]
    %v372 = vld [vmem:[#allocation10 + $0x480] sm:$0xff]
    %v373 = vld [vmem:[#allocation10 + $0x488] sm:$0xff]
    %v374 = vld [vmem:[#allocation10 + $0x490] sm:$0xff]
    %v375 = vld [vmem:[#allocation10 + $0x498] sm:$0xff]
    %v376 = vld [vmem:[#allocation10 + $0x4a0] sm:$0xff]
    %v377 = vld [vmem:[#allocation10 + $0x4a8] sm:$0xff]
    %v378 = vld [vmem:[#allocation10 + $0x4b0] sm:$0xff]
    %v379 = vld [vmem:[#allocation10 + $0x4b8] sm:$0xff]
    %v380 = vld [vmem:[#allocation10 + $0x4c0] sm:$0xff]
    %v381 = vld [vmem:[#allocation10 + $0x4c8] sm:$0xff]
    %v382 = vld [vmem:[#allocation10 + $0x4d0] sm:$0xff]
    %v383 = vld [vmem:[#allocation10 + $0x4d8] sm:$0xff]
    %v384 = vld [vmem:[#allocation10 + $0x4e0] sm:$0xff]
    %v385 = vld [vmem:[#allocation10 + $0x4e8] sm:$0xff]
    %v386 = vld [vmem:[#allocation10 + $0x4f0] sm:$0xff]
    %v387 = vld [vmem:[#allocation10 + $0x4f8] sm:$0xff]
    %v388 = vld [vmem:[#allocation10 + $0x500] sm:$0xff]
    %v389 = vld [vmem:[#allocation10 + $0x508] sm:$0xff]
    %v390 = vld [vmem:[#allocation10 + $0x510] sm:$0xff]
    %v391 = vld [vmem:[#allocation10 + $0x518] sm:$0xff]
    %v392 = vld [vmem:[#allocation10 + $0x520] sm:$0xff]
    %v393 = vld [vmem:[#allocation10 + $0x528] sm:$0xff]
    %v394 = vld [vmem:[#allocation10 + $0x530] sm:$0xff]
    %v395 = vld [vmem:[#allocation10 + $0x538] sm:$0xff]
    %v396 = vld [vmem:[#allocation10 + $0x540] sm:$0xff]
    %v397 = vld [vmem:[#allocation10 + $0x548] sm:$0xff]
    %v398 = vld [vmem:[#allocation10 + $0x550] sm:$0xff]
    %v399 = vld [vmem:[#allocation10 + $0x558] sm:$0xff]
    %v400 = vld [vmem:[#allocation10 + $0x560] sm:$0xff]
    %v401 = vld [vmem:[#allocation10 + $0x568] sm:$0xff]
    %v402 = vld [vmem:[#allocation10 + $0x570] sm:$0xff]
    %v403 = vld [vmem:[#allocation10 + $0x578] sm:$0xff]
    %v404 = vld [vmem:[#allocation10 + $0x580] sm:$0xff]
    %v405 = vld [vmem:[#allocation10 + $0x588] sm:$0xff]
    %v406 = vld [vmem:[#allocation10 + $0x590] sm:$0xff]
    %v407 = vld [vmem:[#allocation10 + $0x598] sm:$0xff]
    %v408 = vld [vmem:[#allocation10 + $0x5a0] sm:$0xff]
    %v409 = vld [vmem:[#allocation10 + $0x5a8] sm:$0xff]
    %v410 = vld [vmem:[#allocation10 + $0x5b0] sm:$0xff]
    %v411 = vld [vmem:[#allocation10 + $0x5b8] sm:$0xff]
    %v412 = vld [vmem:[#allocation10 + $0x5c0] sm:$0xff]
    %v413 = vld [vmem:[#allocation10 + $0x5c8] sm:$0xff]
    %v414 = vld [vmem:[#allocation10 + $0x5d0] sm:$0xff]
    %v415 = vld [vmem:[#allocation10 + $0x5d8] sm:$0xff]
    %v416 = vld [vmem:[#allocation10 + $0x5e0] sm:$0xff]
    %v417 = vld [vmem:[#allocation10 + $0x5e8] sm:$0xff]
    %v418 = vld [vmem:[#allocation10 + $0x5f0] sm:$0xff]
    %v419 = vld [vmem:[#allocation10 + $0x5f8] sm:$0xff]
    %v420 = vld [vmem:[#allocation10 + $0x600] sm:$0xff]
    %v421 = vld [vmem:[#allocation10 + $0x608] sm:$0xff]
    %v422 = vld [vmem:[#allocation10 + $0x610] sm:$0xff]
    %v423 = vld [vmem:[#allocation10 + $0x618] sm:$0xff]
    %v424 = vld [vmem:[#allocation10 + $0x620] sm:$0xff]
    %v425 = vld [vmem:[#allocation10 + $0x628] sm:$0xff]
    %v426 = vld [vmem:[#allocation10 + $0x630] sm:$0xff]
    %v427 = vld [vmem:[#allocation10 + $0x638] sm:$0xff]
    %v428 = vld [vmem:[#allocation10 + $0x640] sm:$0xff]
    %v429 = vld [vmem:[#allocation10 + $0x648] sm:$0xff]
    %v430 = vld [vmem:[#allocation10 + $0x650] sm:$0xff]
    %v431 = vld [vmem:[#allocation10 + $0x658] sm:$0xff]
    %v432 = vld [vmem:[#allocation10 + $0x660] sm:$0xff]
    %v433 = vld [vmem:[#allocation10 + $0x668] sm:$0xff]
    %v434 = vld [vmem:[#allocation10 + $0x670] sm:$0xff]
    %v435 = vld [vmem:[#allocation10 + $0x678] sm:$0xff]
    %v436 = vld [vmem:[#allocation10 + $0x680] sm:$0xff]
    %v437 = vld [vmem:[#allocation10 + $0x688] sm:$0xff]
    %v438 = vld [vmem:[#allocation10 + $0x690] sm:$0xff]
    %v439 = vld [vmem:[#allocation10 + $0x698] sm:$0xff]
    %v440 = vld [vmem:[#allocation10 + $0x6a0] sm:$0xff]
    %v441 = vld [vmem:[#allocation10 + $0x6a8] sm:$0xff]
    %v442 = vld [vmem:[#allocation10 + $0x6b0] sm:$0xff]
    %v443 = vld [vmem:[#allocation10 + $0x6b8] sm:$0xff]
    %v444 = vld [vmem:[#allocation10 + $0x6c0] sm:$0xff]
    %v445 = vld [vmem:[#allocation10 + $0x6c8] sm:$0xff]
    %v446 = vld [vmem:[#allocation10 + $0x6d0] sm:$0xff]
    %v447 = vld [vmem:[#allocation10 + $0x6d8] sm:$0xff]
    %v448 = vld [vmem:[#allocation10 + $0x6e0] sm:$0xff]
    %v449 = vld [vmem:[#allocation10 + $0x6e8] sm:$0xff]
    %v450 = vld [vmem:[#allocation10 + $0x6f0] sm:$0xff]
    %v451 = vld [vmem:[#allocation10 + $0x6f8] sm:$0xff]
    %v452 = vld [vmem:[#allocation10 + $0x700] sm:$0xff]
    %v453 = vld [vmem:[#allocation10 + $0x708] sm:$0xff]
    %v454 = vld [vmem:[#allocation10 + $0x710] sm:$0xff]
    %v455 = vld [vmem:[#allocation10 + $0x718] sm:$0xff]
    %v456 = vld [vmem:[#allocation10 + $0x720] sm:$0xff]
    %v457 = vld [vmem:[#allocation10 + $0x728] sm:$0xff]
    %v458 = vld [vmem:[#allocation10 + $0x730] sm:$0xff]
    %v459 = vld [vmem:[#allocation10 + $0x738] sm:$0xff]
    %v460 = vld [vmem:[#allocation10 + $0x740] sm:$0xff]
    %v461 = vld [vmem:[#allocation10 + $0x748] sm:$0xff]
    %v462 = vld [vmem:[#allocation10 + $0x750] sm:$0xff]
    %v463 = vld [vmem:[#allocation10 + $0x758] sm:$0xff]
    %v464 = vld [vmem:[#allocation10 + $0x760] sm:$0xff]
    %v465 = vld [vmem:[#allocation10 + $0x768] sm:$0xff]
    %v466 = vld [vmem:[#allocation10 + $0x770] sm:$0xff]
    %v467 = vld [vmem:[#allocation10 + $0x778] sm:$0xff]
    %v468 = vld [vmem:[#allocation10 + $0x780] sm:$0xff]
    %v469 = vld [vmem:[#allocation10 + $0x788] sm:$0xff]
    %v470 = vld [vmem:[#allocation10 + $0x790] sm:$0xff]
    %v471 = vld [vmem:[#allocation10 + $0x798] sm:$0xff]
    %v472 = vld [vmem:[#allocation10 + $0x7a0] sm:$0xff]
    %v473 = vld [vmem:[#allocation10 + $0x7a8] sm:$0xff]
    %v474 = vld [vmem:[#allocation10 + $0x7b0] sm:$0xff]
    %v475 = vld [vmem:[#allocation10 + $0x7b8] sm:$0xff]
    %v476 = vld [vmem:[#allocation10 + $0x7c0] sm:$0xff]
    %v477 = vld [vmem:[#allocation10 + $0x7c8] sm:$0xff]
    %v478 = vld [vmem:[#allocation10 + $0x7d0] sm:$0xff]
    %v479 = vld [vmem:[#allocation10 + $0x7d8] sm:$0xff]
    %v480 = vld [vmem:[#allocation10 + $0x7e0] sm:$0xff]
    %v481 = vld [vmem:[#allocation10 + $0x7e8] sm:$0xff]
    %v482 = vld [vmem:[#allocation10 + $0x7f0] sm:$0xff]
    %v483 = vld [vmem:[#allocation10 + $0x7f8] sm:$0xff]
    %v484 = vld [vmem:[#allocation10 + $0x800] sm:$0xff]
    %v485 = vld [vmem:[#allocation10 + $0x808] sm:$0xff]
    %v486 = vld [vmem:[#allocation10 + $0x810] sm:$0xff]
    %v487 = vld [vmem:[#allocation10 + $0x818] sm:$0xff]
    %v488 = vld [vmem:[#allocation10 + $0x820] sm:$0xff]
    %v489 = vld [vmem:[#allocation10 + $0x828] sm:$0xff]
    %v490 = vld [vmem:[#allocation10 + $0x830] sm:$0xff]
    %v491 = vld [vmem:[#allocation10 + $0x838] sm:$0xff]
    %v492 = vld [vmem:[#allocation10 + $0x840] sm:$0xff]
    %v493 = vld [vmem:[#allocation10 + $0x848] sm:$0xff]
    %v494 = vld [vmem:[#allocation10 + $0x850] sm:$0xff]
    %v495 = vld [vmem:[#allocation10 + $0x858] sm:$0xff]
    %v496 = vld [vmem:[#allocation10 + $0x860] sm:$0xff]
    %v497 = vld [vmem:[#allocation10 + $0x868] sm:$0xff]
    %v498 = vld [vmem:[#allocation10 + $0x870] sm:$0xff]
    %v499 = vld [vmem:[#allocation10 + $0x878] sm:$0xff]
    %v500 = vld [vmem:[#allocation10 + $0x880] sm:$0xff]
    %v501 = vld [vmem:[#allocation10 + $0x888] sm:$0xff]
    %v502 = vld [vmem:[#allocation10 + $0x890] sm:$0xff]
    %v503 = vld [vmem:[#allocation10 + $0x898] sm:$0xff]
    %v504 = vld [vmem:[#allocation10 + $0x8a0] sm:$0xff]
    %v505 = vld [vmem:[#allocation10 + $0x8a8] sm:$0xff]
    %v506 = vld [vmem:[#allocation10 + $0x8b0] sm:$0xff]
    %v507 = vld [vmem:[#allocation10 + $0x8b8] sm:$0xff]
    %v508 = vld [vmem:[#allocation10 + $0x8c0] sm:$0xff]
    %v509 = vld [vmem:[#allocation10 + $0x8c8] sm:$0xff]
    %v510 = vld [vmem:[#allocation10 + $0x8d0] sm:$0xff]
    %v511 = vld [vmem:[#allocation10 + $0x8d8] sm:$0xff]
    %v512 = vld [vmem:[#allocation10 + $0x8e0] sm:$0xff]
    %v513 = vld [vmem:[#allocation10 + $0x8e8] sm:$0xff]
    %v514 = vld [vmem:[#allocation10 + $0x8f0] sm:$0xff]
    %v515 = vld [vmem:[#allocation10 + $0x8f8] sm:$0xff]
    %v516 = vld [vmem:[#allocation10 + $0x900] sm:$0xff]
    %v517 = vld [vmem:[#allocation10 + $0x908] sm:$0xff]
    %v518 = vld [vmem:[#allocation10 + $0x910] sm:$0xff]
    %v519 = vld [vmem:[#allocation10 + $0x918] sm:$0xff]
    %v520 = vld [vmem:[#allocation10 + $0x920] sm:$0xff]
    %v521 = vld [vmem:[#allocation10 + $0x928] sm:$0xff]
    %v522 = vld [vmem:[#allocation10 + $0x930] sm:$0xff]
    %v523 = vld [vmem:[#allocation10 + $0x938] sm:$0xff]
    %v524 = vld [vmem:[#allocation10 + $0x940] sm:$0xff]
    %v525 = vld [vmem:[#allocation10 + $0x948] sm:$0xff]
    %v526 = vld [vmem:[#allocation10 + $0x950] sm:$0xff]
    %v527 = vld [vmem:[#allocation10 + $0x958] sm:$0xff]
    %v528 = vld [vmem:[#allocation10 + $0x960] sm:$0xff]
    %v529 = vld [vmem:[#allocation10 + $0x968] sm:$0xff]
    %v530 = vld [vmem:[#allocation10 + $0x970] sm:$0xff]
    %v531 = vld [vmem:[#allocation10 + $0x978] sm:$0xff]
    %v532 = vld [vmem:[#allocation10 + $0x980] sm:$0xff]
    %v533 = vld [vmem:[#allocation10 + $0x988] sm:$0xff]
    %v534 = vld [vmem:[#allocation10 + $0x990] sm:$0xff]
    %v535 = vld [vmem:[#allocation10 + $0x998] sm:$0xff]
    %v536 = vld [vmem:[#allocation10 + $0x9a0] sm:$0xff]
    %v537 = vld [vmem:[#allocation10 + $0x9a8] sm:$0xff]
    %v538 = vld [vmem:[#allocation10 + $0x9b0] sm:$0xff]
    %v539 = vld [vmem:[#allocation10 + $0x9b8] sm:$0xff]
    %v540 = vld [vmem:[#allocation10 + $0x9c0] sm:$0xff]
    %v541 = vld [vmem:[#allocation10 + $0x9c8] sm:$0xff]
    %v542 = vld [vmem:[#allocation10 + $0x9d0] sm:$0xff]
    %v543 = vld [vmem:[#allocation10 + $0x9d8] sm:$0xff]
    %v544 = vld [vmem:[#allocation10 + $0x9e0] sm:$0xff]
    %v545 = vld [vmem:[#allocation10 + $0x9e8] sm:$0xff]
    %v546 = vld [vmem:[#allocation10 + $0x9f0] sm:$0xff]
    %v547 = vld [vmem:[#allocation10 + $0x9f8] sm:$0xff]
    %v548 = vld [vmem:[#allocation10 + $0xa00] sm:$0xff]
    %v549 = vld [vmem:[#allocation10 + $0xa08] sm:$0xff]
    %v550 = vld [vmem:[#allocation10 + $0xa10] sm:$0xff]
    %v551 = vld [vmem:[#allocation10 + $0xa18] sm:$0xff]
    %v552 = vld [vmem:[#allocation10 + $0xa20] sm:$0xff]
    %v553 = vld [vmem:[#allocation10 + $0xa28] sm:$0xff]
    %v554 = vld [vmem:[#allocation10 + $0xa30] sm:$0xff]
    %v555 = vld [vmem:[#allocation10 + $0xa38] sm:$0xff]
    %v556 = vld [vmem:[#allocation10 + $0xa40] sm:$0xff]
    %v557 = vld [vmem:[#allocation10 + $0xa48] sm:$0xff]
    %v558 = vld [vmem:[#allocation10 + $0xa50] sm:$0xff]
    %v559 = vld [vmem:[#allocation10 + $0xa58] sm:$0xff]
    %v560 = vld [vmem:[#allocation10 + $0xa60] sm:$0xff]
    %v561 = vld [vmem:[#allocation10 + $0xa68] sm:$0xff]
    %v562 = vld [vmem:[#allocation10 + $0xa70] sm:$0xff]
    %v563 = vld [vmem:[#allocation10 + $0xa78] sm:$0xff]
    %v564 = vld [vmem:[#allocation10 + $0xa80] sm:$0xff]
    %v565 = vld [vmem:[#allocation10 + $0xa88] sm:$0xff]
    %v566 = vld [vmem:[#allocation10 + $0xa90] sm:$0xff]
    %v567 = vld [vmem:[#allocation10 + $0xa98] sm:$0xff]
    %v568 = vld [vmem:[#allocation10 + $0xaa0] sm:$0xff]
    %v569 = vld [vmem:[#allocation10 + $0xaa8] sm:$0xff]
    %v570 = vld [vmem:[#allocation10 + $0xab0] sm:$0xff]
    %v571 = vld [vmem:[#allocation10 + $0xab8] sm:$0xff]
    %v572 = vld [vmem:[#allocation10 + $0xac0] sm:$0xff]
    %v573 = vld [vmem:[#allocation10 + $0xac8] sm:$0xff]
    %v574 = vld [vmem:[#allocation10 + $0xad0] sm:$0xff]
    %v575 = vld [vmem:[#allocation10 + $0xad8] sm:$0xff]
    %v576 = vld [vmem:[#allocation10 + $0xae0] sm:$0xff]
    %v577 = vld [vmem:[#allocation10 + $0xae8] sm:$0xff]
    %v578 = vld [vmem:[#allocation10 + $0xaf0] sm:$0xff]
    %v579 = vld [vmem:[#allocation10 + $0xaf8] sm:$0xff]
    %v580 = vld [vmem:[#allocation10 + $0xb00] sm:$0xff]
    %v581 = vld [vmem:[#allocation10 + $0xb08] sm:$0xff]
    %v582 = vld [vmem:[#allocation10 + $0xb10] sm:$0xff]
    %v583 = vld [vmem:[#allocation10 + $0xb18] sm:$0xff]
    %v584 = vld [vmem:[#allocation10 + $0xb20] sm:$0xff]
    %v585 = vld [vmem:[#allocation10 + $0xb28] sm:$0xff]
    %v586 = vld [vmem:[#allocation10 + $0xb30] sm:$0xff]
    %v587 = vld [vmem:[#allocation10 + $0xb38] sm:$0xff]
    %v588 = vld [vmem:[#allocation10 + $0xb40] sm:$0xff]
    %v589 = vld [vmem:[#allocation10 + $0xb48] sm:$0xff]
    %v590 = vld [vmem:[#allocation10 + $0xb50] sm:$0xff]
    %v591 = vld [vmem:[#allocation10 + $0xb58] sm:$0xff]
    %v592 = vld [vmem:[#allocation10 + $0xb60] sm:$0xff]
    %v593 = vld [vmem:[#allocation10 + $0xb68] sm:$0xff]
    %v594 = vld [vmem:[#allocation10 + $0xb70] sm:$0xff]
    %v595 = vld [vmem:[#allocation10 + $0xb78] sm:$0xff]
    %v596 = vld [vmem:[#allocation10 + $0xb80] sm:$0xff]
    %v597 = vld [vmem:[#allocation10 + $0xb88] sm:$0xff]
    %v598 = vld [vmem:[#allocation10 + $0xb90] sm:$0xff]
    %v599 = vld [vmem:[#allocation10 + $0xb98] sm:$0xff]
    %v600 = vld [vmem:[#allocation10 + $0xba0] sm:$0xff]
    %v601 = vld [vmem:[#allocation10 + $0xba8] sm:$0xff]
    %v602 = vld [vmem:[#allocation10 + $0xbb0] sm:$0xff]
    %v603 = vld [vmem:[#allocation10 + $0xbb8] sm:$0xff]
    %v604 = vld [vmem:[#allocation10 + $0xbc0] sm:$0xff]
    %v605 = vld [vmem:[#allocation10 + $0xbc8] sm:$0xff]
    %v606 = vld [vmem:[#allocation10 + $0xbd0] sm:$0xff]
    %v607 = vld [vmem:[#allocation10 + $0xbd8] sm:$0xff]
    %v608 = vld [vmem:[#allocation10 + $0xbe0] sm:$0xff]
    %v609 = vld [vmem:[#allocation10 + $0xbe8] sm:$0xff]
    %v610 = vld [vmem:[#allocation10 + $0xbf0] sm:$0xff]
    %v611 = vld [vmem:[#allocation10 + $0xbf8] sm:$0xff]
    %v612 = vld [vmem:[#allocation10 + $0xc00] sm:$0xff]
    %v613 = vld [vmem:[#allocation10 + $0xc08] sm:$0xff]
    %v614 = vld [vmem:[#allocation10 + $0xc10] sm:$0xff]
    %v615 = vld [vmem:[#allocation10 + $0xc18] sm:$0xff]
    %v616 = vld [vmem:[#allocation10 + $0xc20] sm:$0xff]
    %v617 = vld [vmem:[#allocation10 + $0xc28] sm:$0xff]
    %v618 = vld [vmem:[#allocation10 + $0xc30] sm:$0xff]
    %v619 = vld [vmem:[#allocation10 + $0xc38] sm:$0xff]
    %v620 = vld [vmem:[#allocation11] sm:$0xff]
    %v622 = vperm.slane %v620, 0
    %v623 = vperm.slane %v620, 1
    %v624 = vperm.slane %v620, 2
    %v625 = vperm.slane %v620, 3
    %v626 = vperm.slane %v620, 4
    %v627 = vperm.slane %v620, 5
    %v628 = vperm.slane %v620, 6
    %v629 = vperm.slane %v620, 7
    %v1030 = vunpack.c.l.b16 %v228
    %v1031 = vunpack.c.h.b16 %v228
    %v1032 = vunpack.c.l.b16 %v229
    %v1033 = vunpack.c.h.b16 %v229
    %v1034 = vunpack.c.l.b16 %v230
    %v1035 = vunpack.c.h.b16 %v230
    %v1036 = vunpack.c.l.b16 %v231
    %v1037 = vunpack.c.h.b16 %v231
    %v1038 = vunpack.c.l.b16 %v232
    %v1039 = vunpack.c.h.b16 %v232
    %v1040 = vunpack.c.l.b16 %v233
    %v1041 = vunpack.c.h.b16 %v233
    %v1042 = vunpack.c.l.b16 %v234
    %v1043 = vunpack.c.h.b16 %v234
    %v1044 = vunpack.c.l.b16 %v235
    %v1045 = vunpack.c.h.b16 %v235
    %v1046 = vunpack.c.l.b16 %v236
    %v1047 = vunpack.c.h.b16 %v236
    %v1048 = vunpack.c.l.b16 %v237
    %v1049 = vunpack.c.h.b16 %v237
    %v1050 = vunpack.c.l.b16 %v238
    %v1051 = vunpack.c.h.b16 %v238
    %v1052 = vunpack.c.l.b16 %v239
    %v1053 = vunpack.c.h.b16 %v239
    %v1054 = vunpack.c.l.b16 %v240
    %v1055 = vunpack.c.h.b16 %v240
    %v1056 = vunpack.c.l.b16 %v241
    %v1057 = vunpack.c.h.b16 %v241
    %v1058 = vunpack.c.l.b16 %v242
    %v1059 = vunpack.c.h.b16 %v242
    %v1060 = vunpack.c.l.b16 %v243
    %v1061 = vunpack.c.h.b16 %v243
    %v1062 = vunpack.c.l.b16 %v244
    %v1063 = vunpack.c.h.b16 %v244
    %v1064 = vunpack.c.l.b16 %v245
    %v1065 = vunpack.c.h.b16 %v245
    %v1066 = vunpack.c.l.b16 %v246
    %v1067 = vunpack.c.h.b16 %v246
    %v1068 = vunpack.c.l.b16 %v247
    %v1069 = vunpack.c.h.b16 %v247
    %v1070 = vunpack.c.l.b16 %v248
    %v1071 = vunpack.c.h.b16 %v248
    %v1072 = vunpack.c.l.b16 %v249
    %v1073 = vunpack.c.h.b16 %v249
    %v1074 = vunpack.c.l.b16 %v250
    %v1075 = vunpack.c.h.b16 %v250
    %v1076 = vunpack.c.l.b16 %v251
    %v1077 = vunpack.c.h.b16 %v251
    %v1078 = vunpack.c.l.b16 %v252
    %v1079 = vunpack.c.h.b16 %v252
    %v1080 = vunpack.c.l.b16 %v253
    %v1081 = vunpack.c.h.b16 %v253
    %v1082 = vunpack.c.l.b16 %v254
    %v1083 = vunpack.c.h.b16 %v254
    %v1084 = vunpack.c.l.b16 %v255
    %v1085 = vunpack.c.h.b16 %v255
    %v1086 = vunpack.c.l.b16 %v256
    %v1087 = vunpack.c.h.b16 %v256
    %v1088 = vunpack.c.l.b16 %v257
    %v1089 = vunpack.c.h.b16 %v257
    %v1090 = vunpack.c.l.b16 %v258
    %v1091 = vunpack.c.h.b16 %v258
    %v1092 = vunpack.c.l.b16 %v259
    %v1093 = vunpack.c.h.b16 %v259
    %v1094 = vunpack.c.l.b16 %v260
    %v1095 = vunpack.c.h.b16 %v260
    %v1096 = vunpack.c.l.b16 %v261
    %v1097 = vunpack.c.h.b16 %v261
    %v1098 = vunpack.c.l.b16 %v262
    %v1099 = vunpack.c.h.b16 %v262
    %v1100 = vunpack.c.l.b16 %v263
    %v1101 = vunpack.c.h.b16 %v263
    %v1102 = vunpack.c.l.b16 %v264
    %v1103 = vunpack.c.h.b16 %v264
    %v1104 = vunpack.c.l.b16 %v265
    %v1105 = vunpack.c.h.b16 %v265
    %v1106 = vunpack.c.l.b16 %v266
    %v1107 = vunpack.c.h.b16 %v266
    %v1108 = vunpack.c.l.b16 %v267
    %v1109 = vunpack.c.h.b16 %v267
    %v1110 = vunpack.c.l.b16 %v268
    %v1111 = vunpack.c.h.b16 %v268
    %v1112 = vunpack.c.l.b16 %v269
    %v1113 = vunpack.c.h.b16 %v269
    %v1114 = vunpack.c.l.b16 %v270
    %v1115 = vunpack.c.h.b16 %v270
    %v1116 = vunpack.c.l.b16 %v271
    %v1117 = vunpack.c.h.b16 %v271
    %v1118 = vunpack.c.l.b16 %v272
    %v1119 = vunpack.c.h.b16 %v272
    %v1120 = vunpack.c.l.b16 %v273
    %v1121 = vunpack.c.h.b16 %v273
    %v1122 = vunpack.c.l.b16 %v274
    %v1123 = vunpack.c.h.b16 %v274
    %v1124 = vunpack.c.l.b16 %v275
    %v1125 = vunpack.c.h.b16 %v275
    %v1126 = vunpack.c.l.b16 %v276
    %v1127 = vunpack.c.h.b16 %v276
    %v1128 = vunpack.c.l.b16 %v277
    %v1129 = vunpack.c.h.b16 %v277
    %v1130 = vunpack.c.l.b16 %v278
    %v1131 = vunpack.c.h.b16 %v278
    %v1132 = vunpack.c.l.b16 %v279
    %v1133 = vunpack.c.h.b16 %v279
    %v1134 = vunpack.c.l.b16 %v280
    %v1135 = vunpack.c.h.b16 %v280
    %v1136 = vunpack.c.l.b16 %v281
    %v1137 = vunpack.c.h.b16 %v281
    %v1138 = vunpack.c.l.b16 %v282
    %v1139 = vunpack.c.h.b16 %v282
    %v1140 = vunpack.c.l.b16 %v283
    %v1141 = vunpack.c.h.b16 %v283
    %v1142 = vunpack.c.l.b16 %v284
    %v1143 = vunpack.c.h.b16 %v284
    %v1144 = vunpack.c.l.b16 %v285
    %v1145 = vunpack.c.h.b16 %v285
    %v1146 = vunpack.c.l.b16 %v286
    %v1147 = vunpack.c.h.b16 %v286
    %v1148 = vunpack.c.l.b16 %v287
    %v1149 = vunpack.c.h.b16 %v287
    %v1150 = vunpack.c.l.b16 %v288
    %v1151 = vunpack.c.h.b16 %v288
    %v1152 = vunpack.c.l.b16 %v289
    %v1153 = vunpack.c.h.b16 %v289
    %v1154 = vunpack.c.l.b16 %v290
    %v1155 = vunpack.c.h.b16 %v290
    %v1156 = vunpack.c.l.b16 %v291
    %v1157 = vunpack.c.h.b16 %v291
    %v1158 = vunpack.c.l.b16 %v292
    %v1159 = vunpack.c.h.b16 %v292
    %v1160 = vunpack.c.l.b16 %v293
    %v1161 = vunpack.c.h.b16 %v293
    %v1162 = vunpack.c.l.b16 %v294
    %v1163 = vunpack.c.h.b16 %v294
    %v1164 = vunpack.c.l.b16 %v295
    %v1165 = vunpack.c.h.b16 %v295
    %v1166 = vunpack.c.l.b16 %v296
    %v1167 = vunpack.c.h.b16 %v296
    %v1168 = vunpack.c.l.b16 %v297
    %v1169 = vunpack.c.h.b16 %v297
    %v1170 = vunpack.c.l.b16 %v298
    %v1171 = vunpack.c.h.b16 %v298
    %v1172 = vunpack.c.l.b16 %v299
    %v1173 = vunpack.c.h.b16 %v299
    %v1174 = vunpack.c.l.b16 %v300
    %v1175 = vunpack.c.h.b16 %v300
    %v1176 = vunpack.c.l.b16 %v301
    %v1177 = vunpack.c.h.b16 %v301
    %v1178 = vunpack.c.l.b16 %v302
    %v1179 = vunpack.c.h.b16 %v302
    %v1180 = vunpack.c.l.b16 %v303
    %v1181 = vunpack.c.h.b16 %v303
    %v1182 = vunpack.c.l.b16 %v304
    %v1183 = vunpack.c.h.b16 %v304
    %v1184 = vunpack.c.l.b16 %v305
    %v1185 = vunpack.c.h.b16 %v305
    %v1186 = vunpack.c.l.b16 %v306
    %v1187 = vunpack.c.h.b16 %v306
    %v1188 = vunpack.c.l.b16 %v307
    %v1189 = vunpack.c.h.b16 %v307
    %v1190 = vunpack.c.l.b16 %v308
    %v1191 = vunpack.c.h.b16 %v308
    %v1192 = vunpack.c.l.b16 %v309
    %v1193 = vunpack.c.h.b16 %v309
    %v1194 = vunpack.c.l.b16 %v310
    %v1195 = vunpack.c.h.b16 %v310
    %v1196 = vunpack.c.l.b16 %v311
    %v1197 = vunpack.c.h.b16 %v311
    %v1198 = vunpack.c.l.b16 %v312
    %v1199 = vunpack.c.h.b16 %v312
    %v1200 = vunpack.c.l.b16 %v313
    %v1201 = vunpack.c.h.b16 %v313
    %v1202 = vunpack.c.l.b16 %v314
    %v1203 = vunpack.c.h.b16 %v314
    %v1204 = vunpack.c.l.b16 %v315
    %v1205 = vunpack.c.h.b16 %v315
    %v1206 = vunpack.c.l.b16 %v316
    %v1207 = vunpack.c.h.b16 %v316
    %v1208 = vunpack.c.l.b16 %v317
    %v1209 = vunpack.c.h.b16 %v317
    %v1210 = vunpack.c.l.b16 %v318
    %v1211 = vunpack.c.h.b16 %v318
    %v1212 = vunpack.c.l.b16 %v319
    %v1213 = vunpack.c.h.b16 %v319
    %v1214 = vunpack.c.l.b16 %v320
    %v1215 = vunpack.c.h.b16 %v320
    %v1216 = vunpack.c.l.b16 %v321
    %v1217 = vunpack.c.h.b16 %v321
    %v1218 = vunpack.c.l.b16 %v322
    %v1219 = vunpack.c.h.b16 %v322
    %v1220 = vunpack.c.l.b16 %v323
    %v1221 = vunpack.c.h.b16 %v323
    %v1222 = vunpack.c.l.b16 %v324
    %v1223 = vunpack.c.h.b16 %v324
    %v1224 = vunpack.c.l.b16 %v325
    %v1225 = vunpack.c.h.b16 %v325
    %v1226 = vunpack.c.l.b16 %v326
    %v1227 = vunpack.c.h.b16 %v326
    %v1228 = vunpack.c.l.b16 %v327
    %v1229 = vunpack.c.h.b16 %v327
    %v1230 = vunpack.c.l.b16 %v328
    %v1231 = vunpack.c.h.b16 %v328
    %v1232 = vunpack.c.l.b16 %v329
    %v1233 = vunpack.c.h.b16 %v329
    %v1234 = vunpack.c.l.b16 %v330
    %v1235 = vunpack.c.h.b16 %v330
    %v1236 = vunpack.c.l.b16 %v331
    %v1237 = vunpack.c.h.b16 %v331
    %v1238 = vunpack.c.l.b16 %v332
    %v1239 = vunpack.c.h.b16 %v332
    %v1240 = vunpack.c.l.b16 %v333
    %v1241 = vunpack.c.h.b16 %v333
    %v1242 = vunpack.c.l.b16 %v334
    %v1243 = vunpack.c.h.b16 %v334
    %v1244 = vunpack.c.l.b16 %v335
    %v1245 = vunpack.c.h.b16 %v335
    %v1246 = vunpack.c.l.b16 %v336
    %v1247 = vunpack.c.h.b16 %v336
    %v1248 = vunpack.c.l.b16 %v337
    %v1249 = vunpack.c.h.b16 %v337
    %v1250 = vunpack.c.l.b16 %v338
    %v1251 = vunpack.c.h.b16 %v338
    %v1252 = vunpack.c.l.b16 %v339
    %v1253 = vunpack.c.h.b16 %v339
    %v1254 = vunpack.c.l.b16 %v340
    %v1255 = vunpack.c.h.b16 %v340
    %v1256 = vunpack.c.l.b16 %v341
    %v1257 = vunpack.c.h.b16 %v341
    %v1258 = vunpack.c.l.b16 %v342
    %v1259 = vunpack.c.h.b16 %v342
    %v1260 = vunpack.c.l.b16 %v343
    %v1261 = vunpack.c.h.b16 %v343
    %v1262 = vunpack.c.l.b16 %v344
    %v1263 = vunpack.c.h.b16 %v344
    %v1264 = vunpack.c.l.b16 %v345
    %v1265 = vunpack.c.h.b16 %v345
    %v1266 = vunpack.c.l.b16 %v346
    %v1267 = vunpack.c.h.b16 %v346
    %v1268 = vunpack.c.l.b16 %v347
    %v1269 = vunpack.c.h.b16 %v347
    %v1270 = vunpack.c.l.b16 %v348
    %v1271 = vunpack.c.h.b16 %v348
    %v1272 = vunpack.c.l.b16 %v349
    %v1273 = vunpack.c.h.b16 %v349
    %v1274 = vunpack.c.l.b16 %v350
    %v1275 = vunpack.c.h.b16 %v350
    %v1276 = vunpack.c.l.b16 %v351
    %v1277 = vunpack.c.h.b16 %v351
    %v1278 = vunpack.c.l.b16 %v352
    %v1279 = vunpack.c.h.b16 %v352
    %v1280 = vunpack.c.l.b16 %v353
    %v1281 = vunpack.c.h.b16 %v353
    %v1282 = vunpack.c.l.b16 %v354
    %v1283 = vunpack.c.h.b16 %v354
    %v1284 = vunpack.c.l.b16 %v355
    %v1285 = vunpack.c.h.b16 %v355
    %v1286 = vunpack.c.l.b16 %v356
    %v1287 = vunpack.c.h.b16 %v356
    %v1288 = vunpack.c.l.b16 %v357
    %v1289 = vunpack.c.h.b16 %v357
    %v1290 = vunpack.c.l.b16 %v358
    %v1291 = vunpack.c.h.b16 %v358
    %v1292 = vunpack.c.l.b16 %v359
    %v1293 = vunpack.c.h.b16 %v359
    %v1294 = vunpack.c.l.b16 %v360
    %v1295 = vunpack.c.h.b16 %v360
    %v1296 = vunpack.c.l.b16 %v361
    %v1297 = vunpack.c.h.b16 %v361
    %v1298 = vunpack.c.l.b16 %v362
    %v1299 = vunpack.c.h.b16 %v362
    %v1300 = vunpack.c.l.b16 %v363
    %v1301 = vunpack.c.h.b16 %v363
    %v1302 = vunpack.c.l.b16 %v364
    %v1303 = vunpack.c.h.b16 %v364
    %v1304 = vunpack.c.l.b16 %v365
    %v1305 = vunpack.c.h.b16 %v365
    %v1306 = vunpack.c.l.b16 %v366
    %v1307 = vunpack.c.h.b16 %v366
    %v1308 = vunpack.c.l.b16 %v367
    %v1309 = vunpack.c.h.b16 %v367
    %v1310 = vunpack.c.l.b16 %v368
    %v1311 = vunpack.c.h.b16 %v368
    %v1312 = vunpack.c.l.b16 %v369
    %v1313 = vunpack.c.h.b16 %v369
    %v1314 = vunpack.c.l.b16 %v370
    %v1315 = vunpack.c.h.b16 %v370
    %v1316 = vunpack.c.l.b16 %v371
    %v1317 = vunpack.c.h.b16 %v371
    %v1318 = vunpack.c.l.b16 %v372
    %v1319 = vunpack.c.h.b16 %v372
    %v1320 = vunpack.c.l.b16 %v373
    %v1321 = vunpack.c.h.b16 %v373
    %v1322 = vunpack.c.l.b16 %v374
    %v1323 = vunpack.c.h.b16 %v374
    %v1324 = vunpack.c.l.b16 %v375
    %v1325 = vunpack.c.h.b16 %v375
    %v1326 = vunpack.c.l.b16 %v376
    %v1327 = vunpack.c.h.b16 %v376
    %v1328 = vunpack.c.l.b16 %v377
    %v1329 = vunpack.c.h.b16 %v377
    %v1330 = vunpack.c.l.b16 %v378
    %v1331 = vunpack.c.h.b16 %v378
    %v1332 = vunpack.c.l.b16 %v379
    %v1333 = vunpack.c.h.b16 %v379
    %v1334 = vunpack.c.l.b16 %v380
    %v1335 = vunpack.c.h.b16 %v380
    %v1336 = vunpack.c.l.b16 %v381
    %v1337 = vunpack.c.h.b16 %v381
    %v1338 = vunpack.c.l.b16 %v382
    %v1339 = vunpack.c.h.b16 %v382
    %v1340 = vunpack.c.l.b16 %v383
    %v1341 = vunpack.c.h.b16 %v383
    %v1342 = vunpack.c.l.b16 %v384
    %v1343 = vunpack.c.h.b16 %v384
    %v1344 = vunpack.c.l.b16 %v385
    %v1345 = vunpack.c.h.b16 %v385
    %v1346 = vunpack.c.l.b16 %v386
    %v1347 = vunpack.c.h.b16 %v386
    %v1348 = vunpack.c.l.b16 %v387
    %v1349 = vunpack.c.h.b16 %v387
    %v1350 = vunpack.c.l.b16 %v388
    %v1351 = vunpack.c.h.b16 %v388
    %v1352 = vunpack.c.l.b16 %v389
    %v1353 = vunpack.c.h.b16 %v389
    %v1354 = vunpack.c.l.b16 %v390
    %v1355 = vunpack.c.h.b16 %v390
    %v1356 = vunpack.c.l.b16 %v391
    %v1357 = vunpack.c.h.b16 %v391
    %v1358 = vunpack.c.l.b16 %v392
    %v1359 = vunpack.c.h.b16 %v392
    %v1360 = vunpack.c.l.b16 %v393
    %v1361 = vunpack.c.h.b16 %v393
    %v1362 = vunpack.c.l.b16 %v394
    %v1363 = vunpack.c.h.b16 %v394
    %v1364 = vunpack.c.l.b16 %v395
    %v1365 = vunpack.c.h.b16 %v395
    %v1366 = vunpack.c.l.b16 %v396
    %v1367 = vunpack.c.h.b16 %v396
    %v1368 = vunpack.c.l.b16 %v397
    %v1369 = vunpack.c.h.b16 %v397
    %v1370 = vunpack.c.l.b16 %v398
    %v1371 = vunpack.c.h.b16 %v398
    %v1372 = vunpack.c.l.b16 %v399
    %v1373 = vunpack.c.h.b16 %v399
    %v1374 = vunpack.c.l.b16 %v400
    %v1375 = vunpack.c.h.b16 %v400
    %v1376 = vunpack.c.l.b16 %v401
    %v1377 = vunpack.c.h.b16 %v401
    %v1378 = vunpack.c.l.b16 %v402
    %v1379 = vunpack.c.h.b16 %v402
    %v1380 = vunpack.c.l.b16 %v403
    %v1381 = vunpack.c.h.b16 %v403
    %v1382 = vunpack.c.l.b16 %v404
    %v1383 = vunpack.c.h.b16 %v404
    %v1384 = vunpack.c.l.b16 %v405
    %v1385 = vunpack.c.h.b16 %v405
    %v1386 = vunpack.c.l.b16 %v406
    %v1387 = vunpack.c.h.b16 %v406
    %v1388 = vunpack.c.l.b16 %v407
    %v1389 = vunpack.c.h.b16 %v407
    %v1390 = vunpack.c.l.b16 %v408
    %v1391 = vunpack.c.h.b16 %v408
    %v1392 = vunpack.c.l.b16 %v409
    %v1393 = vunpack.c.h.b16 %v409
    %v1394 = vunpack.c.l.b16 %v410
    %v1395 = vunpack.c.h.b16 %v410
    %v1396 = vunpack.c.l.b16 %v411
    %v1397 = vunpack.c.h.b16 %v411
    %v1398 = vunpack.c.l.b16 %v412
    %v1399 = vunpack.c.h.b16 %v412
    %v1400 = vunpack.c.l.b16 %v413
    %v1401 = vunpack.c.h.b16 %v413
    %v1402 = vunpack.c.l.b16 %v414
    %v1403 = vunpack.c.h.b16 %v414
    %v1404 = vunpack.c.l.b16 %v415
    %v1405 = vunpack.c.h.b16 %v415
    %v1406 = vunpack.c.l.b16 %v416
    %v1407 = vunpack.c.h.b16 %v416
    %v1408 = vunpack.c.l.b16 %v417
    %v1409 = vunpack.c.h.b16 %v417
    %v1410 = vunpack.c.l.b16 %v418
    %v1411 = vunpack.c.h.b16 %v418
    %v1412 = vunpack.c.l.b16 %v419
    %v1413 = vunpack.c.h.b16 %v419
    %v1414 = vunpack.c.l.b16 %v420
    %v1415 = vunpack.c.h.b16 %v420
    %v1416 = vunpack.c.l.b16 %v421
    %v1417 = vunpack.c.h.b16 %v421
    %v1418 = vunpack.c.l.b16 %v422
    %v1419 = vunpack.c.h.b16 %v422
    %v1420 = vunpack.c.l.b16 %v423
    %v1421 = vunpack.c.h.b16 %v423
    %v1422 = vunpack.c.l.b16 %v424
    %v1423 = vunpack.c.h.b16 %v424
    %v1424 = vunpack.c.l.b16 %v425
    %v1425 = vunpack.c.h.b16 %v425
    %v1426 = vunpack.c.l.b16 %v426
    %v1427 = vunpack.c.h.b16 %v426
    %v1428 = vunpack.c.l.b16 %v427
    %v1429 = vunpack.c.h.b16 %v427
    %v1430 = vunpack.c.l.b16 %v428
    %v1431 = vunpack.c.h.b16 %v428
    %v1432 = vunpack.c.l.b16 %v429
    %v1433 = vunpack.c.h.b16 %v429
    %v1434 = vunpack.c.l.b16 %v430
    %v1435 = vunpack.c.h.b16 %v430
    %v1436 = vunpack.c.l.b16 %v431
    %v1437 = vunpack.c.h.b16 %v431
    %v1438 = vunpack.c.l.b16 %v432
    %v1439 = vunpack.c.h.b16 %v432
    %v1440 = vunpack.c.l.b16 %v433
    %v1441 = vunpack.c.h.b16 %v433
    %v1442 = vunpack.c.l.b16 %v434
    %v1443 = vunpack.c.h.b16 %v434
    %v1444 = vunpack.c.l.b16 %v435
    %v1445 = vunpack.c.h.b16 %v435
    %v1446 = vunpack.c.l.b16 %v436
    %v1447 = vunpack.c.h.b16 %v436
    %v1448 = vunpack.c.l.b16 %v437
    %v1449 = vunpack.c.h.b16 %v437
    %v1450 = vunpack.c.l.b16 %v438
    %v1451 = vunpack.c.h.b16 %v438
    %v1452 = vunpack.c.l.b16 %v439
    %v1453 = vunpack.c.h.b16 %v439
    %v1454 = vunpack.c.l.b16 %v440
    %v1455 = vunpack.c.h.b16 %v440
    %v1456 = vunpack.c.l.b16 %v441
    %v1457 = vunpack.c.h.b16 %v441
    %v1458 = vunpack.c.l.b16 %v442
    %v1459 = vunpack.c.h.b16 %v442
    %v1460 = vunpack.c.l.b16 %v443
    %v1461 = vunpack.c.h.b16 %v443
    %v1462 = vunpack.c.l.b16 %v444
    %v1463 = vunpack.c.h.b16 %v444
    %v1464 = vunpack.c.l.b16 %v445
    %v1465 = vunpack.c.h.b16 %v445
    %v1466 = vunpack.c.l.b16 %v446
    %v1467 = vunpack.c.h.b16 %v446
    %v1468 = vunpack.c.l.b16 %v447
    %v1469 = vunpack.c.h.b16 %v447
    %v1470 = vunpack.c.l.b16 %v448
    %v1471 = vunpack.c.h.b16 %v448
    %v1472 = vunpack.c.l.b16 %v449
    %v1473 = vunpack.c.h.b16 %v449
    %v1474 = vunpack.c.l.b16 %v450
    %v1475 = vunpack.c.h.b16 %v450
    %v1476 = vunpack.c.l.b16 %v451
    %v1477 = vunpack.c.h.b16 %v451
    %v1478 = vunpack.c.l.b16 %v452
    %v1479 = vunpack.c.h.b16 %v452
    %v1480 = vunpack.c.l.b16 %v453
    %v1481 = vunpack.c.h.b16 %v453
    %v1482 = vunpack.c.l.b16 %v454
    %v1483 = vunpack.c.h.b16 %v454
    %v1484 = vunpack.c.l.b16 %v455
    %v1485 = vunpack.c.h.b16 %v455
    %v1486 = vunpack.c.l.b16 %v456
    %v1487 = vunpack.c.h.b16 %v456
    %v1488 = vunpack.c.l.b16 %v457
    %v1489 = vunpack.c.h.b16 %v457
    %v1490 = vunpack.c.l.b16 %v458
    %v1491 = vunpack.c.h.b16 %v458
    %v1492 = vunpack.c.l.b16 %v459
    %v1493 = vunpack.c.h.b16 %v459
    %v1494 = vunpack.c.l.b16 %v460
    %v1495 = vunpack.c.h.b16 %v460
    %v1496 = vunpack.c.l.b16 %v461
    %v1497 = vunpack.c.h.b16 %v461
    %v1498 = vunpack.c.l.b16 %v462
    %v1499 = vunpack.c.h.b16 %v462
    %v1500 = vunpack.c.l.b16 %v463
    %v1501 = vunpack.c.h.b16 %v463
    %v1502 = vunpack.c.l.b16 %v464
    %v1503 = vunpack.c.h.b16 %v464
    %v1504 = vunpack.c.l.b16 %v465
    %v1505 = vunpack.c.h.b16 %v465
    %v1506 = vunpack.c.l.b16 %v466
    %v1507 = vunpack.c.h.b16 %v466
    %v1508 = vunpack.c.l.b16 %v467
    %v1509 = vunpack.c.h.b16 %v467
    %v1510 = vunpack.c.l.b16 %v468
    %v1511 = vunpack.c.h.b16 %v468
    %v1512 = vunpack.c.l.b16 %v469
    %v1513 = vunpack.c.h.b16 %v469
    %v1514 = vunpack.c.l.b16 %v470
    %v1515 = vunpack.c.h.b16 %v470
    %v1516 = vunpack.c.l.b16 %v471
    %v1517 = vunpack.c.h.b16 %v471
    %v1518 = vunpack.c.l.b16 %v472
    %v1519 = vunpack.c.h.b16 %v472
    %v1520 = vunpack.c.l.b16 %v473
    %v1521 = vunpack.c.h.b16 %v473
    %v1522 = vunpack.c.l.b16 %v474
    %v1523 = vunpack.c.h.b16 %v474
    %v1524 = vunpack.c.l.b16 %v475
    %v1525 = vunpack.c.h.b16 %v475
    %v1526 = vunpack.c.l.b16 %v476
    %v1527 = vunpack.c.h.b16 %v476
    %v1528 = vunpack.c.l.b16 %v477
    %v1529 = vunpack.c.h.b16 %v477
    %v1530 = vunpack.c.l.b16 %v478
    %v1531 = vunpack.c.h.b16 %v478
    %v1532 = vunpack.c.l.b16 %v479
    %v1533 = vunpack.c.h.b16 %v479
    %v1534 = vunpack.c.l.b16 %v480
    %v1535 = vunpack.c.h.b16 %v480
    %v1536 = vunpack.c.l.b16 %v481
    %v1537 = vunpack.c.h.b16 %v481
    %v1538 = vunpack.c.l.b16 %v482
    %v1539 = vunpack.c.h.b16 %v482
    %v1540 = vunpack.c.l.b16 %v483
    %v1541 = vunpack.c.h.b16 %v483
    %v1542 = vunpack.c.l.b16 %v484
    %v1543 = vunpack.c.h.b16 %v484
    %v1544 = vunpack.c.l.b16 %v485
    %v1545 = vunpack.c.h.b16 %v485
    %v1546 = vunpack.c.l.b16 %v486
    %v1547 = vunpack.c.h.b16 %v486
    %v1548 = vunpack.c.l.b16 %v487
    %v1549 = vunpack.c.h.b16 %v487
    %v1550 = vunpack.c.l.b16 %v488
    %v1551 = vunpack.c.h.b16 %v488
    %v1552 = vunpack.c.l.b16 %v489
    %v1553 = vunpack.c.h.b16 %v489
    %v1554 = vunpack.c.l.b16 %v490
    %v1555 = vunpack.c.h.b16 %v490
    %v1556 = vunpack.c.l.b16 %v491
    %v1557 = vunpack.c.h.b16 %v491
    %v1558 = vunpack.c.l.b16 %v492
    %v1559 = vunpack.c.h.b16 %v492
    %v1560 = vunpack.c.l.b16 %v493
    %v1561 = vunpack.c.h.b16 %v493
    %v1562 = vunpack.c.l.b16 %v494
    %v1563 = vunpack.c.h.b16 %v494
    %v1564 = vunpack.c.l.b16 %v495
    %v1565 = vunpack.c.h.b16 %v495
    %v1566 = vunpack.c.l.b16 %v496
    %v1567 = vunpack.c.h.b16 %v496
    %v1568 = vunpack.c.l.b16 %v497
    %v1569 = vunpack.c.h.b16 %v497
    %v1570 = vunpack.c.l.b16 %v498
    %v1571 = vunpack.c.h.b16 %v498
    %v1572 = vunpack.c.l.b16 %v499
    %v1573 = vunpack.c.h.b16 %v499
    %v1574 = vunpack.c.l.b16 %v500
    %v1575 = vunpack.c.h.b16 %v500
    %v1576 = vunpack.c.l.b16 %v501
    %v1577 = vunpack.c.h.b16 %v501
    %v1578 = vunpack.c.l.b16 %v502
    %v1579 = vunpack.c.h.b16 %v502
    %v1580 = vunpack.c.l.b16 %v503
    %v1581 = vunpack.c.h.b16 %v503
    %v1582 = vunpack.c.l.b16 %v504
    %v1583 = vunpack.c.h.b16 %v504
    %v1584 = vunpack.c.l.b16 %v505
    %v1585 = vunpack.c.h.b16 %v505
    %v1586 = vunpack.c.l.b16 %v506
    %v1587 = vunpack.c.h.b16 %v506
    %v1588 = vunpack.c.l.b16 %v507
    %v1589 = vunpack.c.h.b16 %v507
    %v1590 = vunpack.c.l.b16 %v508
    %v1591 = vunpack.c.h.b16 %v508
    %v1592 = vunpack.c.l.b16 %v509
    %v1593 = vunpack.c.h.b16 %v509
    %v1594 = vunpack.c.l.b16 %v510
    %v1595 = vunpack.c.h.b16 %v510
    %v1596 = vunpack.c.l.b16 %v511
    %v1597 = vunpack.c.h.b16 %v511
    %v1598 = vunpack.c.l.b16 %v512
    %v1599 = vunpack.c.h.b16 %v512
    %v1600 = vunpack.c.l.b16 %v513
    %v1601 = vunpack.c.h.b16 %v513
    %v1602 = vunpack.c.l.b16 %v514
    %v1603 = vunpack.c.h.b16 %v514
    %v1604 = vunpack.c.l.b16 %v515
    %v1605 = vunpack.c.h.b16 %v515
    %v1606 = vunpack.c.l.b16 %v516
    %v1607 = vunpack.c.h.b16 %v516
    %v1608 = vunpack.c.l.b16 %v517
    %v1609 = vunpack.c.h.b16 %v517
    %v1610 = vunpack.c.l.b16 %v518
    %v1611 = vunpack.c.h.b16 %v518
    %v1612 = vunpack.c.l.b16 %v519
    %v1613 = vunpack.c.h.b16 %v519
    %v1614 = vunpack.c.l.b16 %v520
    %v1615 = vunpack.c.h.b16 %v520
    %v1616 = vunpack.c.l.b16 %v521
    %v1617 = vunpack.c.h.b16 %v521
    %v1618 = vunpack.c.l.b16 %v522
    %v1619 = vunpack.c.h.b16 %v522
    %v1620 = vunpack.c.l.b16 %v523
    %v1621 = vunpack.c.h.b16 %v523
    %v1622 = vunpack.c.l.b16 %v524
    %v1623 = vunpack.c.h.b16 %v524
    %v1624 = vunpack.c.l.b16 %v525
    %v1625 = vunpack.c.h.b16 %v525
    %v1626 = vunpack.c.l.b16 %v526
    %v1627 = vunpack.c.h.b16 %v526
    %v1628 = vunpack.c.l.b16 %v527
    %v1629 = vunpack.c.h.b16 %v527
    %v1630 = vunpack.c.l.b16 %v528
    %v1631 = vunpack.c.h.b16 %v528
    %v1632 = vunpack.c.l.b16 %v529
    %v1633 = vunpack.c.h.b16 %v529
    %v1634 = vunpack.c.l.b16 %v530
    %v1635 = vunpack.c.h.b16 %v530
    %v1636 = vunpack.c.l.b16 %v531
    %v1637 = vunpack.c.h.b16 %v531
    %v1638 = vunpack.c.l.b16 %v532
    %v1639 = vunpack.c.h.b16 %v532
    %v1640 = vunpack.c.l.b16 %v533
    %v1641 = vunpack.c.h.b16 %v533
    %v1642 = vunpack.c.l.b16 %v534
    %v1643 = vunpack.c.h.b16 %v534
    %v1644 = vunpack.c.l.b16 %v535
    %v1645 = vunpack.c.h.b16 %v535
    %v1646 = vunpack.c.l.b16 %v536
    %v1647 = vunpack.c.h.b16 %v536
    %v1648 = vunpack.c.l.b16 %v537
    %v1649 = vunpack.c.h.b16 %v537
    %v1650 = vunpack.c.l.b16 %v538
    %v1651 = vunpack.c.h.b16 %v538
    %v1652 = vunpack.c.l.b16 %v539
    %v1653 = vunpack.c.h.b16 %v539
    %v1654 = vunpack.c.l.b16 %v540
    %v1655 = vunpack.c.h.b16 %v540
    %v1656 = vunpack.c.l.b16 %v541
    %v1657 = vunpack.c.h.b16 %v541
    %v1658 = vunpack.c.l.b16 %v542
    %v1659 = vunpack.c.h.b16 %v542
    %v1660 = vunpack.c.l.b16 %v543
    %v1661 = vunpack.c.h.b16 %v543
    %v1662 = vunpack.c.l.b16 %v544
    %v1663 = vunpack.c.h.b16 %v544
    %v1664 = vunpack.c.l.b16 %v545
    %v1665 = vunpack.c.h.b16 %v545
    %v1666 = vunpack.c.l.b16 %v546
    %v1667 = vunpack.c.h.b16 %v546
    %v1668 = vunpack.c.l.b16 %v547
    %v1669 = vunpack.c.h.b16 %v547
    %v1670 = vunpack.c.l.b16 %v548
    %v1671 = vunpack.c.h.b16 %v548
    %v1672 = vunpack.c.l.b16 %v549
    %v1673 = vunpack.c.h.b16 %v549
    %v1674 = vunpack.c.l.b16 %v550
    %v1675 = vunpack.c.h.b16 %v550
    %v1676 = vunpack.c.l.b16 %v551
    %v1677 = vunpack.c.h.b16 %v551
    %v1678 = vunpack.c.l.b16 %v552
    %v1679 = vunpack.c.h.b16 %v552
    %v1680 = vunpack.c.l.b16 %v553
    %v1681 = vunpack.c.h.b16 %v553
    %v1682 = vunpack.c.l.b16 %v554
    %v1683 = vunpack.c.h.b16 %v554
    %v1684 = vunpack.c.l.b16 %v555
    %v1685 = vunpack.c.h.b16 %v555
    %v1686 = vunpack.c.l.b16 %v556
    %v1687 = vunpack.c.h.b16 %v556
    %v1688 = vunpack.c.l.b16 %v557
    %v1689 = vunpack.c.h.b16 %v557
    %v1690 = vunpack.c.l.b16 %v558
    %v1691 = vunpack.c.h.b16 %v558
    %v1692 = vunpack.c.l.b16 %v559
    %v1693 = vunpack.c.h.b16 %v559
    %v1694 = vunpack.c.l.b16 %v560
    %v1695 = vunpack.c.h.b16 %v560
    %v1696 = vunpack.c.l.b16 %v561
    %v1697 = vunpack.c.h.b16 %v561
    %v1698 = vunpack.c.l.b16 %v562
    %v1699 = vunpack.c.h.b16 %v562
    %v1700 = vunpack.c.l.b16 %v563
    %v1701 = vunpack.c.h.b16 %v563
    %v1702 = vunpack.c.l.b16 %v564
    %v1703 = vunpack.c.h.b16 %v564
    %v1704 = vunpack.c.l.b16 %v565
    %v1705 = vunpack.c.h.b16 %v565
    %v1706 = vunpack.c.l.b16 %v566
    %v1707 = vunpack.c.h.b16 %v566
    %v1708 = vunpack.c.l.b16 %v567
    %v1709 = vunpack.c.h.b16 %v567
    %v1710 = vunpack.c.l.b16 %v568
    %v1711 = vunpack.c.h.b16 %v568
    %v1712 = vunpack.c.l.b16 %v569
    %v1713 = vunpack.c.h.b16 %v569
    %v1714 = vunpack.c.l.b16 %v570
    %v1715 = vunpack.c.h.b16 %v570
    %v1716 = vunpack.c.l.b16 %v571
    %v1717 = vunpack.c.h.b16 %v571
    %v1718 = vunpack.c.l.b16 %v572
    %v1719 = vunpack.c.h.b16 %v572
    %v1720 = vunpack.c.l.b16 %v573
    %v1721 = vunpack.c.h.b16 %v573
    %v1722 = vunpack.c.l.b16 %v574
    %v1723 = vunpack.c.h.b16 %v574
    %v1724 = vunpack.c.l.b16 %v575
    %v1725 = vunpack.c.h.b16 %v575
    %v1726 = vunpack.c.l.b16 %v576
    %v1727 = vunpack.c.h.b16 %v576
    %v1728 = vunpack.c.l.b16 %v577
    %v1729 = vunpack.c.h.b16 %v577
    %v1730 = vunpack.c.l.b16 %v578
    %v1731 = vunpack.c.h.b16 %v578
    %v1732 = vunpack.c.l.b16 %v579
    %v1733 = vunpack.c.h.b16 %v579
    %v1734 = vunpack.c.l.b16 %v580
    %v1735 = vunpack.c.h.b16 %v580
    %v1736 = vunpack.c.l.b16 %v581
    %v1737 = vunpack.c.h.b16 %v581
    %v1738 = vunpack.c.l.b16 %v582
    %v1739 = vunpack.c.h.b16 %v582
    %v1740 = vunpack.c.l.b16 %v583
    %v1741 = vunpack.c.h.b16 %v583
    %v1742 = vunpack.c.l.b16 %v584
    %v1743 = vunpack.c.h.b16 %v584
    %v1744 = vunpack.c.l.b16 %v585
    %v1745 = vunpack.c.h.b16 %v585
    %v1746 = vunpack.c.l.b16 %v586
    %v1747 = vunpack.c.h.b16 %v586
    %v1748 = vunpack.c.l.b16 %v587
    %v1749 = vunpack.c.h.b16 %v587
    %v1750 = vunpack.c.l.b16 %v588
    %v1751 = vunpack.c.h.b16 %v588
    %v1752 = vunpack.c.l.b16 %v589
    %v1753 = vunpack.c.h.b16 %v589
    %v1754 = vunpack.c.l.b16 %v590
    %v1755 = vunpack.c.h.b16 %v590
    %v1756 = vunpack.c.l.b16 %v591
    %v1757 = vunpack.c.h.b16 %v591
    %v1758 = vunpack.c.l.b16 %v592
    %v1759 = vunpack.c.h.b16 %v592
    %v1760 = vunpack.c.l.b16 %v593
    %v1761 = vunpack.c.h.b16 %v593
    %v1762 = vunpack.c.l.b16 %v594
    %v1763 = vunpack.c.h.b16 %v594
    %v1764 = vunpack.c.l.b16 %v595
    %v1765 = vunpack.c.h.b16 %v595
    %v1766 = vunpack.c.l.b16 %v596
    %v1767 = vunpack.c.h.b16 %v596
    %v1768 = vunpack.c.l.b16 %v597
    %v1769 = vunpack.c.h.b16 %v597
    %v1770 = vunpack.c.l.b16 %v598
    %v1771 = vunpack.c.h.b16 %v598
    %v1772 = vunpack.c.l.b16 %v599
    %v1773 = vunpack.c.h.b16 %v599
    %v1774 = vunpack.c.l.b16 %v600
    %v1775 = vunpack.c.h.b16 %v600
    %v1776 = vunpack.c.l.b16 %v601
    %v1777 = vunpack.c.h.b16 %v601
    %v1778 = vunpack.c.l.b16 %v602
    %v1779 = vunpack.c.h.b16 %v602
    %v1780 = vunpack.c.l.b16 %v603
    %v1781 = vunpack.c.h.b16 %v603
    %v1782 = vunpack.c.l.b16 %v604
    %v1783 = vunpack.c.h.b16 %v604
    %v1784 = vunpack.c.l.b16 %v605
    %v1785 = vunpack.c.h.b16 %v605
    %v1786 = vunpack.c.l.b16 %v606
    %v1787 = vunpack.c.h.b16 %v606
    %v1788 = vunpack.c.l.b16 %v607
    %v1789 = vunpack.c.h.b16 %v607
    %v1790 = vunpack.c.l.b16 %v608
    %v1791 = vunpack.c.h.b16 %v608
    %v1792 = vunpack.c.l.b16 %v609
    %v1793 = vunpack.c.h.b16 %v609
    %v1794 = vunpack.c.l.b16 %v610
    %v1795 = vunpack.c.h.b16 %v610
    %v1796 = vunpack.c.l.b16 %v611
    %v1797 = vunpack.c.h.b16 %v611
    %v1798 = vunpack.c.l.b16 %v612
    %v1799 = vunpack.c.h.b16 %v612
    %v1800 = vunpack.c.l.b16 %v613
    %v1801 = vunpack.c.h.b16 %v613
    %v1802 = vunpack.c.l.b16 %v614
    %v1803 = vunpack.c.h.b16 %v614
    %v1804 = vunpack.c.l.b16 %v615
    %v1805 = vunpack.c.h.b16 %v615
    %v1806 = vunpack.c.l.b16 %v616
    %v1807 = vunpack.c.h.b16 %v616
    %v1808 = vunpack.c.l.b16 %v617
    %v1809 = vunpack.c.h.b16 %v617
    %v1810 = vunpack.c.l.b16 %v618
    %v1811 = vunpack.c.h.b16 %v618
    %v1812 = vunpack.c.l.b16 %v619
    %v1813 = vunpack.c.h.b16 %v619
    %v1814 = vpack.c.b16 %v1038, %v1030
    %v1815 = vpack.c.b16 %v1039, %v1031
    %v1816 = vpack.c.b16 %v1040, %v1032
    %v1817 = vpack.c.b16 %v1041, %v1033
    %v1818 = vpack.c.b16 %v1042, %v1034
    %v1819 = vpack.c.b16 %v1043, %v1035
    %v1820 = vpack.c.b16 %v1044, %v1036
    %v1821 = vpack.c.b16 %v1045, %v1037
    %v1822 = vpack.c.b16 %v1054, %v1046
    %v1823 = vpack.c.b16 %v1055, %v1047
    %v1824 = vpack.c.b16 %v1056, %v1048
    %v1825 = vpack.c.b16 %v1057, %v1049
    %v1826 = vpack.c.b16 %v1058, %v1050
    %v1827 = vpack.c.b16 %v1059, %v1051
    %v1828 = vpack.c.b16 %v1060, %v1052
    %v1829 = vpack.c.b16 %v1061, %v1053
    %v1830 = vpack.c.b16 %v1070, %v1062
    %v1831 = vpack.c.b16 %v1071, %v1063
    %v1832 = vpack.c.b16 %v1072, %v1064
    %v1833 = vpack.c.b16 %v1073, %v1065
    %v1834 = vpack.c.b16 %v1074, %v1066
    %v1835 = vpack.c.b16 %v1075, %v1067
    %v1836 = vpack.c.b16 %v1076, %v1068
    %v1837 = vpack.c.b16 %v1077, %v1069
    %v1838 = vpack.c.b16 %v1086, %v1078
    %v1839 = vpack.c.b16 %v1087, %v1079
    %v1840 = vpack.c.b16 %v1088, %v1080
    %v1841 = vpack.c.b16 %v1089, %v1081
    %v1842 = vpack.c.b16 %v1090, %v1082
    %v1843 = vpack.c.b16 %v1091, %v1083
    %v1844 = vpack.c.b16 %v1092, %v1084
    %v1845 = vpack.c.b16 %v1093, %v1085
    %v1846 = vpack.c.b16 %v1102, %v1094
    %v1847 = vpack.c.b16 %v1103, %v1095
    %v1848 = vpack.c.b16 %v1104, %v1096
    %v1849 = vpack.c.b16 %v1105, %v1097
    %v1850 = vpack.c.b16 %v1106, %v1098
    %v1851 = vpack.c.b16 %v1107, %v1099
    %v1852 = vpack.c.b16 %v1108, %v1100
    %v1853 = vpack.c.b16 %v1109, %v1101
    %v1854 = vpack.c.b16 %v1118, %v1110
    %v1855 = vpack.c.b16 %v1119, %v1111
    %v1856 = vpack.c.b16 %v1120, %v1112
    %v1857 = vpack.c.b16 %v1121, %v1113
    %v1858 = vpack.c.b16 %v1122, %v1114
    %v1859 = vpack.c.b16 %v1123, %v1115
    %v1860 = vpack.c.b16 %v1124, %v1116
    %v1861 = vpack.c.b16 %v1125, %v1117
    %v1862 = vpack.c.b16 %v1134, %v1126
    %v1863 = vpack.c.b16 %v1135, %v1127
    %v1864 = vpack.c.b16 %v1136, %v1128
    %v1865 = vpack.c.b16 %v1137, %v1129
    %v1866 = vpack.c.b16 %v1138, %v1130
    %v1867 = vpack.c.b16 %v1139, %v1131
    %v1868 = vpack.c.b16 %v1140, %v1132
    %v1869 = vpack.c.b16 %v1141, %v1133
    %v1870 = vpack.c.b16 %v1150, %v1142
    %v1871 = vpack.c.b16 %v1151, %v1143
    %v1872 = vpack.c.b16 %v1152, %v1144
    %v1873 = vpack.c.b16 %v1153, %v1145
    %v1874 = vpack.c.b16 %v1154, %v1146
    %v1875 = vpack.c.b16 %v1155, %v1147
    %v1876 = vpack.c.b16 %v1156, %v1148
    %v1877 = vpack.c.b16 %v1157, %v1149
    %v1878 = vpack.c.b16 %v1166, %v1158
    %v1879 = vpack.c.b16 %v1167, %v1159
    %v1880 = vpack.c.b16 %v1168, %v1160
    %v1881 = vpack.c.b16 %v1169, %v1161
    %v1882 = vpack.c.b16 %v1170, %v1162
    %v1883 = vpack.c.b16 %v1171, %v1163
    %v1884 = vpack.c.b16 %v1172, %v1164
    %v1885 = vpack.c.b16 %v1173, %v1165
    %v1886 = vpack.c.b16 %v1182, %v1174
    %v1887 = vpack.c.b16 %v1183, %v1175
    %v1888 = vpack.c.b16 %v1184, %v1176
    %v1889 = vpack.c.b16 %v1185, %v1177
    %v1890 = vpack.c.b16 %v1186, %v1178
    %v1891 = vpack.c.b16 %v1187, %v1179
    %v1892 = vpack.c.b16 %v1188, %v1180
    %v1893 = vpack.c.b16 %v1189, %v1181
    %v1894 = vpack.c.b16 %v1198, %v1190
    %v1895 = vpack.c.b16 %v1199, %v1191
    %v1896 = vpack.c.b16 %v1200, %v1192
    %v1897 = vpack.c.b16 %v1201, %v1193
    %v1898 = vpack.c.b16 %v1202, %v1194
    %v1899 = vpack.c.b16 %v1203, %v1195
    %v1900 = vpack.c.b16 %v1204, %v1196
    %v1901 = vpack.c.b16 %v1205, %v1197
    %v1902 = vpack.c.b16 %v1214, %v1206
    %v1903 = vpack.c.b16 %v1215, %v1207
    %v1904 = vpack.c.b16 %v1216, %v1208
    %v1905 = vpack.c.b16 %v1217, %v1209
    %v1906 = vpack.c.b16 %v1218, %v1210
    %v1907 = vpack.c.b16 %v1219, %v1211
    %v1908 = vpack.c.b16 %v1220, %v1212
    %v1909 = vpack.c.b16 %v1221, %v1213
    %v1910 = vpack.c.b16 %v1230, %v1222
    %v1911 = vpack.c.b16 %v1231, %v1223
    %v1912 = vpack.c.b16 %v1232, %v1224
    %v1913 = vpack.c.b16 %v1233, %v1225
    %v1914 = vpack.c.b16 %v1234, %v1226
    %v1915 = vpack.c.b16 %v1235, %v1227
    %v1916 = vpack.c.b16 %v1236, %v1228
    %v1917 = vpack.c.b16 %v1237, %v1229
    %v1918 = vpack.c.b16 %v1246, %v1238
    %v1919 = vpack.c.b16 %v1247, %v1239
    %v1920 = vpack.c.b16 %v1248, %v1240
    %v1921 = vpack.c.b16 %v1249, %v1241
    %v1922 = vpack.c.b16 %v1250, %v1242
    %v1923 = vpack.c.b16 %v1251, %v1243
    %v1924 = vpack.c.b16 %v1252, %v1244
    %v1925 = vpack.c.b16 %v1253, %v1245
    %v1926 = vpack.c.b16 %v1262, %v1254
    %v1927 = vpack.c.b16 %v1263, %v1255
    %v1928 = vpack.c.b16 %v1264, %v1256
    %v1929 = vpack.c.b16 %v1265, %v1257
    %v1930 = vpack.c.b16 %v1266, %v1258
    %v1931 = vpack.c.b16 %v1267, %v1259
    %v1932 = vpack.c.b16 %v1268, %v1260
    %v1933 = vpack.c.b16 %v1269, %v1261
    %v1934 = vpack.c.b16 %v1278, %v1270
    %v1935 = vpack.c.b16 %v1279, %v1271
    %v1936 = vpack.c.b16 %v1280, %v1272
    %v1937 = vpack.c.b16 %v1281, %v1273
    %v1938 = vpack.c.b16 %v1282, %v1274
    %v1939 = vpack.c.b16 %v1283, %v1275
    %v1940 = vpack.c.b16 %v1284, %v1276
    %v1941 = vpack.c.b16 %v1285, %v1277
    %v1942 = vpack.c.b16 %v1294, %v1286
    %v1943 = vpack.c.b16 %v1295, %v1287
    %v1944 = vpack.c.b16 %v1296, %v1288
    %v1945 = vpack.c.b16 %v1297, %v1289
    %v1946 = vpack.c.b16 %v1298, %v1290
    %v1947 = vpack.c.b16 %v1299, %v1291
    %v1948 = vpack.c.b16 %v1300, %v1292
    %v1949 = vpack.c.b16 %v1301, %v1293
    %v1950 = vpack.c.b16 %v1310, %v1302
    %v1951 = vpack.c.b16 %v1311, %v1303
    %v1952 = vpack.c.b16 %v1312, %v1304
    %v1953 = vpack.c.b16 %v1313, %v1305
    %v1954 = vpack.c.b16 %v1314, %v1306
    %v1955 = vpack.c.b16 %v1315, %v1307
    %v1956 = vpack.c.b16 %v1316, %v1308
    %v1957 = vpack.c.b16 %v1317, %v1309
    %v1958 = vpack.c.b16 %v1326, %v1318
    %v1959 = vpack.c.b16 %v1327, %v1319
    %v1960 = vpack.c.b16 %v1328, %v1320
    %v1961 = vpack.c.b16 %v1329, %v1321
    %v1962 = vpack.c.b16 %v1330, %v1322
    %v1963 = vpack.c.b16 %v1331, %v1323
    %v1964 = vpack.c.b16 %v1332, %v1324
    %v1965 = vpack.c.b16 %v1333, %v1325
    %v1966 = vpack.c.b16 %v1342, %v1334
    %v1967 = vpack.c.b16 %v1343, %v1335
    %v1968 = vpack.c.b16 %v1344, %v1336
    %v1969 = vpack.c.b16 %v1345, %v1337
    %v1970 = vpack.c.b16 %v1346, %v1338
    %v1971 = vpack.c.b16 %v1347, %v1339
    %v1972 = vpack.c.b16 %v1348, %v1340
    %v1973 = vpack.c.b16 %v1349, %v1341
    %v1974 = vpack.c.b16 %v1358, %v1350
    %v1975 = vpack.c.b16 %v1359, %v1351
    %v1976 = vpack.c.b16 %v1360, %v1352
    %v1977 = vpack.c.b16 %v1361, %v1353
    %v1978 = vpack.c.b16 %v1362, %v1354
    %v1979 = vpack.c.b16 %v1363, %v1355
    %v1980 = vpack.c.b16 %v1364, %v1356
    %v1981 = vpack.c.b16 %v1365, %v1357
    %v1982 = vpack.c.b16 %v1374, %v1366
    %v1983 = vpack.c.b16 %v1375, %v1367
    %v1984 = vpack.c.b16 %v1376, %v1368
    %v1985 = vpack.c.b16 %v1377, %v1369
    %v1986 = vpack.c.b16 %v1378, %v1370
    %v1987 = vpack.c.b16 %v1379, %v1371
    %v1988 = vpack.c.b16 %v1380, %v1372
    %v1989 = vpack.c.b16 %v1381, %v1373
    %v1990 = vpack.c.b16 %v1390, %v1382
    %v1991 = vpack.c.b16 %v1391, %v1383
    %v1992 = vpack.c.b16 %v1392, %v1384
    %v1993 = vpack.c.b16 %v1393, %v1385
    %v1994 = vpack.c.b16 %v1394, %v1386
    %v1995 = vpack.c.b16 %v1395, %v1387
    %v1996 = vpack.c.b16 %v1396, %v1388
    %v1997 = vpack.c.b16 %v1397, %v1389
    %v1998 = vpack.c.b16 %v1406, %v1398
    %v1999 = vpack.c.b16 %v1407, %v1399
    %v2000 = vpack.c.b16 %v1408, %v1400
    %v2001 = vpack.c.b16 %v1409, %v1401
    %v2002 = vpack.c.b16 %v1410, %v1402
    %v2003 = vpack.c.b16 %v1411, %v1403
    %v2004 = vpack.c.b16 %v1412, %v1404
    %v2005 = vpack.c.b16 %v1413, %v1405
    %v2006 = vpack.c.b16 %v1422, %v1414
    %v2007 = vpack.c.b16 %v1423, %v1415
    %v2008 = vpack.c.b16 %v1424, %v1416
    %v2009 = vpack.c.b16 %v1425, %v1417
    %v2010 = vpack.c.b16 %v1426, %v1418
    %v2011 = vpack.c.b16 %v1427, %v1419
    %v2012 = vpack.c.b16 %v1428, %v1420
    %v2013 = vpack.c.b16 %v1429, %v1421
    %v2014 = vpack.c.b16 %v1438, %v1430
    %v2015 = vpack.c.b16 %v1439, %v1431
    %v2016 = vpack.c.b16 %v1440, %v1432
    %v2017 = vpack.c.b16 %v1441, %v1433
    %v2018 = vpack.c.b16 %v1442, %v1434
    %v2019 = vpack.c.b16 %v1443, %v1435
    %v2020 = vpack.c.b16 %v1444, %v1436
    %v2021 = vpack.c.b16 %v1445, %v1437
    %v2022 = vpack.c.b16 %v1454, %v1446
    %v2023 = vpack.c.b16 %v1455, %v1447
    %v2024 = vpack.c.b16 %v1456, %v1448
    %v2025 = vpack.c.b16 %v1457, %v1449
    %v2026 = vpack.c.b16 %v1458, %v1450
    %v2027 = vpack.c.b16 %v1459, %v1451
    %v2028 = vpack.c.b16 %v1460, %v1452
    %v2029 = vpack.c.b16 %v1461, %v1453
    %v2030 = vpack.c.b16 %v1470, %v1462
    %v2031 = vpack.c.b16 %v1471, %v1463
    %v2032 = vpack.c.b16 %v1472, %v1464
    %v2033 = vpack.c.b16 %v1473, %v1465
    %v2034 = vpack.c.b16 %v1474, %v1466
    %v2035 = vpack.c.b16 %v1475, %v1467
    %v2036 = vpack.c.b16 %v1476, %v1468
    %v2037 = vpack.c.b16 %v1477, %v1469
    %v2038 = vpack.c.b16 %v1486, %v1478
    %v2039 = vpack.c.b16 %v1487, %v1479
    %v2040 = vpack.c.b16 %v1488, %v1480
    %v2041 = vpack.c.b16 %v1489, %v1481
    %v2042 = vpack.c.b16 %v1490, %v1482
    %v2043 = vpack.c.b16 %v1491, %v1483
    %v2044 = vpack.c.b16 %v1492, %v1484
    %v2045 = vpack.c.b16 %v1493, %v1485
    %v2046 = vpack.c.b16 %v1502, %v1494
    %v2047 = vpack.c.b16 %v1503, %v1495
    %v2048 = vpack.c.b16 %v1504, %v1496
    %v2049 = vpack.c.b16 %v1505, %v1497
    %v2050 = vpack.c.b16 %v1506, %v1498
    %v2051 = vpack.c.b16 %v1507, %v1499
    %v2052 = vpack.c.b16 %v1508, %v1500
    %v2053 = vpack.c.b16 %v1509, %v1501
    %v2054 = vpack.c.b16 %v1518, %v1510
    %v2055 = vpack.c.b16 %v1519, %v1511
    %v2056 = vpack.c.b16 %v1520, %v1512
    %v2057 = vpack.c.b16 %v1521, %v1513
    %v2058 = vpack.c.b16 %v1522, %v1514
    %v2059 = vpack.c.b16 %v1523, %v1515
    %v2060 = vpack.c.b16 %v1524, %v1516
    %v2061 = vpack.c.b16 %v1525, %v1517
    %v2062 = vpack.c.b16 %v1534, %v1526
    %v2063 = vpack.c.b16 %v1535, %v1527
    %v2064 = vpack.c.b16 %v1536, %v1528
    %v2065 = vpack.c.b16 %v1537, %v1529
    %v2066 = vpack.c.b16 %v1538, %v1530
    %v2067 = vpack.c.b16 %v1539, %v1531
    %v2068 = vpack.c.b16 %v1540, %v1532
    %v2069 = vpack.c.b16 %v1541, %v1533
    %v2070 = vpack.c.b16 %v1550, %v1542
    %v2071 = vpack.c.b16 %v1551, %v1543
    %v2072 = vpack.c.b16 %v1552, %v1544
    %v2073 = vpack.c.b16 %v1553, %v1545
    %v2074 = vpack.c.b16 %v1554, %v1546
    %v2075 = vpack.c.b16 %v1555, %v1547
    %v2076 = vpack.c.b16 %v1556, %v1548
    %v2077 = vpack.c.b16 %v1557, %v1549
    %v2078 = vpack.c.b16 %v1566, %v1558
    %v2079 = vpack.c.b16 %v1567, %v1559
    %v2080 = vpack.c.b16 %v1568, %v1560
    %v2081 = vpack.c.b16 %v1569, %v1561
    %v2082 = vpack.c.b16 %v1570, %v1562
    %v2083 = vpack.c.b16 %v1571, %v1563
    %v2084 = vpack.c.b16 %v1572, %v1564
    %v2085 = vpack.c.b16 %v1573, %v1565
    %v2086 = vpack.c.b16 %v1582, %v1574
    %v2087 = vpack.c.b16 %v1583, %v1575
    %v2088 = vpack.c.b16 %v1584, %v1576
    %v2089 = vpack.c.b16 %v1585, %v1577
    %v2090 = vpack.c.b16 %v1586, %v1578
    %v2091 = vpack.c.b16 %v1587, %v1579
    %v2092 = vpack.c.b16 %v1588, %v1580
    %v2093 = vpack.c.b16 %v1589, %v1581
    %v2094 = vpack.c.b16 %v1598, %v1590
    %v2095 = vpack.c.b16 %v1599, %v1591
    %v2096 = vpack.c.b16 %v1600, %v1592
    %v2097 = vpack.c.b16 %v1601, %v1593
    %v2098 = vpack.c.b16 %v1602, %v1594
    %v2099 = vpack.c.b16 %v1603, %v1595
    %v2100 = vpack.c.b16 %v1604, %v1596
    %v2101 = vpack.c.b16 %v1605, %v1597
    %v2102 = vpack.c.b16 %v1614, %v1606
    %v2103 = vpack.c.b16 %v1615, %v1607
    %v2104 = vpack.c.b16 %v1616, %v1608
    %v2105 = vpack.c.b16 %v1617, %v1609
    %v2106 = vpack.c.b16 %v1618, %v1610
    %v2107 = vpack.c.b16 %v1619, %v1611
    %v2108 = vpack.c.b16 %v1620, %v1612
    %v2109 = vpack.c.b16 %v1621, %v1613
    %v2110 = vpack.c.b16 %v1630, %v1622
    %v2111 = vpack.c.b16 %v1631, %v1623
    %v2112 = vpack.c.b16 %v1632, %v1624
    %v2113 = vpack.c.b16 %v1633, %v1625
    %v2114 = vpack.c.b16 %v1634, %v1626
    %v2115 = vpack.c.b16 %v1635, %v1627
    %v2116 = vpack.c.b16 %v1636, %v1628
    %v2117 = vpack.c.b16 %v1637, %v1629
    %v2118 = vpack.c.b16 %v1646, %v1638
    %v2119 = vpack.c.b16 %v1647, %v1639
    %v2120 = vpack.c.b16 %v1648, %v1640
    %v2121 = vpack.c.b16 %v1649, %v1641
    %v2122 = vpack.c.b16 %v1650, %v1642
    %v2123 = vpack.c.b16 %v1651, %v1643
    %v2124 = vpack.c.b16 %v1652, %v1644
    %v2125 = vpack.c.b16 %v1653, %v1645
    %v2126 = vpack.c.b16 %v1662, %v1654
    %v2127 = vpack.c.b16 %v1663, %v1655
    %v2128 = vpack.c.b16 %v1664, %v1656
    %v2129 = vpack.c.b16 %v1665, %v1657
    %v2130 = vpack.c.b16 %v1666, %v1658
    %v2131 = vpack.c.b16 %v1667, %v1659
    %v2132 = vpack.c.b16 %v1668, %v1660
    %v2133 = vpack.c.b16 %v1669, %v1661
    %v2134 = vpack.c.b16 %v1678, %v1670
    %v2135 = vpack.c.b16 %v1679, %v1671
    %v2136 = vpack.c.b16 %v1680, %v1672
    %v2137 = vpack.c.b16 %v1681, %v1673
    %v2138 = vpack.c.b16 %v1682, %v1674
    %v2139 = vpack.c.b16 %v1683, %v1675
    %v2140 = vpack.c.b16 %v1684, %v1676
    %v2141 = vpack.c.b16 %v1685, %v1677
    %v2142 = vpack.c.b16 %v1694, %v1686
    %v2143 = vpack.c.b16 %v1695, %v1687
    %v2144 = vpack.c.b16 %v1696, %v1688
    %v2145 = vpack.c.b16 %v1697, %v1689
    %v2146 = vpack.c.b16 %v1698, %v1690
    %v2147 = vpack.c.b16 %v1699, %v1691
    %v2148 = vpack.c.b16 %v1700, %v1692
    %v2149 = vpack.c.b16 %v1701, %v1693
    %v2150 = vpack.c.b16 %v1710, %v1702
    %v2151 = vpack.c.b16 %v1711, %v1703
    %v2152 = vpack.c.b16 %v1712, %v1704
    %v2153 = vpack.c.b16 %v1713, %v1705
    %v2154 = vpack.c.b16 %v1714, %v1706
    %v2155 = vpack.c.b16 %v1715, %v1707
    %v2156 = vpack.c.b16 %v1716, %v1708
    %v2157 = vpack.c.b16 %v1717, %v1709
    %v2158 = vpack.c.b16 %v1726, %v1718
    %v2159 = vpack.c.b16 %v1727, %v1719
    %v2160 = vpack.c.b16 %v1728, %v1720
    %v2161 = vpack.c.b16 %v1729, %v1721
    %v2162 = vpack.c.b16 %v1730, %v1722
    %v2163 = vpack.c.b16 %v1731, %v1723
    %v2164 = vpack.c.b16 %v1732, %v1724
    %v2165 = vpack.c.b16 %v1733, %v1725
    %v2166 = vpack.c.b16 %v1742, %v1734
    %v2167 = vpack.c.b16 %v1743, %v1735
    %v2168 = vpack.c.b16 %v1744, %v1736
    %v2169 = vpack.c.b16 %v1745, %v1737
    %v2170 = vpack.c.b16 %v1746, %v1738
    %v2171 = vpack.c.b16 %v1747, %v1739
    %v2172 = vpack.c.b16 %v1748, %v1740
    %v2173 = vpack.c.b16 %v1749, %v1741
    %v2174 = vpack.c.b16 %v1758, %v1750
    %v2175 = vpack.c.b16 %v1759, %v1751
    %v2176 = vpack.c.b16 %v1760, %v1752
    %v2177 = vpack.c.b16 %v1761, %v1753
    %v2178 = vpack.c.b16 %v1762, %v1754
    %v2179 = vpack.c.b16 %v1763, %v1755
    %v2180 = vpack.c.b16 %v1764, %v1756
    %v2181 = vpack.c.b16 %v1765, %v1757
    %v2182 = vpack.c.b16 %v1774, %v1766
    %v2183 = vpack.c.b16 %v1775, %v1767
    %v2184 = vpack.c.b16 %v1776, %v1768
    %v2185 = vpack.c.b16 %v1777, %v1769
    %v2186 = vpack.c.b16 %v1778, %v1770
    %v2187 = vpack.c.b16 %v1779, %v1771
    %v2188 = vpack.c.b16 %v1780, %v1772
    %v2189 = vpack.c.b16 %v1781, %v1773
    %v2190 = vpack.c.b16 %v1790, %v1782
    %v2191 = vpack.c.b16 %v1791, %v1783
    %v2192 = vpack.c.b16 %v1792, %v1784
    %v2193 = vpack.c.b16 %v1793, %v1785
    %v2194 = vpack.c.b16 %v1794, %v1786
    %v2195 = vpack.c.b16 %v1795, %v1787
    %v2196 = vpack.c.b16 %v1796, %v1788
    %v2197 = vpack.c.b16 %v1797, %v1789
    %v2198 = vpack.c.b16 %v1806, %v1798
    %v2199 = vpack.c.b16 %v1807, %v1799
    %v2200 = vpack.c.b16 %v1808, %v1800
    %v2201 = vpack.c.b16 %v1809, %v1801
    %v2202 = vpack.c.b16 %v1810, %v1802
    %v2203 = vpack.c.b16 %v1811, %v1803
    %v2204 = vpack.c.b16 %v1812, %v1804
    %v2205 = vpack.c.b16 %v1813, %v1805
    %vm2598 = vcmask 130048
    %v2600 = vsel %vm2598, %v227, 0
    %2602 = vmatpush.bf16.msra.mxu0 %v1870
    %2603 = vmatpush.bf16.msra.mxu0 %v1862
    %2604 = vmatpush.bf16.msra.mxu0 %v1854
    %2605 = vmatpush.bf16.msra.mxu0 %v1846
    %2606 = vmatpush.bf16.msra.mxu0 %v1838
    %2607 = vmatpush.bf16.msra.mxu0 %v1830
    %2608 = vmatpush.bf16.msra.mxu0 %v1822
    %2609 = vmatpush.bf16.msra.mxu0 %v1814
    %2610 = vmatmul.bf16.gmra.mxu0 %v221
    %v2611 = vpop.f32.mrf.mxu0
    %v2612 = vadd.f32 %v622, %v2611
    %v2613 = vpop.f32.mrf.mxu0
    %2614 = vdwg.mxu0
    %2615 = vmatpush.bf16.msra.mxu0 %v1934
    %2616 = vmatpush.bf16.msra.mxu0 %v1926
    %2617 = vmatpush.bf16.msra.mxu0 %v1918
    %2618 = vmatpush.bf16.msra.mxu0 %v1910
    %2619 = vmatpush.bf16.msra.mxu0 %v1902
    %2620 = vmatpush.bf16.msra.mxu0 %v1894
    %2621 = vmatpush.bf16.msra.mxu0 %v1886
    %2622 = vmatpush.bf16.msra.mxu0 %v1878
    %2623 = vmatmul.bf16.gmra.mxu0 %v222
    %v2624 = vpop.f32.mrf.mxu0
    %v2625 = vadd.f32 %v2612, %v2624
    %v2626 = vpop.f32.mrf.mxu0
    %2627 = vdwg.mxu0
    %2628 = vmatpush.bf16.msra.mxu0 %v1998
    %2629 = vmatpush.bf16.msra.mxu0 %v1990
    %2630 = vmatpush.bf16.msra.mxu0 %v1982
    %2631 = vmatpush.bf16.msra.mxu0 %v1974
    %2632 = vmatpush.bf16.msra.mxu0 %v1966
    %2633 = vmatpush.bf16.msra.mxu0 %v1958
    %2634 = vmatpush.bf16.msra.mxu0 %v1950
    %2635 = vmatpush.bf16.msra.mxu0 %v1942
    %2636 = vmatmul.bf16.gmra.mxu0 %v223
    %v2637 = vpop.f32.mrf.mxu0
    %v2638 = vadd.f32 %v2625, %v2637
    %v2639 = vpop.f32.mrf.mxu0
    %2640 = vdwg.mxu0
    %2641 = vmatpush.bf16.msra.mxu0 %v2062
    %2642 = vmatpush.bf16.msra.mxu0 %v2054
    %2643 = vmatpush.bf16.msra.mxu0 %v2046
    %2644 = vmatpush.bf16.msra.mxu0 %v2038
    %2645 = vmatpush.bf16.msra.mxu0 %v2030
    %2646 = vmatpush.bf16.msra.mxu0 %v2022
    %2647 = vmatpush.bf16.msra.mxu0 %v2014
    %2648 = vmatpush.bf16.msra.mxu0 %v2006
    %2649 = vmatmul.bf16.gmra.mxu0 %v224
    %v2650 = vpop.f32.mrf.mxu0
    %v2651 = vadd.f32 %v2638, %v2650
    %v2652 = vpop.f32.mrf.mxu0
    %2653 = vdwg.mxu0
    %2654 = vmatpush.bf16.msra.mxu0 %v2126
    %2655 = vmatpush.bf16.msra.mxu0 %v2118
    %2656 = vmatpush.bf16.msra.mxu0 %v2110
    %2657 = vmatpush.bf16.msra.mxu0 %v2102
    %2658 = vmatpush.bf16.msra.mxu0 %v2094
    %2659 = vmatpush.bf16.msra.mxu0 %v2086
    %2660 = vmatpush.bf16.msra.mxu0 %v2078
    %2661 = vmatpush.bf16.msra.mxu0 %v2070
    %2662 = vmatmul.bf16.gmra.mxu0 %v225
    %v2663 = vpop.f32.mrf.mxu0
    %v2664 = vadd.f32 %v2651, %v2663
    %v2665 = vpop.f32.mrf.mxu0
    %2666 = vdwg.mxu0
    %2667 = vmatpush.bf16.msra.mxu0 %v2190
    %2668 = vmatpush.bf16.msra.mxu0 %v2182
    %2669 = vmatpush.bf16.msra.mxu0 %v2174
    %2670 = vmatpush.bf16.msra.mxu0 %v2166
    %2671 = vmatpush.bf16.msra.mxu0 %v2158
    %2672 = vmatpush.bf16.msra.mxu0 %v2150
    %2673 = vmatpush.bf16.msra.mxu0 %v2142
    %2674 = vmatpush.bf16.msra.mxu0 %v2134
    %2675 = vmatmul.bf16.gmra.mxu0 %v226
    %v2676 = vpop.f32.mrf.mxu0
    %v2677 = vadd.f32 %v2664, %v2676
    %v2678 = vpop.f32.mrf.mxu0
    %2679 = vdwg.mxu0
    %2680 = vmatpush.bf16.msra.mxu0 0
    %2681 = vmatpush.bf16.msra.mxu0 0
    %2682 = vmatpush.bf16.msra.mxu0 0
    %2683 = vmatpush.bf16.msra.mxu0 0
    %2684 = vmatpush.bf16.msra.mxu0 0
    %2685 = vmatpush.bf16.msra.mxu0 0
    %2686 = vmatpush.bf16.msra.mxu0 0
    %2687 = vmatpush.bf16.msra.mxu0 %v2198
    %2688 = vmatmul.bf16.gmra.mxu0 %v2600
    %v2689 = vpop.f32.mrf.mxu0
    %v2690 = vadd.f32 %v2677, %v2689
    %v2691 = vpop.f32.mrf.mxu0
    %2692 = vdwg.mxu0
    %2693 = vmatpush.bf16.msra.mxu0 %v1871
    %2694 = vmatpush.bf16.msra.mxu0 %v1863
    %2695 = vmatpush.bf16.msra.mxu0 %v1855
    %2696 = vmatpush.bf16.msra.mxu0 %v1847
    %2697 = vmatpush.bf16.msra.mxu0 %v1839
    %2698 = vmatpush.bf16.msra.mxu0 %v1831
    %2699 = vmatpush.bf16.msra.mxu0 %v1823
    %2700 = vmatpush.bf16.msra.mxu0 %v1815
    %2701 = vmatmul.bf16.gmra.mxu0 %v221
    %v2702 = vpop.f32.mrf.mxu0
    %v2703 = vadd.f32 %v623, %v2702
    %v2704 = vpop.f32.mrf.mxu0
    %2705 = vdwg.mxu0
    %2706 = vmatpush.bf16.msra.mxu0 %v1935
    %2707 = vmatpush.bf16.msra.mxu0 %v1927
    %2708 = vmatpush.bf16.msra.mxu0 %v1919
    %2709 = vmatpush.bf16.msra.mxu0 %v1911
    %2710 = vmatpush.bf16.msra.mxu0 %v1903
    %2711 = vmatpush.bf16.msra.mxu0 %v1895
    %2712 = vmatpush.bf16.msra.mxu0 %v1887
    %2713 = vmatpush.bf16.msra.mxu0 %v1879
    %2714 = vmatmul.bf16.gmra.mxu0 %v222
    %v2715 = vpop.f32.mrf.mxu0
    %v2716 = vadd.f32 %v2703, %v2715
    %v2717 = vpop.f32.mrf.mxu0
    %2718 = vdwg.mxu0
    %2719 = vmatpush.bf16.msra.mxu0 %v1999
    %2720 = vmatpush.bf16.msra.mxu0 %v1991
    %2721 = vmatpush.bf16.msra.mxu0 %v1983
    %2722 = vmatpush.bf16.msra.mxu0 %v1975
    %2723 = vmatpush.bf16.msra.mxu0 %v1967
    %2724 = vmatpush.bf16.msra.mxu0 %v1959
    %2725 = vmatpush.bf16.msra.mxu0 %v1951
    %2726 = vmatpush.bf16.msra.mxu0 %v1943
    %2727 = vmatmul.bf16.gmra.mxu0 %v223
    %v2728 = vpop.f32.mrf.mxu0
    %v2729 = vadd.f32 %v2716, %v2728
    %v2730 = vpop.f32.mrf.mxu0
    %2731 = vdwg.mxu0
    %2732 = vmatpush.bf16.msra.mxu0 %v2063
    %2733 = vmatpush.bf16.msra.mxu0 %v2055
    %2734 = vmatpush.bf16.msra.mxu0 %v2047
    %2735 = vmatpush.bf16.msra.mxu0 %v2039
    %2736 = vmatpush.bf16.msra.mxu0 %v2031
    %2737 = vmatpush.bf16.msra.mxu0 %v2023
    %2738 = vmatpush.bf16.msra.mxu0 %v2015
    %2739 = vmatpush.bf16.msra.mxu0 %v2007
    %2740 = vmatmul.bf16.gmra.mxu0 %v224
    %v2741 = vpop.f32.mrf.mxu0
    %v2742 = vadd.f32 %v2729, %v2741
    %v2743 = vpop.f32.mrf.mxu0
    %2744 = vdwg.mxu0
    %2745 = vmatpush.bf16.msra.mxu0 %v2127
    %2746 = vmatpush.bf16.msra.mxu0 %v2119
    %2747 = vmatpush.bf16.msra.mxu0 %v2111
    %2748 = vmatpush.bf16.msra.mxu0 %v2103
    %2749 = vmatpush.bf16.msra.mxu0 %v2095
    %2750 = vmatpush.bf16.msra.mxu0 %v2087
    %2751 = vmatpush.bf16.msra.mxu0 %v2079
    %2752 = vmatpush.bf16.msra.mxu0 %v2071
    %2753 = vmatmul.bf16.gmra.mxu0 %v225
    %v2754 = vpop.f32.mrf.mxu0
    %v2755 = vadd.f32 %v2742, %v2754
    %v2756 = vpop.f32.mrf.mxu0
    %2757 = vdwg.mxu0
    %2758 = vmatpush.bf16.msra.mxu0 %v2191
    %2759 = vmatpush.bf16.msra.mxu0 %v2183
    %2760 = vmatpush.bf16.msra.mxu0 %v2175
    %2761 = vmatpush.bf16.msra.mxu0 %v2167
    %2762 = vmatpush.bf16.msra.mxu0 %v2159
    %2763 = vmatpush.bf16.msra.mxu0 %v2151
    %2764 = vmatpush.bf16.msra.mxu0 %v2143
    %2765 = vmatpush.bf16.msra.mxu0 %v2135
    %2766 = vmatmul.bf16.gmra.mxu0 %v226
    %v2767 = vpop.f32.mrf.mxu0
    %v2768 = vadd.f32 %v2755, %v2767
    %v2769 = vpop.f32.mrf.mxu0
    %2770 = vdwg.mxu0
    %2771 = vmatpush.bf16.msra.mxu0 0
    %2772 = vmatpush.bf16.msra.mxu0 0
    %2773 = vmatpush.bf16.msra.mxu0 0
    %2774 = vmatpush.bf16.msra.mxu0 0
    %2775 = vmatpush.bf16.msra.mxu0 0
    %2776 = vmatpush.bf16.msra.mxu0 0
    %2777 = vmatpush.bf16.msra.mxu0 0
    %2778 = vmatpush.bf16.msra.mxu0 %v2199
    %2779 = vmatmul.bf16.gmra.mxu0 %v2600
    %v2780 = vpop.f32.mrf.mxu0
    %v2781 = vadd.f32 %v2768, %v2780
    %v2782 = vpop.f32.mrf.mxu0
    %2783 = vdwg.mxu0
    %2784 = vmatpush.bf16.msra.mxu0 %v1872
    %2785 = vmatpush.bf16.msra.mxu0 %v1864
    %2786 = vmatpush.bf16.msra.mxu0 %v1856
    %2787 = vmatpush.bf16.msra.mxu0 %v1848
    %2788 = vmatpush.bf16.msra.mxu0 %v1840
    %2789 = vmatpush.bf16.msra.mxu0 %v1832
    %2790 = vmatpush.bf16.msra.mxu0 %v1824
    %2791 = vmatpush.bf16.msra.mxu0 %v1816
    %2792 = vmatmul.bf16.gmra.mxu0 %v221
    %v2793 = vpop.f32.mrf.mxu0
    %v2794 = vadd.f32 %v624, %v2793
    %v2795 = vpop.f32.mrf.mxu0
    %2796 = vdwg.mxu0
    %2797 = vmatpush.bf16.msra.mxu0 %v1936
    %2798 = vmatpush.bf16.msra.mxu0 %v1928
    %2799 = vmatpush.bf16.msra.mxu0 %v1920
    %2800 = vmatpush.bf16.msra.mxu0 %v1912
    %2801 = vmatpush.bf16.msra.mxu0 %v1904
    %2802 = vmatpush.bf16.msra.mxu0 %v1896
    %2803 = vmatpush.bf16.msra.mxu0 %v1888
    %2804 = vmatpush.bf16.msra.mxu0 %v1880
    %2805 = vmatmul.bf16.gmra.mxu0 %v222
    %v2806 = vpop.f32.mrf.mxu0
    %v2807 = vadd.f32 %v2794, %v2806
    %v2808 = vpop.f32.mrf.mxu0
    %2809 = vdwg.mxu0
    %2810 = vmatpush.bf16.msra.mxu0 %v2000
    %2811 = vmatpush.bf16.msra.mxu0 %v1992
    %2812 = vmatpush.bf16.msra.mxu0 %v1984
    %2813 = vmatpush.bf16.msra.mxu0 %v1976
    %2814 = vmatpush.bf16.msra.mxu0 %v1968
    %2815 = vmatpush.bf16.msra.mxu0 %v1960
    %2816 = vmatpush.bf16.msra.mxu0 %v1952
    %2817 = vmatpush.bf16.msra.mxu0 %v1944
    %2818 = vmatmul.bf16.gmra.mxu0 %v223
    %v2819 = vpop.f32.mrf.mxu0
    %v2820 = vadd.f32 %v2807, %v2819
    %v2821 = vpop.f32.mrf.mxu0
    %2822 = vdwg.mxu0
    %2823 = vmatpush.bf16.msra.mxu0 %v2064
    %2824 = vmatpush.bf16.msra.mxu0 %v2056
    %2825 = vmatpush.bf16.msra.mxu0 %v2048
    %2826 = vmatpush.bf16.msra.mxu0 %v2040
    %2827 = vmatpush.bf16.msra.mxu0 %v2032
    %2828 = vmatpush.bf16.msra.mxu0 %v2024
    %2829 = vmatpush.bf16.msra.mxu0 %v2016
    %2830 = vmatpush.bf16.msra.mxu0 %v2008
    %2831 = vmatmul.bf16.gmra.mxu0 %v224
    %v2832 = vpop.f32.mrf.mxu0
    %v2833 = vadd.f32 %v2820, %v2832
    %v2834 = vpop.f32.mrf.mxu0
    %2835 = vdwg.mxu0
    %2836 = vmatpush.bf16.msra.mxu0 %v2128
    %2837 = vmatpush.bf16.msra.mxu0 %v2120
    %2838 = vmatpush.bf16.msra.mxu0 %v2112
    %2839 = vmatpush.bf16.msra.mxu0 %v2104
    %2840 = vmatpush.bf16.msra.mxu0 %v2096
    %2841 = vmatpush.bf16.msra.mxu0 %v2088
    %2842 = vmatpush.bf16.msra.mxu0 %v2080
    %2843 = vmatpush.bf16.msra.mxu0 %v2072
    %2844 = vmatmul.bf16.gmra.mxu0 %v225
    %v2845 = vpop.f32.mrf.mxu0
    %v2846 = vadd.f32 %v2833, %v2845
    %v2847 = vpop.f32.mrf.mxu0
    %2848 = vdwg.mxu0
    %2849 = vmatpush.bf16.msra.mxu0 %v2192
    %2850 = vmatpush.bf16.msra.mxu0 %v2184
    %2851 = vmatpush.bf16.msra.mxu0 %v2176
    %2852 = vmatpush.bf16.msra.mxu0 %v2168
    %2853 = vmatpush.bf16.msra.mxu0 %v2160
    %2854 = vmatpush.bf16.msra.mxu0 %v2152
    %2855 = vmatpush.bf16.msra.mxu0 %v2144
    %2856 = vmatpush.bf16.msra.mxu0 %v2136
    %2857 = vmatmul.bf16.gmra.mxu0 %v226
    %v2858 = vpop.f32.mrf.mxu0
    %v2859 = vadd.f32 %v2846, %v2858
    %v2860 = vpop.f32.mrf.mxu0
    %2861 = vdwg.mxu0
    %2862 = vmatpush.bf16.msra.mxu0 0
    %2863 = vmatpush.bf16.msra.mxu0 0
    %2864 = vmatpush.bf16.msra.mxu0 0
    %2865 = vmatpush.bf16.msra.mxu0 0
    %2866 = vmatpush.bf16.msra.mxu0 0
    %2867 = vmatpush.bf16.msra.mxu0 0
    %2868 = vmatpush.bf16.msra.mxu0 0
    %2869 = vmatpush.bf16.msra.mxu0 %v2200
    %2870 = vmatmul.bf16.gmra.mxu0 %v2600
    %v2871 = vpop.f32.mrf.mxu0
    %v2872 = vadd.f32 %v2859, %v2871
    %v2873 = vpop.f32.mrf.mxu0
    %2874 = vdwg.mxu0
    %2875 = vmatpush.bf16.msra.mxu0 %v1873
    %2876 = vmatpush.bf16.msra.mxu0 %v1865
    %2877 = vmatpush.bf16.msra.mxu0 %v1857
    %2878 = vmatpush.bf16.msra.mxu0 %v1849
    %2879 = vmatpush.bf16.msra.mxu0 %v1841
    %2880 = vmatpush.bf16.msra.mxu0 %v1833
    %2881 = vmatpush.bf16.msra.mxu0 %v1825
    %2882 = vmatpush.bf16.msra.mxu0 %v1817
    %2883 = vmatmul.bf16.gmra.mxu0 %v221
    %v2884 = vpop.f32.mrf.mxu0
    %v2885 = vadd.f32 %v625, %v2884
    %v2886 = vpop.f32.mrf.mxu0
    %2887 = vdwg.mxu0
    %2888 = vmatpush.bf16.msra.mxu0 %v1937
    %2889 = vmatpush.bf16.msra.mxu0 %v1929
    %2890 = vmatpush.bf16.msra.mxu0 %v1921
    %2891 = vmatpush.bf16.msra.mxu0 %v1913
    %2892 = vmatpush.bf16.msra.mxu0 %v1905
    %2893 = vmatpush.bf16.msra.mxu0 %v1897
    %2894 = vmatpush.bf16.msra.mxu0 %v1889
    %2895 = vmatpush.bf16.msra.mxu0 %v1881
    %2896 = vmatmul.bf16.gmra.mxu0 %v222
    %v2897 = vpop.f32.mrf.mxu0
    %v2898 = vadd.f32 %v2885, %v2897
    %v2899 = vpop.f32.mrf.mxu0
    %2900 = vdwg.mxu0
    %2901 = vmatpush.bf16.msra.mxu0 %v2001
    %2902 = vmatpush.bf16.msra.mxu0 %v1993
    %2903 = vmatpush.bf16.msra.mxu0 %v1985
    %2904 = vmatpush.bf16.msra.mxu0 %v1977
    %2905 = vmatpush.bf16.msra.mxu0 %v1969
    %2906 = vmatpush.bf16.msra.mxu0 %v1961
    %2907 = vmatpush.bf16.msra.mxu0 %v1953
    %2908 = vmatpush.bf16.msra.mxu0 %v1945
    %2909 = vmatmul.bf16.gmra.mxu0 %v223
    %v2910 = vpop.f32.mrf.mxu0
    %v2911 = vadd.f32 %v2898, %v2910
    %v2912 = vpop.f32.mrf.mxu0
    %2913 = vdwg.mxu0
    %2914 = vmatpush.bf16.msra.mxu0 %v2065
    %2915 = vmatpush.bf16.msra.mxu0 %v2057
    %2916 = vmatpush.bf16.msra.mxu0 %v2049
    %2917 = vmatpush.bf16.msra.mxu0 %v2041
    %2918 = vmatpush.bf16.msra.mxu0 %v2033
    %2919 = vmatpush.bf16.msra.mxu0 %v2025
    %2920 = vmatpush.bf16.msra.mxu0 %v2017
    %2921 = vmatpush.bf16.msra.mxu0 %v2009
    %2922 = vmatmul.bf16.gmra.mxu0 %v224
    %v2923 = vpop.f32.mrf.mxu0
    %v2924 = vadd.f32 %v2911, %v2923
    %v2925 = vpop.f32.mrf.mxu0
    %2926 = vdwg.mxu0
    %2927 = vmatpush.bf16.msra.mxu0 %v2129
    %2928 = vmatpush.bf16.msra.mxu0 %v2121
    %2929 = vmatpush.bf16.msra.mxu0 %v2113
    %2930 = vmatpush.bf16.msra.mxu0 %v2105
    %2931 = vmatpush.bf16.msra.mxu0 %v2097
    %2932 = vmatpush.bf16.msra.mxu0 %v2089
    %2933 = vmatpush.bf16.msra.mxu0 %v2081
    %2934 = vmatpush.bf16.msra.mxu0 %v2073
    %2935 = vmatmul.bf16.gmra.mxu0 %v225
    %v2936 = vpop.f32.mrf.mxu0
    %v2937 = vadd.f32 %v2924, %v2936
    %v2938 = vpop.f32.mrf.mxu0
    %2939 = vdwg.mxu0
    %2940 = vmatpush.bf16.msra.mxu0 %v2193
    %2941 = vmatpush.bf16.msra.mxu0 %v2185
    %2942 = vmatpush.bf16.msra.mxu0 %v2177
    %2943 = vmatpush.bf16.msra.mxu0 %v2169
    %2944 = vmatpush.bf16.msra.mxu0 %v2161
    %2945 = vmatpush.bf16.msra.mxu0 %v2153
    %2946 = vmatpush.bf16.msra.mxu0 %v2145
    %2947 = vmatpush.bf16.msra.mxu0 %v2137
    %2948 = vmatmul.bf16.gmra.mxu0 %v226
    %v2949 = vpop.f32.mrf.mxu0
    %v2950 = vadd.f32 %v2937, %v2949
    %v2951 = vpop.f32.mrf.mxu0
    %2952 = vdwg.mxu0
    %2953 = vmatpush.bf16.msra.mxu0 0
    %2954 = vmatpush.bf16.msra.mxu0 0
    %2955 = vmatpush.bf16.msra.mxu0 0
    %2956 = vmatpush.bf16.msra.mxu0 0
    %2957 = vmatpush.bf16.msra.mxu0 0
    %2958 = vmatpush.bf16.msra.mxu0 0
    %2959 = vmatpush.bf16.msra.mxu0 0
    %2960 = vmatpush.bf16.msra.mxu0 %v2201
    %2961 = vmatmul.bf16.gmra.mxu0 %v2600
    %v2962 = vpop.f32.mrf.mxu0
    %v2963 = vadd.f32 %v2950, %v2962
    %v2964 = vpop.f32.mrf.mxu0
    %2965 = vdwg.mxu0
    %2966 = vmatpush.bf16.msra.mxu0 %v1874
    %2967 = vmatpush.bf16.msra.mxu0 %v1866
    %2968 = vmatpush.bf16.msra.mxu0 %v1858
    %2969 = vmatpush.bf16.msra.mxu0 %v1850
    %2970 = vmatpush.bf16.msra.mxu0 %v1842
    %2971 = vmatpush.bf16.msra.mxu0 %v1834
    %2972 = vmatpush.bf16.msra.mxu0 %v1826
    %2973 = vmatpush.bf16.msra.mxu0 %v1818
    %2974 = vmatmul.bf16.gmra.mxu0 %v221
    %v2975 = vpop.f32.mrf.mxu0
    %v2976 = vadd.f32 %v626, %v2975
    %v2977 = vpop.f32.mrf.mxu0
    %2978 = vdwg.mxu0
    %2979 = vmatpush.bf16.msra.mxu0 %v1938
    %2980 = vmatpush.bf16.msra.mxu0 %v1930
    %2981 = vmatpush.bf16.msra.mxu0 %v1922
    %2982 = vmatpush.bf16.msra.mxu0 %v1914
    %2983 = vmatpush.bf16.msra.mxu0 %v1906
    %2984 = vmatpush.bf16.msra.mxu0 %v1898
    %2985 = vmatpush.bf16.msra.mxu0 %v1890
    %2986 = vmatpush.bf16.msra.mxu0 %v1882
    %2987 = vmatmul.bf16.gmra.mxu0 %v222
    %v2988 = vpop.f32.mrf.mxu0
    %v2989 = vadd.f32 %v2976, %v2988
    %v2990 = vpop.f32.mrf.mxu0
    %2991 = vdwg.mxu0
    %2992 = vmatpush.bf16.msra.mxu0 %v2002
    %2993 = vmatpush.bf16.msra.mxu0 %v1994
    %2994 = vmatpush.bf16.msra.mxu0 %v1986
    %2995 = vmatpush.bf16.msra.mxu0 %v1978
    %2996 = vmatpush.bf16.msra.mxu0 %v1970
    %2997 = vmatpush.bf16.msra.mxu0 %v1962
    %2998 = vmatpush.bf16.msra.mxu0 %v1954
    %2999 = vmatpush.bf16.msra.mxu0 %v1946
    %3000 = vmatmul.bf16.gmra.mxu0 %v223
    %v3001 = vpop.f32.mrf.mxu0
    %v3002 = vadd.f32 %v2989, %v3001
    %v3003 = vpop.f32.mrf.mxu0
    %3004 = vdwg.mxu0
    %3005 = vmatpush.bf16.msra.mxu0 %v2066
    %3006 = vmatpush.bf16.msra.mxu0 %v2058
    %3007 = vmatpush.bf16.msra.mxu0 %v2050
    %3008 = vmatpush.bf16.msra.mxu0 %v2042
    %3009 = vmatpush.bf16.msra.mxu0 %v2034
    %3010 = vmatpush.bf16.msra.mxu0 %v2026
    %3011 = vmatpush.bf16.msra.mxu0 %v2018
    %3012 = vmatpush.bf16.msra.mxu0 %v2010
    %3013 = vmatmul.bf16.gmra.mxu0 %v224
    %v3014 = vpop.f32.mrf.mxu0
    %v3015 = vadd.f32 %v3002, %v3014
    %v3016 = vpop.f32.mrf.mxu0
    %3017 = vdwg.mxu0
    %3018 = vmatpush.bf16.msra.mxu0 %v2130
    %3019 = vmatpush.bf16.msra.mxu0 %v2122
    %3020 = vmatpush.bf16.msra.mxu0 %v2114
    %3021 = vmatpush.bf16.msra.mxu0 %v2106
    %3022 = vmatpush.bf16.msra.mxu0 %v2098
    %3023 = vmatpush.bf16.msra.mxu0 %v2090
    %3024 = vmatpush.bf16.msra.mxu0 %v2082
    %3025 = vmatpush.bf16.msra.mxu0 %v2074
    %3026 = vmatmul.bf16.gmra.mxu0 %v225
    %v3027 = vpop.f32.mrf.mxu0
    %v3028 = vadd.f32 %v3015, %v3027
    %v3029 = vpop.f32.mrf.mxu0
    %3030 = vdwg.mxu0
    %3031 = vmatpush.bf16.msra.mxu0 %v2194
    %3032 = vmatpush.bf16.msra.mxu0 %v2186
    %3033 = vmatpush.bf16.msra.mxu0 %v2178
    %3034 = vmatpush.bf16.msra.mxu0 %v2170
    %3035 = vmatpush.bf16.msra.mxu0 %v2162
    %3036 = vmatpush.bf16.msra.mxu0 %v2154
    %3037 = vmatpush.bf16.msra.mxu0 %v2146
    %3038 = vmatpush.bf16.msra.mxu0 %v2138
    %3039 = vmatmul.bf16.gmra.mxu0 %v226
    %v3040 = vpop.f32.mrf.mxu0
    %v3041 = vadd.f32 %v3028, %v3040
    %v3042 = vpop.f32.mrf.mxu0
    %3043 = vdwg.mxu0
    %3044 = vmatpush.bf16.msra.mxu0 0
    %3045 = vmatpush.bf16.msra.mxu0 0
    %3046 = vmatpush.bf16.msra.mxu0 0
    %3047 = vmatpush.bf16.msra.mxu0 0
    %3048 = vmatpush.bf16.msra.mxu0 0
    %3049 = vmatpush.bf16.msra.mxu0 0
    %3050 = vmatpush.bf16.msra.mxu0 0
    %3051 = vmatpush.bf16.msra.mxu0 %v2202
    %3052 = vmatmul.bf16.gmra.mxu0 %v2600
    %v3053 = vpop.f32.mrf.mxu0
    %v3054 = vadd.f32 %v3041, %v3053
    %v3055 = vpop.f32.mrf.mxu0
    %3056 = vdwg.mxu0
    %3057 = vmatpush.bf16.msra.mxu0 %v1875
    %3058 = vmatpush.bf16.msra.mxu0 %v1867
    %3059 = vmatpush.bf16.msra.mxu0 %v1859
    %3060 = vmatpush.bf16.msra.mxu0 %v1851
    %3061 = vmatpush.bf16.msra.mxu0 %v1843
    %3062 = vmatpush.bf16.msra.mxu0 %v1835
    %3063 = vmatpush.bf16.msra.mxu0 %v1827
    %3064 = vmatpush.bf16.msra.mxu0 %v1819
    %3065 = vmatmul.bf16.gmra.mxu0 %v221
    %v3066 = vpop.f32.mrf.mxu0
    %v3067 = vadd.f32 %v627, %v3066
    %v3068 = vpop.f32.mrf.mxu0
    %3069 = vdwg.mxu0
    %3070 = vmatpush.bf16.msra.mxu0 %v1939
    %3071 = vmatpush.bf16.msra.mxu0 %v1931
    %3072 = vmatpush.bf16.msra.mxu0 %v1923
    %3073 = vmatpush.bf16.msra.mxu0 %v1915
    %3074 = vmatpush.bf16.msra.mxu0 %v1907
    %3075 = vmatpush.bf16.msra.mxu0 %v1899
    %3076 = vmatpush.bf16.msra.mxu0 %v1891
    %3077 = vmatpush.bf16.msra.mxu0 %v1883
    %3078 = vmatmul.bf16.gmra.mxu0 %v222
    %v3079 = vpop.f32.mrf.mxu0
    %v3080 = vadd.f32 %v3067, %v3079
    %v3081 = vpop.f32.mrf.mxu0
    %3082 = vdwg.mxu0
    %3083 = vmatpush.bf16.msra.mxu0 %v2003
    %3084 = vmatpush.bf16.msra.mxu0 %v1995
    %3085 = vmatpush.bf16.msra.mxu0 %v1987
    %3086 = vmatpush.bf16.msra.mxu0 %v1979
    %3087 = vmatpush.bf16.msra.mxu0 %v1971
    %3088 = vmatpush.bf16.msra.mxu0 %v1963
    %3089 = vmatpush.bf16.msra.mxu0 %v1955
    %3090 = vmatpush.bf16.msra.mxu0 %v1947
    %3091 = vmatmul.bf16.gmra.mxu0 %v223
    %v3092 = vpop.f32.mrf.mxu0
    %v3093 = vadd.f32 %v3080, %v3092
    %v3094 = vpop.f32.mrf.mxu0
    %3095 = vdwg.mxu0
    %3096 = vmatpush.bf16.msra.mxu0 %v2067
    %3097 = vmatpush.bf16.msra.mxu0 %v2059
    %3098 = vmatpush.bf16.msra.mxu0 %v2051
    %3099 = vmatpush.bf16.msra.mxu0 %v2043
    %3100 = vmatpush.bf16.msra.mxu0 %v2035
    %3101 = vmatpush.bf16.msra.mxu0 %v2027
    %3102 = vmatpush.bf16.msra.mxu0 %v2019
    %3103 = vmatpush.bf16.msra.mxu0 %v2011
    %3104 = vmatmul.bf16.gmra.mxu0 %v224
    %v3105 = vpop.f32.mrf.mxu0
    %v3106 = vadd.f32 %v3093, %v3105
    %v3107 = vpop.f32.mrf.mxu0
    %3108 = vdwg.mxu0
    %3109 = vmatpush.bf16.msra.mxu0 %v2131
    %3110 = vmatpush.bf16.msra.mxu0 %v2123
    %3111 = vmatpush.bf16.msra.mxu0 %v2115
    %3112 = vmatpush.bf16.msra.mxu0 %v2107
    %3113 = vmatpush.bf16.msra.mxu0 %v2099
    %3114 = vmatpush.bf16.msra.mxu0 %v2091
    %3115 = vmatpush.bf16.msra.mxu0 %v2083
    %3116 = vmatpush.bf16.msra.mxu0 %v2075
    %3117 = vmatmul.bf16.gmra.mxu0 %v225
    %v3118 = vpop.f32.mrf.mxu0
    %v3119 = vadd.f32 %v3106, %v3118
    %v3120 = vpop.f32.mrf.mxu0
    %3121 = vdwg.mxu0
    %3122 = vmatpush.bf16.msra.mxu0 %v2195
    %3123 = vmatpush.bf16.msra.mxu0 %v2187
    %3124 = vmatpush.bf16.msra.mxu0 %v2179
    %3125 = vmatpush.bf16.msra.mxu0 %v2171
    %3126 = vmatpush.bf16.msra.mxu0 %v2163
    %3127 = vmatpush.bf16.msra.mxu0 %v2155
    %3128 = vmatpush.bf16.msra.mxu0 %v2147
    %3129 = vmatpush.bf16.msra.mxu0 %v2139
    %3130 = vmatmul.bf16.gmra.mxu0 %v226
    %v3131 = vpop.f32.mrf.mxu0
    %v3132 = vadd.f32 %v3119, %v3131
    %v3133 = vpop.f32.mrf.mxu0
    %3134 = vdwg.mxu0
    %3135 = vmatpush.bf16.msra.mxu0 0
    %3136 = vmatpush.bf16.msra.mxu0 0
    %3137 = vmatpush.bf16.msra.mxu0 0
    %3138 = vmatpush.bf16.msra.mxu0 0
    %3139 = vmatpush.bf16.msra.mxu0 0
    %3140 = vmatpush.bf16.msra.mxu0 0
    %3141 = vmatpush.bf16.msra.mxu0 0
    %3142 = vmatpush.bf16.msra.mxu0 %v2203
    %3143 = vmatmul.bf16.gmra.mxu0 %v2600
    %v3144 = vpop.f32.mrf.mxu0
    %v3145 = vadd.f32 %v3132, %v3144
    %v3146 = vpop.f32.mrf.mxu0
    %3147 = vdwg.mxu0
    %3148 = vmatpush.bf16.msra.mxu0 %v1876
    %3149 = vmatpush.bf16.msra.mxu0 %v1868
    %3150 = vmatpush.bf16.msra.mxu0 %v1860
    %3151 = vmatpush.bf16.msra.mxu0 %v1852
    %3152 = vmatpush.bf16.msra.mxu0 %v1844
    %3153 = vmatpush.bf16.msra.mxu0 %v1836
    %3154 = vmatpush.bf16.msra.mxu0 %v1828
    %3155 = vmatpush.bf16.msra.mxu0 %v1820
    %3156 = vmatmul.bf16.gmra.mxu0 %v221
    %v3157 = vpop.f32.mrf.mxu0
    %v3158 = vadd.f32 %v628, %v3157
    %v3159 = vpop.f32.mrf.mxu0
    %3160 = vdwg.mxu0
    %3161 = vmatpush.bf16.msra.mxu0 %v1940
    %3162 = vmatpush.bf16.msra.mxu0 %v1932
    %3163 = vmatpush.bf16.msra.mxu0 %v1924
    %3164 = vmatpush.bf16.msra.mxu0 %v1916
    %3165 = vmatpush.bf16.msra.mxu0 %v1908
    %3166 = vmatpush.bf16.msra.mxu0 %v1900
    %3167 = vmatpush.bf16.msra.mxu0 %v1892
    %3168 = vmatpush.bf16.msra.mxu0 %v1884
    %3169 = vmatmul.bf16.gmra.mxu0 %v222
    %v3170 = vpop.f32.mrf.mxu0
    %v3171 = vadd.f32 %v3158, %v3170
    %v3172 = vpop.f32.mrf.mxu0
    %3173 = vdwg.mxu0
    %3174 = vmatpush.bf16.msra.mxu0 %v2004
    %3175 = vmatpush.bf16.msra.mxu0 %v1996
    %3176 = vmatpush.bf16.msra.mxu0 %v1988
    %3177 = vmatpush.bf16.msra.mxu0 %v1980
    %3178 = vmatpush.bf16.msra.mxu0 %v1972
    %3179 = vmatpush.bf16.msra.mxu0 %v1964
    %3180 = vmatpush.bf16.msra.mxu0 %v1956
    %3181 = vmatpush.bf16.msra.mxu0 %v1948
    %3182 = vmatmul.bf16.gmra.mxu0 %v223
    %v3183 = vpop.f32.mrf.mxu0
    %v3184 = vadd.f32 %v3171, %v3183
    %v3185 = vpop.f32.mrf.mxu0
    %3186 = vdwg.mxu0
    %3187 = vmatpush.bf16.msra.mxu0 %v2068
    %3188 = vmatpush.bf16.msra.mxu0 %v2060
    %3189 = vmatpush.bf16.msra.mxu0 %v2052
    %3190 = vmatpush.bf16.msra.mxu0 %v2044
    %3191 = vmatpush.bf16.msra.mxu0 %v2036
    %3192 = vmatpush.bf16.msra.mxu0 %v2028
    %3193 = vmatpush.bf16.msra.mxu0 %v2020
    %3194 = vmatpush.bf16.msra.mxu0 %v2012
    %3195 = vmatmul.bf16.gmra.mxu0 %v224
    %v3196 = vpop.f32.mrf.mxu0
    %v3197 = vadd.f32 %v3184, %v3196
    %v3198 = vpop.f32.mrf.mxu0
    %3199 = vdwg.mxu0
    %3200 = vmatpush.bf16.msra.mxu0 %v2132
    %3201 = vmatpush.bf16.msra.mxu0 %v2124
    %3202 = vmatpush.bf16.msra.mxu0 %v2116
    %3203 = vmatpush.bf16.msra.mxu0 %v2108
    %3204 = vmatpush.bf16.msra.mxu0 %v2100
    %3205 = vmatpush.bf16.msra.mxu0 %v2092
    %3206 = vmatpush.bf16.msra.mxu0 %v2084
    %3207 = vmatpush.bf16.msra.mxu0 %v2076
    %3208 = vmatmul.bf16.gmra.mxu0 %v225
    %v3209 = vpop.f32.mrf.mxu0
    %v3210 = vadd.f32 %v3197, %v3209
    %v3211 = vpop.f32.mrf.mxu0
    %3212 = vdwg.mxu0
    %3213 = vmatpush.bf16.msra.mxu0 %v2196
    %3214 = vmatpush.bf16.msra.mxu0 %v2188
    %3215 = vmatpush.bf16.msra.mxu0 %v2180
    %3216 = vmatpush.bf16.msra.mxu0 %v2172
    %3217 = vmatpush.bf16.msra.mxu0 %v2164
    %3218 = vmatpush.bf16.msra.mxu0 %v2156
    %3219 = vmatpush.bf16.msra.mxu0 %v2148
    %3220 = vmatpush.bf16.msra.mxu0 %v2140
    %3221 = vmatmul.bf16.gmra.mxu0 %v226
    %v3222 = vpop.f32.mrf.mxu0
    %v3223 = vadd.f32 %v3210, %v3222
    %v3224 = vpop.f32.mrf.mxu0
    %3225 = vdwg.mxu0
    %3226 = vmatpush.bf16.msra.mxu0 0
    %3227 = vmatpush.bf16.msra.mxu0 0
    %3228 = vmatpush.bf16.msra.mxu0 0
    %3229 = vmatpush.bf16.msra.mxu0 0
    %3230 = vmatpush.bf16.msra.mxu0 0
    %3231 = vmatpush.bf16.msra.mxu0 0
    %3232 = vmatpush.bf16.msra.mxu0 0
    %3233 = vmatpush.bf16.msra.mxu0 %v2204
    %3234 = vmatmul.bf16.gmra.mxu0 %v2600
    %v3235 = vpop.f32.mrf.mxu0
    %v3236 = vadd.f32 %v3223, %v3235
    %v3237 = vpop.f32.mrf.mxu0
    %3238 = vdwg.mxu0
    %3239 = vmatpush.bf16.msra.mxu0 %v1877
    %3240 = vmatpush.bf16.msra.mxu0 %v1869
    %3241 = vmatpush.bf16.msra.mxu0 %v1861
    %3242 = vmatpush.bf16.msra.mxu0 %v1853
    %3243 = vmatpush.bf16.msra.mxu0 %v1845
    %3244 = vmatpush.bf16.msra.mxu0 %v1837
    %3245 = vmatpush.bf16.msra.mxu0 %v1829
    %3246 = vmatpush.bf16.msra.mxu0 %v1821
    %3247 = vmatmul.bf16.gmra.mxu0 %v221
    %v3248 = vpop.f32.mrf.mxu0
    %v3249 = vadd.f32 %v629, %v3248
    %v3250 = vpop.f32.mrf.mxu0
    %3251 = vdwg.mxu0
    %3252 = vmatpush.bf16.msra.mxu0 %v1941
    %3253 = vmatpush.bf16.msra.mxu0 %v1933
    %3254 = vmatpush.bf16.msra.mxu0 %v1925
    %3255 = vmatpush.bf16.msra.mxu0 %v1917
    %3256 = vmatpush.bf16.msra.mxu0 %v1909
    %3257 = vmatpush.bf16.msra.mxu0 %v1901
    %3258 = vmatpush.bf16.msra.mxu0 %v1893
    %3259 = vmatpush.bf16.msra.mxu0 %v1885
    %3260 = vmatmul.bf16.gmra.mxu0 %v222
    %v3261 = vpop.f32.mrf.mxu0
    %v3262 = vadd.f32 %v3249, %v3261
    %v3263 = vpop.f32.mrf.mxu0
    %3264 = vdwg.mxu0
    %3265 = vmatpush.bf16.msra.mxu0 %v2005
    %3266 = vmatpush.bf16.msra.mxu0 %v1997
    %3267 = vmatpush.bf16.msra.mxu0 %v1989
    %3268 = vmatpush.bf16.msra.mxu0 %v1981
    %3269 = vmatpush.bf16.msra.mxu0 %v1973
    %3270 = vmatpush.bf16.msra.mxu0 %v1965
    %3271 = vmatpush.bf16.msra.mxu0 %v1957
    %3272 = vmatpush.bf16.msra.mxu0 %v1949
    %3273 = vmatmul.bf16.gmra.mxu0 %v223
    %v3274 = vpop.f32.mrf.mxu0
    %v3275 = vadd.f32 %v3262, %v3274
    %v3276 = vpop.f32.mrf.mxu0
    %3277 = vdwg.mxu0
    %3278 = vmatpush.bf16.msra.mxu0 %v2069
    %3279 = vmatpush.bf16.msra.mxu0 %v2061
    %3280 = vmatpush.bf16.msra.mxu0 %v2053
    %3281 = vmatpush.bf16.msra.mxu0 %v2045
    %3282 = vmatpush.bf16.msra.mxu0 %v2037
    %3283 = vmatpush.bf16.msra.mxu0 %v2029
    %3284 = vmatpush.bf16.msra.mxu0 %v2021
    %3285 = vmatpush.bf16.msra.mxu0 %v2013
    %3286 = vmatmul.bf16.gmra.mxu0 %v224
    %v3287 = vpop.f32.mrf.mxu0
    %v3288 = vadd.f32 %v3275, %v3287
    %v3289 = vpop.f32.mrf.mxu0
    %3290 = vdwg.mxu0
    %3291 = vmatpush.bf16.msra.mxu0 %v2133
    %3292 = vmatpush.bf16.msra.mxu0 %v2125
    %3293 = vmatpush.bf16.msra.mxu0 %v2117
    %3294 = vmatpush.bf16.msra.mxu0 %v2109
    %3295 = vmatpush.bf16.msra.mxu0 %v2101
    %3296 = vmatpush.bf16.msra.mxu0 %v2093
    %3297 = vmatpush.bf16.msra.mxu0 %v2085
    %3298 = vmatpush.bf16.msra.mxu0 %v2077
    %3299 = vmatmul.bf16.gmra.mxu0 %v225
    %v3300 = vpop.f32.mrf.mxu0
    %v3301 = vadd.f32 %v3288, %v3300
    %v3302 = vpop.f32.mrf.mxu0
    %3303 = vdwg.mxu0
    %3304 = vmatpush.bf16.msra.mxu0 %v2197
    %3305 = vmatpush.bf16.msra.mxu0 %v2189
    %3306 = vmatpush.bf16.msra.mxu0 %v2181
    %3307 = vmatpush.bf16.msra.mxu0 %v2173
    %3308 = vmatpush.bf16.msra.mxu0 %v2165
    %3309 = vmatpush.bf16.msra.mxu0 %v2157
    %3310 = vmatpush.bf16.msra.mxu0 %v2149
    %3311 = vmatpush.bf16.msra.mxu0 %v2141
    %3312 = vmatmul.bf16.gmra.mxu0 %v226
    %v3313 = vpop.f32.mrf.mxu0
    %v3314 = vadd.f32 %v3301, %v3313
    %v3315 = vpop.f32.mrf.mxu0
    %3316 = vdwg.mxu0
    %3317 = vmatpush.bf16.msra.mxu0 0
    %3318 = vmatpush.bf16.msra.mxu0 0
    %3319 = vmatpush.bf16.msra.mxu0 0
    %3320 = vmatpush.bf16.msra.mxu0 0
    %3321 = vmatpush.bf16.msra.mxu0 0
    %3322 = vmatpush.bf16.msra.mxu0 0
    %3323 = vmatpush.bf16.msra.mxu0 0
    %3324 = vmatpush.bf16.msra.mxu0 %v2205
    %3325 = vmatmul.bf16.gmra.mxu0 %v2600
    %v3326 = vpop.f32.mrf.mxu0
    %v3327 = vadd.f32 %v3314, %v3326
    %v3328 = vpop.f32.mrf.mxu0
    %3329 = vdwg.mxu0
    %vm3330 = vcmp.gt.f32.partialorder %v2690, 0.0
    %vm3331 = vcmp.gt.f32.partialorder %v2781, 0.0
    %vm3332 = vcmp.gt.f32.partialorder %v2872, 0.0
    %vm3333 = vcmp.gt.f32.partialorder %v2963, 0.0
    %vm3334 = vcmp.gt.f32.partialorder %v3054, 0.0
    %vm3335 = vcmp.gt.f32.partialorder %v3145, 0.0
    %vm3336 = vcmp.gt.f32.partialorder %v3236, 0.0
    %vm3337 = vcmp.gt.f32.partialorder %v3327, 0.0
    %v3338 = vmul.f32 %v2690, 0.2
    %v3339 = vmul.f32 %v2781, 0.2
    %v3340 = vmul.f32 %v2872, 0.2
    %v3341 = vmul.f32 %v2963, 0.2
    %v3342 = vmul.f32 %v3054, 0.2
    %v3343 = vmul.f32 %v3145, 0.2
    %v3344 = vmul.f32 %v3236, 0.2
    %v3345 = vmul.f32 %v3327, 0.2
    %v3346 = vsel %vm3330, %v2690, %v3338
    %v3347 = vsel %vm3331, %v2781, %v3339
    %v3348 = vsel %vm3332, %v2872, %v3340
    %v3349 = vsel %vm3333, %v2963, %v3341
    %v3350 = vsel %vm3334, %v3054, %v3342
    %v3351 = vsel %vm3335, %v3145, %v3343
    %v3352 = vsel %vm3336, %v3236, %v3344
    %v3353 = vsel %vm3337, %v3327, %v3345
    %v3354 = vld [vmem:[#allocation5] sm:$0xff]
    %v3355 = vld [vmem:[#allocation5 + $0x8] sm:$0xff]
    %v3356 = vld [vmem:[#allocation5 + $0x10] sm:$0xff]
    %v3357 = vld [vmem:[#allocation5 + $0x18] sm:$0xff]
    %v3358 = vld [vmem:[#allocation5 + $0x20] sm:$0xff]
    %v3359 = vld [vmem:[#allocation5 + $0x28] sm:$0xff]
    %v3360 = vld [vmem:[#allocation5 + $0x30] sm:$0xff]
    %v3361 = vld [vmem:[#allocation5 + $0x38] sm:$0xff]
    %vm3362 = vcmp.ge.f32.partialorder %v3354, 0.3
    %vm3363 = vcmp.ge.f32.partialorder %v3355, 0.3
    %vm3364 = vcmp.ge.f32.partialorder %v3356, 0.3
    %vm3365 = vcmp.ge.f32.partialorder %v3357, 0.3
    %vm3366 = vcmp.ge.f32.partialorder %v3358, 0.3
    %vm3367 = vcmp.ge.f32.partialorder %v3359, 0.3
    %vm3368 = vcmp.ge.f32.partialorder %v3360, 0.3
    %vm3369 = vcmp.ge.f32.partialorder %v3361, 0.3
    %v3370 = vmul.f32 %v3346, 1.4285715
    %v3371 = vmul.f32 %v3347, 1.4285715
    %v3372 = vmul.f32 %v3348, 1.4285715
    %v3373 = vmul.f32 %v3349, 1.4285715
    %v3374 = vmul.f32 %v3350, 1.4285715
    %v3375 = vmul.f32 %v3351, 1.4285715
    %v3376 = vmul.f32 %v3352, 1.4285715
    %v3377 = vmul.f32 %v3353, 1.4285715
    %v3378 = vsel %vm3362, %v3370, 0.0
    %v3379 = vsel %vm3363, %v3371, 0.0
    %v3380 = vsel %vm3364, %v3372, 0.0
    %v3381 = vsel %vm3365, %v3373, 0.0
    %v3382 = vsel %vm3366, %v3374, 0.0
    %v3383 = vsel %vm3367, %v3375, 0.0
    %v3384 = vsel %vm3368, %v3376, 0.0
    %v3385 = vsel %vm3369, %v3377, 0.0
    %v3386 = vpack.c.bf16 %v3378, %v3378
    %v3387 = vpack.c.bf16 %v3379, %v3379
    %v3388 = vpack.c.bf16 %v3380, %v3380
    %v3389 = vpack.c.bf16 %v3381, %v3381
    %v3390 = vpack.c.bf16 %v3382, %v3382
    %v3391 = vpack.c.bf16 %v3383, %v3383
    %v3392 = vpack.c.bf16 %v3384, %v3384
    %v3393 = vpack.c.bf16 %v3385, %v3385
    %v3394 = vld [vmem:[#allocation13] sm:$0xff]
    %v3395 = vld [vmem:[#allocation13 + $0x8] sm:$0xff]
    %v3396 = vld [vmem:[#allocation13 + $0x10] sm:$0xff]
    %v3397 = vld [vmem:[#allocation13 + $0x18] sm:$0xff]
    %v3398 = vld [vmem:[#allocation13 + $0x20] sm:$0xff]
    %v3399 = vld [vmem:[#allocation13 + $0x28] sm:$0xff]
    %v3400 = vld [vmem:[#allocation13 + $0x30] sm:$0xff]
    %v3401 = vld [vmem:[#allocation13 + $0x38] sm:$0xff]
    %v3402 = vld [vmem:[#allocation13 + $0x40] sm:$0xff]
    %v3403 = vld [vmem:[#allocation13 + $0x48] sm:$0xff]
    %v3404 = vld [vmem:[#allocation13 + $0x50] sm:$0xff]
    %v3405 = vld [vmem:[#allocation13 + $0x58] sm:$0xff]
    %v3406 = vld [vmem:[#allocation13 + $0x60] sm:$0xff]
    %v3407 = vld [vmem:[#allocation13 + $0x68] sm:$0xff]
    %v3408 = vld [vmem:[#allocation13 + $0x70] sm:$0xff]
    %v3409 = vld [vmem:[#allocation13 + $0x78] sm:$0xff]
    %v3410 = vld [vmem:[#allocation13 + $0x80] sm:$0xff]
    %v3411 = vld [vmem:[#allocation13 + $0x88] sm:$0xff]
    %v3412 = vld [vmem:[#allocation13 + $0x90] sm:$0xff]
    %v3413 = vld [vmem:[#allocation13 + $0x98] sm:$0xff]
    %v3414 = vld [vmem:[#allocation13 + $0xa0] sm:$0xff]
    %v3415 = vld [vmem:[#allocation13 + $0xa8] sm:$0xff]
    %v3416 = vld [vmem:[#allocation13 + $0xb0] sm:$0xff]
    %v3417 = vld [vmem:[#allocation13 + $0xb8] sm:$0xff]
    %v3418 = vld [vmem:[#allocation13 + $0xc0] sm:$0xff]
    %v3419 = vld [vmem:[#allocation13 + $0xc8] sm:$0xff]
    %v3420 = vld [vmem:[#allocation13 + $0xd0] sm:$0xff]
    %v3421 = vld [vmem:[#allocation13 + $0xd8] sm:$0xff]
    %v3422 = vld [vmem:[#allocation13 + $0xe0] sm:$0xff]
    %v3423 = vld [vmem:[#allocation13 + $0xe8] sm:$0xff]
    %v3424 = vld [vmem:[#allocation13 + $0xf0] sm:$0xff]
    %v3425 = vld [vmem:[#allocation13 + $0xf8] sm:$0xff]
    %v3426 = vld [vmem:[#allocation13 + $0x100] sm:$0xff]
    %v3427 = vld [vmem:[#allocation13 + $0x108] sm:$0xff]
    %v3428 = vld [vmem:[#allocation13 + $0x110] sm:$0xff]
    %v3429 = vld [vmem:[#allocation13 + $0x118] sm:$0xff]
    %v3430 = vld [vmem:[#allocation13 + $0x120] sm:$0xff]
    %v3431 = vld [vmem:[#allocation13 + $0x128] sm:$0xff]
    %v3432 = vld [vmem:[#allocation13 + $0x130] sm:$0xff]
    %v3433 = vld [vmem:[#allocation13 + $0x138] sm:$0xff]
    %v3434 = vld [vmem:[#allocation13 + $0x140] sm:$0xff]
    %v3435 = vld [vmem:[#allocation13 + $0x148] sm:$0xff]
    %v3436 = vld [vmem:[#allocation13 + $0x150] sm:$0xff]
    %v3437 = vld [vmem:[#allocation13 + $0x158] sm:$0xff]
    %v3438 = vld [vmem:[#allocation13 + $0x160] sm:$0xff]
    %v3439 = vld [vmem:[#allocation13 + $0x168] sm:$0xff]
    %v3440 = vld [vmem:[#allocation13 + $0x170] sm:$0xff]
    %v3441 = vld [vmem:[#allocation13 + $0x178] sm:$0xff]
    %v3442 = vld [vmem:[#allocation13 + $0x180] sm:$0xff]
    %v3443 = vld [vmem:[#allocation13 + $0x188] sm:$0xff]
    %v3444 = vld [vmem:[#allocation13 + $0x190] sm:$0xff]
    %v3445 = vld [vmem:[#allocation13 + $0x198] sm:$0xff]
    %v3446 = vld [vmem:[#allocation13 + $0x1a0] sm:$0xff]
    %v3447 = vld [vmem:[#allocation13 + $0x1a8] sm:$0xff]
    %v3448 = vld [vmem:[#allocation13 + $0x1b0] sm:$0xff]
    %v3449 = vld [vmem:[#allocation13 + $0x1b8] sm:$0xff]
    %v3450 = vld [vmem:[#allocation13 + $0x1c0] sm:$0xff]
    %v3451 = vld [vmem:[#allocation13 + $0x1c8] sm:$0xff]
    %v3452 = vld [vmem:[#allocation13 + $0x1d0] sm:$0xff]
    %v3453 = vld [vmem:[#allocation13 + $0x1d8] sm:$0xff]
    %v3454 = vld [vmem:[#allocation13 + $0x1e0] sm:$0xff]
    %v3455 = vld [vmem:[#allocation13 + $0x1e8] sm:$0xff]
    %v3456 = vld [vmem:[#allocation13 + $0x1f0] sm:$0xff]
    %v3457 = vld [vmem:[#allocation13 + $0x1f8] sm:$0xff]
    %v3458 = vld [vmem:[#allocation13 + $0x200] sm:$0xff]
    %v3459 = vld [vmem:[#allocation13 + $0x208] sm:$0xff]
    %v3460 = vld [vmem:[#allocation13 + $0x210] sm:$0xff]
    %v3461 = vld [vmem:[#allocation13 + $0x218] sm:$0xff]
    %v3462 = vld [vmem:[#allocation13 + $0x220] sm:$0xff]
    %v3463 = vld [vmem:[#allocation13 + $0x228] sm:$0xff]
    %v3464 = vld [vmem:[#allocation13 + $0x230] sm:$0xff]
    %v3465 = vld [vmem:[#allocation13 + $0x238] sm:$0xff]
    %v3466 = vld [vmem:[#allocation13 + $0x240] sm:$0xff]
    %v3467 = vld [vmem:[#allocation13 + $0x248] sm:$0xff]
    %v3468 = vld [vmem:[#allocation13 + $0x250] sm:$0xff]
    %v3469 = vld [vmem:[#allocation13 + $0x258] sm:$0xff]
    %v3470 = vld [vmem:[#allocation13 + $0x260] sm:$0xff]
    %v3471 = vld [vmem:[#allocation13 + $0x268] sm:$0xff]
    %v3472 = vld [vmem:[#allocation13 + $0x270] sm:$0xff]
    %v3473 = vld [vmem:[#allocation13 + $0x278] sm:$0xff]
    %v3474 = vld [vmem:[#allocation13 + $0x280] sm:$0xff]
    %v3475 = vld [vmem:[#allocation13 + $0x288] sm:$0xff]
    %v3476 = vld [vmem:[#allocation13 + $0x290] sm:$0xff]
    %v3477 = vld [vmem:[#allocation13 + $0x298] sm:$0xff]
    %v3478 = vld [vmem:[#allocation13 + $0x2a0] sm:$0xff]
    %v3479 = vld [vmem:[#allocation13 + $0x2a8] sm:$0xff]
    %v3480 = vld [vmem:[#allocation13 + $0x2b0] sm:$0xff]
    %v3481 = vld [vmem:[#allocation13 + $0x2b8] sm:$0xff]
    %v3482 = vld [vmem:[#allocation13 + $0x2c0] sm:$0xff]
    %v3483 = vld [vmem:[#allocation13 + $0x2c8] sm:$0xff]
    %v3484 = vld [vmem:[#allocation13 + $0x2d0] sm:$0xff]
    %v3485 = vld [vmem:[#allocation13 + $0x2d8] sm:$0xff]
    %v3486 = vld [vmem:[#allocation13 + $0x2e0] sm:$0xff]
    %v3487 = vld [vmem:[#allocation13 + $0x2e8] sm:$0xff]
    %v3488 = vld [vmem:[#allocation13 + $0x2f0] sm:$0xff]
    %v3489 = vld [vmem:[#allocation13 + $0x2f8] sm:$0xff]
    %v3490 = vld [vmem:[#allocation13 + $0x300] sm:$0xff]
    %v3491 = vld [vmem:[#allocation13 + $0x308] sm:$0xff]
    %v3492 = vld [vmem:[#allocation13 + $0x310] sm:$0xff]
    %v3493 = vld [vmem:[#allocation13 + $0x318] sm:$0xff]
    %v3494 = vld [vmem:[#allocation13 + $0x320] sm:$0xff]
    %v3495 = vld [vmem:[#allocation13 + $0x328] sm:$0xff]
    %v3496 = vld [vmem:[#allocation13 + $0x330] sm:$0xff]
    %v3497 = vld [vmem:[#allocation13 + $0x338] sm:$0xff]
    %v3498 = vld [vmem:[#allocation13 + $0x340] sm:$0xff]
    %v3499 = vld [vmem:[#allocation13 + $0x348] sm:$0xff]
    %v3500 = vld [vmem:[#allocation13 + $0x350] sm:$0xff]
    %v3501 = vld [vmem:[#allocation13 + $0x358] sm:$0xff]
    %v3502 = vld [vmem:[#allocation13 + $0x360] sm:$0xff]
    %v3503 = vld [vmem:[#allocation13 + $0x368] sm:$0xff]
    %v3504 = vld [vmem:[#allocation13 + $0x370] sm:$0xff]
    %v3505 = vld [vmem:[#allocation13 + $0x378] sm:$0xff]
    %v3506 = vld [vmem:[#allocation13 + $0x380] sm:$0xff]
    %v3507 = vld [vmem:[#allocation13 + $0x388] sm:$0xff]
    %v3508 = vld [vmem:[#allocation13 + $0x390] sm:$0xff]
    %v3509 = vld [vmem:[#allocation13 + $0x398] sm:$0xff]
    %v3510 = vld [vmem:[#allocation13 + $0x3a0] sm:$0xff]
    %v3511 = vld [vmem:[#allocation13 + $0x3a8] sm:$0xff]
    %v3512 = vld [vmem:[#allocation13 + $0x3b0] sm:$0xff]
    %v3513 = vld [vmem:[#allocation13 + $0x3b8] sm:$0xff]
    %v3514 = vld [vmem:[#allocation13 + $0x3c0] sm:$0xff]
    %v3515 = vld [vmem:[#allocation13 + $0x3c8] sm:$0xff]
    %v3516 = vld [vmem:[#allocation13 + $0x3d0] sm:$0xff]
    %v3517 = vld [vmem:[#allocation13 + $0x3d8] sm:$0xff]
    %v3518 = vld [vmem:[#allocation13 + $0x3e0] sm:$0xff]
    %v3519 = vld [vmem:[#allocation13 + $0x3e8] sm:$0xff]
    %v3520 = vld [vmem:[#allocation13 + $0x3f0] sm:$0xff]
    %v3521 = vld [vmem:[#allocation13 + $0x3f8] sm:$0xff]
    %v3522 = vld [vmem:[#allocation13 + $0x400] sm:$0xff]
    %v3523 = vld [vmem:[#allocation13 + $0x408] sm:$0xff]
    %v3524 = vld [vmem:[#allocation13 + $0x410] sm:$0xff]
    %v3525 = vld [vmem:[#allocation13 + $0x418] sm:$0xff]
    %v3526 = vld [vmem:[#allocation13 + $0x420] sm:$0xff]
    %v3527 = vld [vmem:[#allocation13 + $0x428] sm:$0xff]
    %v3528 = vld [vmem:[#allocation13 + $0x430] sm:$0xff]
    %v3529 = vld [vmem:[#allocation13 + $0x438] sm:$0xff]
    %v3530 = vld [vmem:[#allocation13 + $0x440] sm:$0xff]
    %v3531 = vld [vmem:[#allocation13 + $0x448] sm:$0xff]
    %v3532 = vld [vmem:[#allocation13 + $0x450] sm:$0xff]
    %v3533 = vld [vmem:[#allocation13 + $0x458] sm:$0xff]
    %v3534 = vld [vmem:[#allocation13 + $0x460] sm:$0xff]
    %v3535 = vld [vmem:[#allocation13 + $0x468] sm:$0xff]
    %v3536 = vld [vmem:[#allocation13 + $0x470] sm:$0xff]
    %v3537 = vld [vmem:[#allocation13 + $0x478] sm:$0xff]
    %v3538 = vld [vmem:[#allocation13 + $0x480] sm:$0xff]
    %v3539 = vld [vmem:[#allocation13 + $0x488] sm:$0xff]
    %v3540 = vld [vmem:[#allocation13 + $0x490] sm:$0xff]
    %v3541 = vld [vmem:[#allocation13 + $0x498] sm:$0xff]
    %v3542 = vld [vmem:[#allocation13 + $0x4a0] sm:$0xff]
    %v3543 = vld [vmem:[#allocation13 + $0x4a8] sm:$0xff]
    %v3544 = vld [vmem:[#allocation13 + $0x4b0] sm:$0xff]
    %v3545 = vld [vmem:[#allocation13 + $0x4b8] sm:$0xff]
    %v3546 = vld [vmem:[#allocation13 + $0x4c0] sm:$0xff]
    %v3547 = vld [vmem:[#allocation13 + $0x4c8] sm:$0xff]
    %v3548 = vld [vmem:[#allocation13 + $0x4d0] sm:$0xff]
    %v3549 = vld [vmem:[#allocation13 + $0x4d8] sm:$0xff]
    %v3550 = vld [vmem:[#allocation13 + $0x4e0] sm:$0xff]
    %v3551 = vld [vmem:[#allocation13 + $0x4e8] sm:$0xff]
    %v3552 = vld [vmem:[#allocation13 + $0x4f0] sm:$0xff]
    %v3553 = vld [vmem:[#allocation13 + $0x4f8] sm:$0xff]
    %v3554 = vld [vmem:[#allocation13 + $0x500] sm:$0xff]
    %v3555 = vld [vmem:[#allocation13 + $0x508] sm:$0xff]
    %v3556 = vld [vmem:[#allocation13 + $0x510] sm:$0xff]
    %v3557 = vld [vmem:[#allocation13 + $0x518] sm:$0xff]
    %v3558 = vld [vmem:[#allocation13 + $0x520] sm:$0xff]
    %v3559 = vld [vmem:[#allocation13 + $0x528] sm:$0xff]
    %v3560 = vld [vmem:[#allocation13 + $0x530] sm:$0xff]
    %v3561 = vld [vmem:[#allocation13 + $0x538] sm:$0xff]
    %v3562 = vld [vmem:[#allocation13 + $0x540] sm:$0xff]
    %v3563 = vld [vmem:[#allocation13 + $0x548] sm:$0xff]
    %v3564 = vld [vmem:[#allocation13 + $0x550] sm:$0xff]
    %v3565 = vld [vmem:[#allocation13 + $0x558] sm:$0xff]
    %v3566 = vld [vmem:[#allocation13 + $0x560] sm:$0xff]
    %v3567 = vld [vmem:[#allocation13 + $0x568] sm:$0xff]
    %v3568 = vld [vmem:[#allocation13 + $0x570] sm:$0xff]
    %v3569 = vld [vmem:[#allocation13 + $0x578] sm:$0xff]
    %v3570 = vld [vmem:[#allocation13 + $0x580] sm:$0xff]
    %v3571 = vld [vmem:[#allocation13 + $0x588] sm:$0xff]
    %v3572 = vld [vmem:[#allocation13 + $0x590] sm:$0xff]
    %v3573 = vld [vmem:[#allocation13 + $0x598] sm:$0xff]
    %v3574 = vld [vmem:[#allocation13 + $0x5a0] sm:$0xff]
    %v3575 = vld [vmem:[#allocation13 + $0x5a8] sm:$0xff]
    %v3576 = vld [vmem:[#allocation13 + $0x5b0] sm:$0xff]
    %v3577 = vld [vmem:[#allocation13 + $0x5b8] sm:$0xff]
    %v3578 = vld [vmem:[#allocation13 + $0x5c0] sm:$0xff]
    %v3579 = vld [vmem:[#allocation13 + $0x5c8] sm:$0xff]
    %v3580 = vld [vmem:[#allocation13 + $0x5d0] sm:$0xff]
    %v3581 = vld [vmem:[#allocation13 + $0x5d8] sm:$0xff]
    %v3582 = vld [vmem:[#allocation13 + $0x5e0] sm:$0xff]
    %v3583 = vld [vmem:[#allocation13 + $0x5e8] sm:$0xff]
    %v3584 = vld [vmem:[#allocation13 + $0x5f0] sm:$0xff]
    %v3585 = vld [vmem:[#allocation13 + $0x5f8] sm:$0xff]
    %v3586 = vld [vmem:[#allocation13 + $0x600] sm:$0xff]
    %v3587 = vld [vmem:[#allocation13 + $0x608] sm:$0xff]
    %v3588 = vld [vmem:[#allocation13 + $0x610] sm:$0xff]
    %v3589 = vld [vmem:[#allocation13 + $0x618] sm:$0xff]
    %v3590 = vld [vmem:[#allocation13 + $0x620] sm:$0xff]
    %v3591 = vld [vmem:[#allocation13 + $0x628] sm:$0xff]
    %v3592 = vld [vmem:[#allocation13 + $0x630] sm:$0xff]
    %v3593 = vld [vmem:[#allocation13 + $0x638] sm:$0xff]
    %v3594 = vld [vmem:[#allocation13 + $0x640] sm:$0xff]
    %v3595 = vld [vmem:[#allocation13 + $0x648] sm:$0xff]
    %v3596 = vld [vmem:[#allocation13 + $0x650] sm:$0xff]
    %v3597 = vld [vmem:[#allocation13 + $0x658] sm:$0xff]
    %v3598 = vld [vmem:[#allocation13 + $0x660] sm:$0xff]
    %v3599 = vld [vmem:[#allocation13 + $0x668] sm:$0xff]
    %v3600 = vld [vmem:[#allocation13 + $0x670] sm:$0xff]
    %v3601 = vld [vmem:[#allocation13 + $0x678] sm:$0xff]
    %v3602 = vld [vmem:[#allocation13 + $0x680] sm:$0xff]
    %v3603 = vld [vmem:[#allocation13 + $0x688] sm:$0xff]
    %v3604 = vld [vmem:[#allocation13 + $0x690] sm:$0xff]
    %v3605 = vld [vmem:[#allocation13 + $0x698] sm:$0xff]
    %v3606 = vld [vmem:[#allocation13 + $0x6a0] sm:$0xff]
    %v3607 = vld [vmem:[#allocation13 + $0x6a8] sm:$0xff]
    %v3608 = vld [vmem:[#allocation13 + $0x6b0] sm:$0xff]
    %v3609 = vld [vmem:[#allocation13 + $0x6b8] sm:$0xff]
    %v3610 = vld [vmem:[#allocation13 + $0x6c0] sm:$0xff]
    %v3611 = vld [vmem:[#allocation13 + $0x6c8] sm:$0xff]
    %v3612 = vld [vmem:[#allocation13 + $0x6d0] sm:$0xff]
    %v3613 = vld [vmem:[#allocation13 + $0x6d8] sm:$0xff]
    %v3614 = vld [vmem:[#allocation13 + $0x6e0] sm:$0xff]
    %v3615 = vld [vmem:[#allocation13 + $0x6e8] sm:$0xff]
    %v3616 = vld [vmem:[#allocation13 + $0x6f0] sm:$0xff]
    %v3617 = vld [vmem:[#allocation13 + $0x6f8] sm:$0xff]
    %v3618 = vld [vmem:[#allocation13 + $0x700] sm:$0xff]
    %v3619 = vld [vmem:[#allocation13 + $0x708] sm:$0xff]
    %v3620 = vld [vmem:[#allocation13 + $0x710] sm:$0xff]
    %v3621 = vld [vmem:[#allocation13 + $0x718] sm:$0xff]
    %v3622 = vld [vmem:[#allocation13 + $0x720] sm:$0xff]
    %v3623 = vld [vmem:[#allocation13 + $0x728] sm:$0xff]
    %v3624 = vld [vmem:[#allocation13 + $0x730] sm:$0xff]
    %v3625 = vld [vmem:[#allocation13 + $0x738] sm:$0xff]
    %v3626 = vld [vmem:[#allocation13 + $0x740] sm:$0xff]
    %v3627 = vld [vmem:[#allocation13 + $0x748] sm:$0xff]
    %v3628 = vld [vmem:[#allocation13 + $0x750] sm:$0xff]
    %v3629 = vld [vmem:[#allocation13 + $0x758] sm:$0xff]
    %v3630 = vld [vmem:[#allocation13 + $0x760] sm:$0xff]
    %v3631 = vld [vmem:[#allocation13 + $0x768] sm:$0xff]
    %v3632 = vld [vmem:[#allocation13 + $0x770] sm:$0xff]
    %v3633 = vld [vmem:[#allocation13 + $0x778] sm:$0xff]
    %v3634 = vld [vmem:[#allocation13 + $0x780] sm:$0xff]
    %v3635 = vld [vmem:[#allocation13 + $0x788] sm:$0xff]
    %v3636 = vld [vmem:[#allocation13 + $0x790] sm:$0xff]
    %v3637 = vld [vmem:[#allocation13 + $0x798] sm:$0xff]
    %v3638 = vld [vmem:[#allocation13 + $0x7a0] sm:$0xff]
    %v3639 = vld [vmem:[#allocation13 + $0x7a8] sm:$0xff]
    %v3640 = vld [vmem:[#allocation13 + $0x7b0] sm:$0xff]
    %v3641 = vld [vmem:[#allocation13 + $0x7b8] sm:$0xff]
    %v3642 = vld [vmem:[#allocation13 + $0x7c0] sm:$0xff]
    %v3643 = vld [vmem:[#allocation13 + $0x7c8] sm:$0xff]
    %v3644 = vld [vmem:[#allocation13 + $0x7d0] sm:$0xff]
    %v3645 = vld [vmem:[#allocation13 + $0x7d8] sm:$0xff]
    %v3646 = vld [vmem:[#allocation13 + $0x7e0] sm:$0xff]
    %v3647 = vld [vmem:[#allocation13 + $0x7e8] sm:$0xff]
    %v3648 = vld [vmem:[#allocation13 + $0x7f0] sm:$0xff]
    %v3649 = vld [vmem:[#allocation13 + $0x7f8] sm:$0xff]
    %v3650 = vld [vmem:[#allocation14] sm:$0xf]
    %v3652 = vperm.slane %v3650, 0
    %v3653 = vperm.slane %v3650, 1
    %v3654 = vperm.slane %v3650, 2
    %v3655 = vperm.slane %v3650, 3
    %v3916 = vunpack.c.l.b16 %v3394
    %v3917 = vunpack.c.h.b16 %v3394
    %v3918 = vunpack.c.l.b16 %v3395
    %v3919 = vunpack.c.h.b16 %v3395
    %v3920 = vunpack.c.l.b16 %v3396
    %v3921 = vunpack.c.h.b16 %v3396
    %v3922 = vunpack.c.l.b16 %v3397
    %v3923 = vunpack.c.h.b16 %v3397
    %v3924 = vunpack.c.l.b16 %v3398
    %v3925 = vunpack.c.h.b16 %v3398
    %v3926 = vunpack.c.l.b16 %v3399
    %v3927 = vunpack.c.h.b16 %v3399
    %v3928 = vunpack.c.l.b16 %v3400
    %v3929 = vunpack.c.h.b16 %v3400
    %v3930 = vunpack.c.l.b16 %v3401
    %v3931 = vunpack.c.h.b16 %v3401
    %v3932 = vunpack.c.l.b16 %v3402
    %v3933 = vunpack.c.h.b16 %v3402
    %v3934 = vunpack.c.l.b16 %v3403
    %v3935 = vunpack.c.h.b16 %v3403
    %v3936 = vunpack.c.l.b16 %v3404
    %v3937 = vunpack.c.h.b16 %v3404
    %v3938 = vunpack.c.l.b16 %v3405
    %v3939 = vunpack.c.h.b16 %v3405
    %v3940 = vunpack.c.l.b16 %v3406
    %v3941 = vunpack.c.h.b16 %v3406
    %v3942 = vunpack.c.l.b16 %v3407
    %v3943 = vunpack.c.h.b16 %v3407
    %v3944 = vunpack.c.l.b16 %v3408
    %v3945 = vunpack.c.h.b16 %v3408
    %v3946 = vunpack.c.l.b16 %v3409
    %v3947 = vunpack.c.h.b16 %v3409
    %v3948 = vunpack.c.l.b16 %v3410
    %v3949 = vunpack.c.h.b16 %v3410
    %v3950 = vunpack.c.l.b16 %v3411
    %v3951 = vunpack.c.h.b16 %v3411
    %v3952 = vunpack.c.l.b16 %v3412
    %v3953 = vunpack.c.h.b16 %v3412
    %v3954 = vunpack.c.l.b16 %v3413
    %v3955 = vunpack.c.h.b16 %v3413
    %v3956 = vunpack.c.l.b16 %v3414
    %v3957 = vunpack.c.h.b16 %v3414
    %v3958 = vunpack.c.l.b16 %v3415
    %v3959 = vunpack.c.h.b16 %v3415
    %v3960 = vunpack.c.l.b16 %v3416
    %v3961 = vunpack.c.h.b16 %v3416
    %v3962 = vunpack.c.l.b16 %v3417
    %v3963 = vunpack.c.h.b16 %v3417
    %v3964 = vunpack.c.l.b16 %v3418
    %v3965 = vunpack.c.h.b16 %v3418
    %v3966 = vunpack.c.l.b16 %v3419
    %v3967 = vunpack.c.h.b16 %v3419
    %v3968 = vunpack.c.l.b16 %v3420
    %v3969 = vunpack.c.h.b16 %v3420
    %v3970 = vunpack.c.l.b16 %v3421
    %v3971 = vunpack.c.h.b16 %v3421
    %v3972 = vunpack.c.l.b16 %v3422
    %v3973 = vunpack.c.h.b16 %v3422
    %v3974 = vunpack.c.l.b16 %v3423
    %v3975 = vunpack.c.h.b16 %v3423
    %v3976 = vunpack.c.l.b16 %v3424
    %v3977 = vunpack.c.h.b16 %v3424
    %v3978 = vunpack.c.l.b16 %v3425
    %v3979 = vunpack.c.h.b16 %v3425
    %v3980 = vunpack.c.l.b16 %v3426
    %v3981 = vunpack.c.h.b16 %v3426
    %v3982 = vunpack.c.l.b16 %v3427
    %v3983 = vunpack.c.h.b16 %v3427
    %v3984 = vunpack.c.l.b16 %v3428
    %v3985 = vunpack.c.h.b16 %v3428
    %v3986 = vunpack.c.l.b16 %v3429
    %v3987 = vunpack.c.h.b16 %v3429
    %v3988 = vunpack.c.l.b16 %v3430
    %v3989 = vunpack.c.h.b16 %v3430
    %v3990 = vunpack.c.l.b16 %v3431
    %v3991 = vunpack.c.h.b16 %v3431
    %v3992 = vunpack.c.l.b16 %v3432
    %v3993 = vunpack.c.h.b16 %v3432
    %v3994 = vunpack.c.l.b16 %v3433
    %v3995 = vunpack.c.h.b16 %v3433
    %v3996 = vunpack.c.l.b16 %v3434
    %v3997 = vunpack.c.h.b16 %v3434
    %v3998 = vunpack.c.l.b16 %v3435
    %v3999 = vunpack.c.h.b16 %v3435
    %v4000 = vunpack.c.l.b16 %v3436
    %v4001 = vunpack.c.h.b16 %v3436
    %v4002 = vunpack.c.l.b16 %v3437
    %v4003 = vunpack.c.h.b16 %v3437
    %v4004 = vunpack.c.l.b16 %v3438
    %v4005 = vunpack.c.h.b16 %v3438
    %v4006 = vunpack.c.l.b16 %v3439
    %v4007 = vunpack.c.h.b16 %v3439
    %v4008 = vunpack.c.l.b16 %v3440
    %v4009 = vunpack.c.h.b16 %v3440
    %v4010 = vunpack.c.l.b16 %v3441
    %v4011 = vunpack.c.h.b16 %v3441
    %v4012 = vunpack.c.l.b16 %v3442
    %v4013 = vunpack.c.h.b16 %v3442
    %v4014 = vunpack.c.l.b16 %v3443
    %v4015 = vunpack.c.h.b16 %v3443
    %v4016 = vunpack.c.l.b16 %v3444
    %v4017 = vunpack.c.h.b16 %v3444
    %v4018 = vunpack.c.l.b16 %v3445
    %v4019 = vunpack.c.h.b16 %v3445
    %v4020 = vunpack.c.l.b16 %v3446
    %v4021 = vunpack.c.h.b16 %v3446
    %v4022 = vunpack.c.l.b16 %v3447
    %v4023 = vunpack.c.h.b16 %v3447
    %v4024 = vunpack.c.l.b16 %v3448
    %v4025 = vunpack.c.h.b16 %v3448
    %v4026 = vunpack.c.l.b16 %v3449
    %v4027 = vunpack.c.h.b16 %v3449
    %v4028 = vunpack.c.l.b16 %v3450
    %v4029 = vunpack.c.h.b16 %v3450
    %v4030 = vunpack.c.l.b16 %v3451
    %v4031 = vunpack.c.h.b16 %v3451
    %v4032 = vunpack.c.l.b16 %v3452
    %v4033 = vunpack.c.h.b16 %v3452
    %v4034 = vunpack.c.l.b16 %v3453
    %v4035 = vunpack.c.h.b16 %v3453
    %v4036 = vunpack.c.l.b16 %v3454
    %v4037 = vunpack.c.h.b16 %v3454
    %v4038 = vunpack.c.l.b16 %v3455
    %v4039 = vunpack.c.h.b16 %v3455
    %v4040 = vunpack.c.l.b16 %v3456
    %v4041 = vunpack.c.h.b16 %v3456
    %v4042 = vunpack.c.l.b16 %v3457
    %v4043 = vunpack.c.h.b16 %v3457
    %v4044 = vunpack.c.l.b16 %v3458
    %v4045 = vunpack.c.h.b16 %v3458
    %v4046 = vunpack.c.l.b16 %v3459
    %v4047 = vunpack.c.h.b16 %v3459
    %v4048 = vunpack.c.l.b16 %v3460
    %v4049 = vunpack.c.h.b16 %v3460
    %v4050 = vunpack.c.l.b16 %v3461
    %v4051 = vunpack.c.h.b16 %v3461
    %v4052 = vunpack.c.l.b16 %v3462
    %v4053 = vunpack.c.h.b16 %v3462
    %v4054 = vunpack.c.l.b16 %v3463
    %v4055 = vunpack.c.h.b16 %v3463
    %v4056 = vunpack.c.l.b16 %v3464
    %v4057 = vunpack.c.h.b16 %v3464
    %v4058 = vunpack.c.l.b16 %v3465
    %v4059 = vunpack.c.h.b16 %v3465
    %v4060 = vunpack.c.l.b16 %v3466
    %v4061 = vunpack.c.h.b16 %v3466
    %v4062 = vunpack.c.l.b16 %v3467
    %v4063 = vunpack.c.h.b16 %v3467
    %v4064 = vunpack.c.l.b16 %v3468
    %v4065 = vunpack.c.h.b16 %v3468
    %v4066 = vunpack.c.l.b16 %v3469
    %v4067 = vunpack.c.h.b16 %v3469
    %v4068 = vunpack.c.l.b16 %v3470
    %v4069 = vunpack.c.h.b16 %v3470
    %v4070 = vunpack.c.l.b16 %v3471
    %v4071 = vunpack.c.h.b16 %v3471
    %v4072 = vunpack.c.l.b16 %v3472
    %v4073 = vunpack.c.h.b16 %v3472
    %v4074 = vunpack.c.l.b16 %v3473
    %v4075 = vunpack.c.h.b16 %v3473
    %v4076 = vunpack.c.l.b16 %v3474
    %v4077 = vunpack.c.h.b16 %v3474
    %v4078 = vunpack.c.l.b16 %v3475
    %v4079 = vunpack.c.h.b16 %v3475
    %v4080 = vunpack.c.l.b16 %v3476
    %v4081 = vunpack.c.h.b16 %v3476
    %v4082 = vunpack.c.l.b16 %v3477
    %v4083 = vunpack.c.h.b16 %v3477
    %v4084 = vunpack.c.l.b16 %v3478
    %v4085 = vunpack.c.h.b16 %v3478
    %v4086 = vunpack.c.l.b16 %v3479
    %v4087 = vunpack.c.h.b16 %v3479
    %v4088 = vunpack.c.l.b16 %v3480
    %v4089 = vunpack.c.h.b16 %v3480
    %v4090 = vunpack.c.l.b16 %v3481
    %v4091 = vunpack.c.h.b16 %v3481
    %v4092 = vunpack.c.l.b16 %v3482
    %v4093 = vunpack.c.h.b16 %v3482
    %v4094 = vunpack.c.l.b16 %v3483
    %v4095 = vunpack.c.h.b16 %v3483
    %v4096 = vunpack.c.l.b16 %v3484
    %v4097 = vunpack.c.h.b16 %v3484
    %v4098 = vunpack.c.l.b16 %v3485
    %v4099 = vunpack.c.h.b16 %v3485
    %v4100 = vunpack.c.l.b16 %v3486
    %v4101 = vunpack.c.h.b16 %v3486
    %v4102 = vunpack.c.l.b16 %v3487
    %v4103 = vunpack.c.h.b16 %v3487
    %v4104 = vunpack.c.l.b16 %v3488
    %v4105 = vunpack.c.h.b16 %v3488
    %v4106 = vunpack.c.l.b16 %v3489
    %v4107 = vunpack.c.h.b16 %v3489
    %v4108 = vunpack.c.l.b16 %v3490
    %v4109 = vunpack.c.h.b16 %v3490
    %v4110 = vunpack.c.l.b16 %v3491
    %v4111 = vunpack.c.h.b16 %v3491
    %v4112 = vunpack.c.l.b16 %v3492
    %v4113 = vunpack.c.h.b16 %v3492
    %v4114 = vunpack.c.l.b16 %v3493
    %v4115 = vunpack.c.h.b16 %v3493
    %v4116 = vunpack.c.l.b16 %v3494
    %v4117 = vunpack.c.h.b16 %v3494
    %v4118 = vunpack.c.l.b16 %v3495
    %v4119 = vunpack.c.h.b16 %v3495
    %v4120 = vunpack.c.l.b16 %v3496
    %v4121 = vunpack.c.h.b16 %v3496
    %v4122 = vunpack.c.l.b16 %v3497
    %v4123 = vunpack.c.h.b16 %v3497
    %v4124 = vunpack.c.l.b16 %v3498
    %v4125 = vunpack.c.h.b16 %v3498
    %v4126 = vunpack.c.l.b16 %v3499
    %v4127 = vunpack.c.h.b16 %v3499
    %v4128 = vunpack.c.l.b16 %v3500
    %v4129 = vunpack.c.h.b16 %v3500
    %v4130 = vunpack.c.l.b16 %v3501
    %v4131 = vunpack.c.h.b16 %v3501
    %v4132 = vunpack.c.l.b16 %v3502
    %v4133 = vunpack.c.h.b16 %v3502
    %v4134 = vunpack.c.l.b16 %v3503
    %v4135 = vunpack.c.h.b16 %v3503
    %v4136 = vunpack.c.l.b16 %v3504
    %v4137 = vunpack.c.h.b16 %v3504
    %v4138 = vunpack.c.l.b16 %v3505
    %v4139 = vunpack.c.h.b16 %v3505
    %v4140 = vunpack.c.l.b16 %v3506
    %v4141 = vunpack.c.h.b16 %v3506
    %v4142 = vunpack.c.l.b16 %v3507
    %v4143 = vunpack.c.h.b16 %v3507
    %v4144 = vunpack.c.l.b16 %v3508
    %v4145 = vunpack.c.h.b16 %v3508
    %v4146 = vunpack.c.l.b16 %v3509
    %v4147 = vunpack.c.h.b16 %v3509
    %v4148 = vunpack.c.l.b16 %v3510
    %v4149 = vunpack.c.h.b16 %v3510
    %v4150 = vunpack.c.l.b16 %v3511
    %v4151 = vunpack.c.h.b16 %v3511
    %v4152 = vunpack.c.l.b16 %v3512
    %v4153 = vunpack.c.h.b16 %v3512
    %v4154 = vunpack.c.l.b16 %v3513
    %v4155 = vunpack.c.h.b16 %v3513
    %v4156 = vunpack.c.l.b16 %v3514
    %v4157 = vunpack.c.h.b16 %v3514
    %v4158 = vunpack.c.l.b16 %v3515
    %v4159 = vunpack.c.h.b16 %v3515
    %v4160 = vunpack.c.l.b16 %v3516
    %v4161 = vunpack.c.h.b16 %v3516
    %v4162 = vunpack.c.l.b16 %v3517
    %v4163 = vunpack.c.h.b16 %v3517
    %v4164 = vunpack.c.l.b16 %v3518
    %v4165 = vunpack.c.h.b16 %v3518
    %v4166 = vunpack.c.l.b16 %v3519
    %v4167 = vunpack.c.h.b16 %v3519
    %v4168 = vunpack.c.l.b16 %v3520
    %v4169 = vunpack.c.h.b16 %v3520
    %v4170 = vunpack.c.l.b16 %v3521
    %v4171 = vunpack.c.h.b16 %v3521
    %v4172 = vunpack.c.l.b16 %v3522
    %v4173 = vunpack.c.h.b16 %v3522
    %v4174 = vunpack.c.l.b16 %v3523
    %v4175 = vunpack.c.h.b16 %v3523
    %v4176 = vunpack.c.l.b16 %v3524
    %v4177 = vunpack.c.h.b16 %v3524
    %v4178 = vunpack.c.l.b16 %v3525
    %v4179 = vunpack.c.h.b16 %v3525
    %v4180 = vunpack.c.l.b16 %v3526
    %v4181 = vunpack.c.h.b16 %v3526
    %v4182 = vunpack.c.l.b16 %v3527
    %v4183 = vunpack.c.h.b16 %v3527
    %v4184 = vunpack.c.l.b16 %v3528
    %v4185 = vunpack.c.h.b16 %v3528
    %v4186 = vunpack.c.l.b16 %v3529
    %v4187 = vunpack.c.h.b16 %v3529
    %v4188 = vunpack.c.l.b16 %v3530
    %v4189 = vunpack.c.h.b16 %v3530
    %v4190 = vunpack.c.l.b16 %v3531
    %v4191 = vunpack.c.h.b16 %v3531
    %v4192 = vunpack.c.l.b16 %v3532
    %v4193 = vunpack.c.h.b16 %v3532
    %v4194 = vunpack.c.l.b16 %v3533
    %v4195 = vunpack.c.h.b16 %v3533
    %v4196 = vunpack.c.l.b16 %v3534
    %v4197 = vunpack.c.h.b16 %v3534
    %v4198 = vunpack.c.l.b16 %v3535
    %v4199 = vunpack.c.h.b16 %v3535
    %v4200 = vunpack.c.l.b16 %v3536
    %v4201 = vunpack.c.h.b16 %v3536
    %v4202 = vunpack.c.l.b16 %v3537
    %v4203 = vunpack.c.h.b16 %v3537
    %v4204 = vunpack.c.l.b16 %v3538
    %v4205 = vunpack.c.h.b16 %v3538
    %v4206 = vunpack.c.l.b16 %v3539
    %v4207 = vunpack.c.h.b16 %v3539
    %v4208 = vunpack.c.l.b16 %v3540
    %v4209 = vunpack.c.h.b16 %v3540
    %v4210 = vunpack.c.l.b16 %v3541
    %v4211 = vunpack.c.h.b16 %v3541
    %v4212 = vunpack.c.l.b16 %v3542
    %v4213 = vunpack.c.h.b16 %v3542
    %v4214 = vunpack.c.l.b16 %v3543
    %v4215 = vunpack.c.h.b16 %v3543
    %v4216 = vunpack.c.l.b16 %v3544
    %v4217 = vunpack.c.h.b16 %v3544
    %v4218 = vunpack.c.l.b16 %v3545
    %v4219 = vunpack.c.h.b16 %v3545
    %v4220 = vunpack.c.l.b16 %v3546
    %v4221 = vunpack.c.h.b16 %v3546
    %v4222 = vunpack.c.l.b16 %v3547
    %v4223 = vunpack.c.h.b16 %v3547
    %v4224 = vunpack.c.l.b16 %v3548
    %v4225 = vunpack.c.h.b16 %v3548
    %v4226 = vunpack.c.l.b16 %v3549
    %v4227 = vunpack.c.h.b16 %v3549
    %v4228 = vunpack.c.l.b16 %v3550
    %v4229 = vunpack.c.h.b16 %v3550
    %v4230 = vunpack.c.l.b16 %v3551
    %v4231 = vunpack.c.h.b16 %v3551
    %v4232 = vunpack.c.l.b16 %v3552
    %v4233 = vunpack.c.h.b16 %v3552
    %v4234 = vunpack.c.l.b16 %v3553
    %v4235 = vunpack.c.h.b16 %v3553
    %v4236 = vunpack.c.l.b16 %v3554
    %v4237 = vunpack.c.h.b16 %v3554
    %v4238 = vunpack.c.l.b16 %v3555
    %v4239 = vunpack.c.h.b16 %v3555
    %v4240 = vunpack.c.l.b16 %v3556
    %v4241 = vunpack.c.h.b16 %v3556
    %v4242 = vunpack.c.l.b16 %v3557
    %v4243 = vunpack.c.h.b16 %v3557
    %v4244 = vunpack.c.l.b16 %v3558
    %v4245 = vunpack.c.h.b16 %v3558
    %v4246 = vunpack.c.l.b16 %v3559
    %v4247 = vunpack.c.h.b16 %v3559
    %v4248 = vunpack.c.l.b16 %v3560
    %v4249 = vunpack.c.h.b16 %v3560
    %v4250 = vunpack.c.l.b16 %v3561
    %v4251 = vunpack.c.h.b16 %v3561
    %v4252 = vunpack.c.l.b16 %v3562
    %v4253 = vunpack.c.h.b16 %v3562
    %v4254 = vunpack.c.l.b16 %v3563
    %v4255 = vunpack.c.h.b16 %v3563
    %v4256 = vunpack.c.l.b16 %v3564
    %v4257 = vunpack.c.h.b16 %v3564
    %v4258 = vunpack.c.l.b16 %v3565
    %v4259 = vunpack.c.h.b16 %v3565
    %v4260 = vunpack.c.l.b16 %v3566
    %v4261 = vunpack.c.h.b16 %v3566
    %v4262 = vunpack.c.l.b16 %v3567
    %v4263 = vunpack.c.h.b16 %v3567
    %v4264 = vunpack.c.l.b16 %v3568
    %v4265 = vunpack.c.h.b16 %v3568
    %v4266 = vunpack.c.l.b16 %v3569
    %v4267 = vunpack.c.h.b16 %v3569
    %v4268 = vunpack.c.l.b16 %v3570
    %v4269 = vunpack.c.h.b16 %v3570
    %v4270 = vunpack.c.l.b16 %v3571
    %v4271 = vunpack.c.h.b16 %v3571
    %v4272 = vunpack.c.l.b16 %v3572
    %v4273 = vunpack.c.h.b16 %v3572
    %v4274 = vunpack.c.l.b16 %v3573
    %v4275 = vunpack.c.h.b16 %v3573
    %v4276 = vunpack.c.l.b16 %v3574
    %v4277 = vunpack.c.h.b16 %v3574
    %v4278 = vunpack.c.l.b16 %v3575
    %v4279 = vunpack.c.h.b16 %v3575
    %v4280 = vunpack.c.l.b16 %v3576
    %v4281 = vunpack.c.h.b16 %v3576
    %v4282 = vunpack.c.l.b16 %v3577
    %v4283 = vunpack.c.h.b16 %v3577
    %v4284 = vunpack.c.l.b16 %v3578
    %v4285 = vunpack.c.h.b16 %v3578
    %v4286 = vunpack.c.l.b16 %v3579
    %v4287 = vunpack.c.h.b16 %v3579
    %v4288 = vunpack.c.l.b16 %v3580
    %v4289 = vunpack.c.h.b16 %v3580
    %v4290 = vunpack.c.l.b16 %v3581
    %v4291 = vunpack.c.h.b16 %v3581
    %v4292 = vunpack.c.l.b16 %v3582
    %v4293 = vunpack.c.h.b16 %v3582
    %v4294 = vunpack.c.l.b16 %v3583
    %v4295 = vunpack.c.h.b16 %v3583
    %v4296 = vunpack.c.l.b16 %v3584
    %v4297 = vunpack.c.h.b16 %v3584
    %v4298 = vunpack.c.l.b16 %v3585
    %v4299 = vunpack.c.h.b16 %v3585
    %v4300 = vunpack.c.l.b16 %v3586
    %v4301 = vunpack.c.h.b16 %v3586
    %v4302 = vunpack.c.l.b16 %v3587
    %v4303 = vunpack.c.h.b16 %v3587
    %v4304 = vunpack.c.l.b16 %v3588
    %v4305 = vunpack.c.h.b16 %v3588
    %v4306 = vunpack.c.l.b16 %v3589
    %v4307 = vunpack.c.h.b16 %v3589
    %v4308 = vunpack.c.l.b16 %v3590
    %v4309 = vunpack.c.h.b16 %v3590
    %v4310 = vunpack.c.l.b16 %v3591
    %v4311 = vunpack.c.h.b16 %v3591
    %v4312 = vunpack.c.l.b16 %v3592
    %v4313 = vunpack.c.h.b16 %v3592
    %v4314 = vunpack.c.l.b16 %v3593
    %v4315 = vunpack.c.h.b16 %v3593
    %v4316 = vunpack.c.l.b16 %v3594
    %v4317 = vunpack.c.h.b16 %v3594
    %v4318 = vunpack.c.l.b16 %v3595
    %v4319 = vunpack.c.h.b16 %v3595
    %v4320 = vunpack.c.l.b16 %v3596
    %v4321 = vunpack.c.h.b16 %v3596
    %v4322 = vunpack.c.l.b16 %v3597
    %v4323 = vunpack.c.h.b16 %v3597
    %v4324 = vunpack.c.l.b16 %v3598
    %v4325 = vunpack.c.h.b16 %v3598
    %v4326 = vunpack.c.l.b16 %v3599
    %v4327 = vunpack.c.h.b16 %v3599
    %v4328 = vunpack.c.l.b16 %v3600
    %v4329 = vunpack.c.h.b16 %v3600
    %v4330 = vunpack.c.l.b16 %v3601
    %v4331 = vunpack.c.h.b16 %v3601
    %v4332 = vunpack.c.l.b16 %v3602
    %v4333 = vunpack.c.h.b16 %v3602
    %v4334 = vunpack.c.l.b16 %v3603
    %v4335 = vunpack.c.h.b16 %v3603
    %v4336 = vunpack.c.l.b16 %v3604
    %v4337 = vunpack.c.h.b16 %v3604
    %v4338 = vunpack.c.l.b16 %v3605
    %v4339 = vunpack.c.h.b16 %v3605
    %v4340 = vunpack.c.l.b16 %v3606
    %v4341 = vunpack.c.h.b16 %v3606
    %v4342 = vunpack.c.l.b16 %v3607
    %v4343 = vunpack.c.h.b16 %v3607
    %v4344 = vunpack.c.l.b16 %v3608
    %v4345 = vunpack.c.h.b16 %v3608
    %v4346 = vunpack.c.l.b16 %v3609
    %v4347 = vunpack.c.h.b16 %v3609
    %v4348 = vunpack.c.l.b16 %v3610
    %v4349 = vunpack.c.h.b16 %v3610
    %v4350 = vunpack.c.l.b16 %v3611
    %v4351 = vunpack.c.h.b16 %v3611
    %v4352 = vunpack.c.l.b16 %v3612
    %v4353 = vunpack.c.h.b16 %v3612
    %v4354 = vunpack.c.l.b16 %v3613
    %v4355 = vunpack.c.h.b16 %v3613
    %v4356 = vunpack.c.l.b16 %v3614
    %v4357 = vunpack.c.h.b16 %v3614
    %v4358 = vunpack.c.l.b16 %v3615
    %v4359 = vunpack.c.h.b16 %v3615
    %v4360 = vunpack.c.l.b16 %v3616
    %v4361 = vunpack.c.h.b16 %v3616
    %v4362 = vunpack.c.l.b16 %v3617
    %v4363 = vunpack.c.h.b16 %v3617
    %v4364 = vunpack.c.l.b16 %v3618
    %v4365 = vunpack.c.h.b16 %v3618
    %v4366 = vunpack.c.l.b16 %v3619
    %v4367 = vunpack.c.h.b16 %v3619
    %v4368 = vunpack.c.l.b16 %v3620
    %v4369 = vunpack.c.h.b16 %v3620
    %v4370 = vunpack.c.l.b16 %v3621
    %v4371 = vunpack.c.h.b16 %v3621
    %v4372 = vunpack.c.l.b16 %v3622
    %v4373 = vunpack.c.h.b16 %v3622
    %v4374 = vunpack.c.l.b16 %v3623
    %v4375 = vunpack.c.h.b16 %v3623
    %v4376 = vunpack.c.l.b16 %v3624
    %v4377 = vunpack.c.h.b16 %v3624
    %v4378 = vunpack.c.l.b16 %v3625
    %v4379 = vunpack.c.h.b16 %v3625
    %v4380 = vunpack.c.l.b16 %v3626
    %v4381 = vunpack.c.h.b16 %v3626
    %v4382 = vunpack.c.l.b16 %v3627
    %v4383 = vunpack.c.h.b16 %v3627
    %v4384 = vunpack.c.l.b16 %v3628
    %v4385 = vunpack.c.h.b16 %v3628
    %v4386 = vunpack.c.l.b16 %v3629
    %v4387 = vunpack.c.h.b16 %v3629
    %v4388 = vunpack.c.l.b16 %v3630
    %v4389 = vunpack.c.h.b16 %v3630
    %v4390 = vunpack.c.l.b16 %v3631
    %v4391 = vunpack.c.h.b16 %v3631
    %v4392 = vunpack.c.l.b16 %v3632
    %v4393 = vunpack.c.h.b16 %v3632
    %v4394 = vunpack.c.l.b16 %v3633
    %v4395 = vunpack.c.h.b16 %v3633
    %v4396 = vunpack.c.l.b16 %v3634
    %v4397 = vunpack.c.h.b16 %v3634
    %v4398 = vunpack.c.l.b16 %v3635
    %v4399 = vunpack.c.h.b16 %v3635
    %v4400 = vunpack.c.l.b16 %v3636
    %v4401 = vunpack.c.h.b16 %v3636
    %v4402 = vunpack.c.l.b16 %v3637
    %v4403 = vunpack.c.h.b16 %v3637
    %v4404 = vunpack.c.l.b16 %v3638
    %v4405 = vunpack.c.h.b16 %v3638
    %v4406 = vunpack.c.l.b16 %v3639
    %v4407 = vunpack.c.h.b16 %v3639
    %v4408 = vunpack.c.l.b16 %v3640
    %v4409 = vunpack.c.h.b16 %v3640
    %v4410 = vunpack.c.l.b16 %v3641
    %v4411 = vunpack.c.h.b16 %v3641
    %v4412 = vunpack.c.l.b16 %v3642
    %v4413 = vunpack.c.h.b16 %v3642
    %v4414 = vunpack.c.l.b16 %v3643
    %v4415 = vunpack.c.h.b16 %v3643
    %v4416 = vunpack.c.l.b16 %v3644
    %v4417 = vunpack.c.h.b16 %v3644
    %v4418 = vunpack.c.l.b16 %v3645
    %v4419 = vunpack.c.h.b16 %v3645
    %v4420 = vunpack.c.l.b16 %v3646
    %v4421 = vunpack.c.h.b16 %v3646
    %v4422 = vunpack.c.l.b16 %v3647
    %v4423 = vunpack.c.h.b16 %v3647
    %v4424 = vunpack.c.l.b16 %v3648
    %v4425 = vunpack.c.h.b16 %v3648
    %v4426 = vunpack.c.l.b16 %v3649
    %v4427 = vunpack.c.h.b16 %v3649
    %v4428 = vpack.c.b16 %v3920, %v3916
    %v4429 = vpack.c.b16 %v3921, %v3917
    %v4430 = vpack.c.b16 %v3922, %v3918
    %v4431 = vpack.c.b16 %v3923, %v3919
    %v4432 = vpack.c.b16 %v3928, %v3924
    %v4433 = vpack.c.b16 %v3929, %v3925
    %v4434 = vpack.c.b16 %v3930, %v3926
    %v4435 = vpack.c.b16 %v3931, %v3927
    %v4436 = vpack.c.b16 %v3936, %v3932
    %v4437 = vpack.c.b16 %v3937, %v3933
    %v4438 = vpack.c.b16 %v3938, %v3934
    %v4439 = vpack.c.b16 %v3939, %v3935
    %v4440 = vpack.c.b16 %v3944, %v3940
    %v4441 = vpack.c.b16 %v3945, %v3941
    %v4442 = vpack.c.b16 %v3946, %v3942
    %v4443 = vpack.c.b16 %v3947, %v3943
    %v4444 = vpack.c.b16 %v3952, %v3948
    %v4445 = vpack.c.b16 %v3953, %v3949
    %v4446 = vpack.c.b16 %v3954, %v3950
    %v4447 = vpack.c.b16 %v3955, %v3951
    %v4448 = vpack.c.b16 %v3960, %v3956
    %v4449 = vpack.c.b16 %v3961, %v3957
    %v4450 = vpack.c.b16 %v3962, %v3958
    %v4451 = vpack.c.b16 %v3963, %v3959
    %v4452 = vpack.c.b16 %v3968, %v3964
    %v4453 = vpack.c.b16 %v3969, %v3965
    %v4454 = vpack.c.b16 %v3970, %v3966
    %v4455 = vpack.c.b16 %v3971, %v3967
    %v4456 = vpack.c.b16 %v3976, %v3972
    %v4457 = vpack.c.b16 %v3977, %v3973
    %v4458 = vpack.c.b16 %v3978, %v3974
    %v4459 = vpack.c.b16 %v3979, %v3975
    %v4460 = vpack.c.b16 %v3984, %v3980
    %v4461 = vpack.c.b16 %v3985, %v3981
    %v4462 = vpack.c.b16 %v3986, %v3982
    %v4463 = vpack.c.b16 %v3987, %v3983
    %v4464 = vpack.c.b16 %v3992, %v3988
    %v4465 = vpack.c.b16 %v3993, %v3989
    %v4466 = vpack.c.b16 %v3994, %v3990
    %v4467 = vpack.c.b16 %v3995, %v3991
    %v4468 = vpack.c.b16 %v4000, %v3996
    %v4469 = vpack.c.b16 %v4001, %v3997
    %v4470 = vpack.c.b16 %v4002, %v3998
    %v4471 = vpack.c.b16 %v4003, %v3999
    %v4472 = vpack.c.b16 %v4008, %v4004
    %v4473 = vpack.c.b16 %v4009, %v4005
    %v4474 = vpack.c.b16 %v4010, %v4006
    %v4475 = vpack.c.b16 %v4011, %v4007
    %v4476 = vpack.c.b16 %v4016, %v4012
    %v4477 = vpack.c.b16 %v4017, %v4013
    %v4478 = vpack.c.b16 %v4018, %v4014
    %v4479 = vpack.c.b16 %v4019, %v4015
    %v4480 = vpack.c.b16 %v4024, %v4020
    %v4481 = vpack.c.b16 %v4025, %v4021
    %v4482 = vpack.c.b16 %v4026, %v4022
    %v4483 = vpack.c.b16 %v4027, %v4023
    %v4484 = vpack.c.b16 %v4032, %v4028
    %v4485 = vpack.c.b16 %v4033, %v4029
    %v4486 = vpack.c.b16 %v4034, %v4030
    %v4487 = vpack.c.b16 %v4035, %v4031
    %v4488 = vpack.c.b16 %v4040, %v4036
    %v4489 = vpack.c.b16 %v4041, %v4037
    %v4490 = vpack.c.b16 %v4042, %v4038
    %v4491 = vpack.c.b16 %v4043, %v4039
    %v4492 = vpack.c.b16 %v4048, %v4044
    %v4493 = vpack.c.b16 %v4049, %v4045
    %v4494 = vpack.c.b16 %v4050, %v4046
    %v4495 = vpack.c.b16 %v4051, %v4047
    %v4496 = vpack.c.b16 %v4056, %v4052
    %v4497 = vpack.c.b16 %v4057, %v4053
    %v4498 = vpack.c.b16 %v4058, %v4054
    %v4499 = vpack.c.b16 %v4059, %v4055
    %v4500 = vpack.c.b16 %v4064, %v4060
    %v4501 = vpack.c.b16 %v4065, %v4061
    %v4502 = vpack.c.b16 %v4066, %v4062
    %v4503 = vpack.c.b16 %v4067, %v4063
    %v4504 = vpack.c.b16 %v4072, %v4068
    %v4505 = vpack.c.b16 %v4073, %v4069
    %v4506 = vpack.c.b16 %v4074, %v4070
    %v4507 = vpack.c.b16 %v4075, %v4071
    %v4508 = vpack.c.b16 %v4080, %v4076
    %v4509 = vpack.c.b16 %v4081, %v4077
    %v4510 = vpack.c.b16 %v4082, %v4078
    %v4511 = vpack.c.b16 %v4083, %v4079
    %v4512 = vpack.c.b16 %v4088, %v4084
    %v4513 = vpack.c.b16 %v4089, %v4085
    %v4514 = vpack.c.b16 %v4090, %v4086
    %v4515 = vpack.c.b16 %v4091, %v4087
    %v4516 = vpack.c.b16 %v4096, %v4092
    %v4517 = vpack.c.b16 %v4097, %v4093
    %v4518 = vpack.c.b16 %v4098, %v4094
    %v4519 = vpack.c.b16 %v4099, %v4095
    %v4520 = vpack.c.b16 %v4104, %v4100
    %v4521 = vpack.c.b16 %v4105, %v4101
    %v4522 = vpack.c.b16 %v4106, %v4102
    %v4523 = vpack.c.b16 %v4107, %v4103
    %v4524 = vpack.c.b16 %v4112, %v4108
    %v4525 = vpack.c.b16 %v4113, %v4109
    %v4526 = vpack.c.b16 %v4114, %v4110
    %v4527 = vpack.c.b16 %v4115, %v4111
    %v4528 = vpack.c.b16 %v4120, %v4116
    %v4529 = vpack.c.b16 %v4121, %v4117
    %v4530 = vpack.c.b16 %v4122, %v4118
    %v4531 = vpack.c.b16 %v4123, %v4119
    %v4532 = vpack.c.b16 %v4128, %v4124
    %v4533 = vpack.c.b16 %v4129, %v4125
    %v4534 = vpack.c.b16 %v4130, %v4126
    %v4535 = vpack.c.b16 %v4131, %v4127
    %v4536 = vpack.c.b16 %v4136, %v4132
    %v4537 = vpack.c.b16 %v4137, %v4133
    %v4538 = vpack.c.b16 %v4138, %v4134
    %v4539 = vpack.c.b16 %v4139, %v4135
    %v4540 = vpack.c.b16 %v4144, %v4140
    %v4541 = vpack.c.b16 %v4145, %v4141
    %v4542 = vpack.c.b16 %v4146, %v4142
    %v4543 = vpack.c.b16 %v4147, %v4143
    %v4544 = vpack.c.b16 %v4152, %v4148
    %v4545 = vpack.c.b16 %v4153, %v4149
    %v4546 = vpack.c.b16 %v4154, %v4150
    %v4547 = vpack.c.b16 %v4155, %v4151
    %v4548 = vpack.c.b16 %v4160, %v4156
    %v4549 = vpack.c.b16 %v4161, %v4157
    %v4550 = vpack.c.b16 %v4162, %v4158
    %v4551 = vpack.c.b16 %v4163, %v4159
    %v4552 = vpack.c.b16 %v4168, %v4164
    %v4553 = vpack.c.b16 %v4169, %v4165
    %v4554 = vpack.c.b16 %v4170, %v4166
    %v4555 = vpack.c.b16 %v4171, %v4167
    %v4556 = vpack.c.b16 %v4176, %v4172
    %v4557 = vpack.c.b16 %v4177, %v4173
    %v4558 = vpack.c.b16 %v4178, %v4174
    %v4559 = vpack.c.b16 %v4179, %v4175
    %v4560 = vpack.c.b16 %v4184, %v4180
    %v4561 = vpack.c.b16 %v4185, %v4181
    %v4562 = vpack.c.b16 %v4186, %v4182
    %v4563 = vpack.c.b16 %v4187, %v4183
    %v4564 = vpack.c.b16 %v4192, %v4188
    %v4565 = vpack.c.b16 %v4193, %v4189
    %v4566 = vpack.c.b16 %v4194, %v4190
    %v4567 = vpack.c.b16 %v4195, %v4191
    %v4568 = vpack.c.b16 %v4200, %v4196
    %v4569 = vpack.c.b16 %v4201, %v4197
    %v4570 = vpack.c.b16 %v4202, %v4198
    %v4571 = vpack.c.b16 %v4203, %v4199
    %v4572 = vpack.c.b16 %v4208, %v4204
    %v4573 = vpack.c.b16 %v4209, %v4205
    %v4574 = vpack.c.b16 %v4210, %v4206
    %v4575 = vpack.c.b16 %v4211, %v4207
    %v4576 = vpack.c.b16 %v4216, %v4212
    %v4577 = vpack.c.b16 %v4217, %v4213
    %v4578 = vpack.c.b16 %v4218, %v4214
    %v4579 = vpack.c.b16 %v4219, %v4215
    %v4580 = vpack.c.b16 %v4224, %v4220
    %v4581 = vpack.c.b16 %v4225, %v4221
    %v4582 = vpack.c.b16 %v4226, %v4222
    %v4583 = vpack.c.b16 %v4227, %v4223
    %v4584 = vpack.c.b16 %v4232, %v4228
    %v4585 = vpack.c.b16 %v4233, %v4229
    %v4586 = vpack.c.b16 %v4234, %v4230
    %v4587 = vpack.c.b16 %v4235, %v4231
    %v4588 = vpack.c.b16 %v4240, %v4236
    %v4589 = vpack.c.b16 %v4241, %v4237
    %v4590 = vpack.c.b16 %v4242, %v4238
    %v4591 = vpack.c.b16 %v4243, %v4239
    %v4592 = vpack.c.b16 %v4248, %v4244
    %v4593 = vpack.c.b16 %v4249, %v4245
    %v4594 = vpack.c.b16 %v4250, %v4246
    %v4595 = vpack.c.b16 %v4251, %v4247
    %v4596 = vpack.c.b16 %v4256, %v4252
    %v4597 = vpack.c.b16 %v4257, %v4253
    %v4598 = vpack.c.b16 %v4258, %v4254
    %v4599 = vpack.c.b16 %v4259, %v4255
    %v4600 = vpack.c.b16 %v4264, %v4260
    %v4601 = vpack.c.b16 %v4265, %v4261
    %v4602 = vpack.c.b16 %v4266, %v4262
    %v4603 = vpack.c.b16 %v4267, %v4263
    %v4604 = vpack.c.b16 %v4272, %v4268
    %v4605 = vpack.c.b16 %v4273, %v4269
    %v4606 = vpack.c.b16 %v4274, %v4270
    %v4607 = vpack.c.b16 %v4275, %v4271
    %v4608 = vpack.c.b16 %v4280, %v4276
    %v4609 = vpack.c.b16 %v4281, %v4277
    %v4610 = vpack.c.b16 %v4282, %v4278
    %v4611 = vpack.c.b16 %v4283, %v4279
    %v4612 = vpack.c.b16 %v4288, %v4284
    %v4613 = vpack.c.b16 %v4289, %v4285
    %v4614 = vpack.c.b16 %v4290, %v4286
    %v4615 = vpack.c.b16 %v4291, %v4287
    %v4616 = vpack.c.b16 %v4296, %v4292
    %v4617 = vpack.c.b16 %v4297, %v4293
    %v4618 = vpack.c.b16 %v4298, %v4294
    %v4619 = vpack.c.b16 %v4299, %v4295
    %v4620 = vpack.c.b16 %v4304, %v4300
    %v4621 = vpack.c.b16 %v4305, %v4301
    %v4622 = vpack.c.b16 %v4306, %v4302
    %v4623 = vpack.c.b16 %v4307, %v4303
    %v4624 = vpack.c.b16 %v4312, %v4308
    %v4625 = vpack.c.b16 %v4313, %v4309
    %v4626 = vpack.c.b16 %v4314, %v4310
    %v4627 = vpack.c.b16 %v4315, %v4311
    %v4628 = vpack.c.b16 %v4320, %v4316
    %v4629 = vpack.c.b16 %v4321, %v4317
    %v4630 = vpack.c.b16 %v4322, %v4318
    %v4631 = vpack.c.b16 %v4323, %v4319
    %v4632 = vpack.c.b16 %v4328, %v4324
    %v4633 = vpack.c.b16 %v4329, %v4325
    %v4634 = vpack.c.b16 %v4330, %v4326
    %v4635 = vpack.c.b16 %v4331, %v4327
    %v4636 = vpack.c.b16 %v4336, %v4332
    %v4637 = vpack.c.b16 %v4337, %v4333
    %v4638 = vpack.c.b16 %v4338, %v4334
    %v4639 = vpack.c.b16 %v4339, %v4335
    %v4640 = vpack.c.b16 %v4344, %v4340
    %v4641 = vpack.c.b16 %v4345, %v4341
    %v4642 = vpack.c.b16 %v4346, %v4342
    %v4643 = vpack.c.b16 %v4347, %v4343
    %v4644 = vpack.c.b16 %v4352, %v4348
    %v4645 = vpack.c.b16 %v4353, %v4349
    %v4646 = vpack.c.b16 %v4354, %v4350
    %v4647 = vpack.c.b16 %v4355, %v4351
    %v4648 = vpack.c.b16 %v4360, %v4356
    %v4649 = vpack.c.b16 %v4361, %v4357
    %v4650 = vpack.c.b16 %v4362, %v4358
    %v4651 = vpack.c.b16 %v4363, %v4359
    %v4652 = vpack.c.b16 %v4368, %v4364
    %v4653 = vpack.c.b16 %v4369, %v4365
    %v4654 = vpack.c.b16 %v4370, %v4366
    %v4655 = vpack.c.b16 %v4371, %v4367
    %v4656 = vpack.c.b16 %v4376, %v4372
    %v4657 = vpack.c.b16 %v4377, %v4373
    %v4658 = vpack.c.b16 %v4378, %v4374
    %v4659 = vpack.c.b16 %v4379, %v4375
    %v4660 = vpack.c.b16 %v4384, %v4380
    %v4661 = vpack.c.b16 %v4385, %v4381
    %v4662 = vpack.c.b16 %v4386, %v4382
    %v4663 = vpack.c.b16 %v4387, %v4383
    %v4664 = vpack.c.b16 %v4392, %v4388
    %v4665 = vpack.c.b16 %v4393, %v4389
    %v4666 = vpack.c.b16 %v4394, %v4390
    %v4667 = vpack.c.b16 %v4395, %v4391
    %v4668 = vpack.c.b16 %v4400, %v4396
    %v4669 = vpack.c.b16 %v4401, %v4397
    %v4670 = vpack.c.b16 %v4402, %v4398
    %v4671 = vpack.c.b16 %v4403, %v4399
    %v4672 = vpack.c.b16 %v4408, %v4404
    %v4673 = vpack.c.b16 %v4409, %v4405
    %v4674 = vpack.c.b16 %v4410, %v4406
    %v4675 = vpack.c.b16 %v4411, %v4407
    %v4676 = vpack.c.b16 %v4416, %v4412
    %v4677 = vpack.c.b16 %v4417, %v4413
    %v4678 = vpack.c.b16 %v4418, %v4414
    %v4679 = vpack.c.b16 %v4419, %v4415
    %v4680 = vpack.c.b16 %v4424, %v4420
    %v4681 = vpack.c.b16 %v4425, %v4421
    %v4682 = vpack.c.b16 %v4426, %v4422
    %v4683 = vpack.c.b16 %v4427, %v4423
    %4940 = vmatpush.bf16.msra.mxu0 %v4456
    %4941 = vmatpush.bf16.msra.mxu0 %v4452
    %4942 = vmatpush.bf16.msra.mxu0 %v4448
    %4943 = vmatpush.bf16.msra.mxu0 %v4444
    %4944 = vmatpush.bf16.msra.mxu0 %v4440
    %4945 = vmatpush.bf16.msra.mxu0 %v4436
    %4946 = vmatpush.bf16.msra.mxu0 %v4432
    %4947 = vmatpush.bf16.msra.mxu0 %v4428
    %4948 = vmatmul.bf16.gmra.mxu0 %v3386
    %v4949 = vpop.f32.mrf.mxu0
    %v4950 = vadd.f32 %v3652, %v4949
    %v4951 = vpop.f32.mrf.mxu0
    %4952 = vdwg.mxu0
    %4953 = vmatpush.bf16.msra.mxu0 %v4488
    %4954 = vmatpush.bf16.msra.mxu0 %v4484
    %4955 = vmatpush.bf16.msra.mxu0 %v4480
    %4956 = vmatpush.bf16.msra.mxu0 %v4476
    %4957 = vmatpush.bf16.msra.mxu0 %v4472
    %4958 = vmatpush.bf16.msra.mxu0 %v4468
    %4959 = vmatpush.bf16.msra.mxu0 %v4464
    %4960 = vmatpush.bf16.msra.mxu0 %v4460
    %4961 = vmatmul.bf16.gmra.mxu0 %v3387
    %v4962 = vpop.f32.mrf.mxu0
    %v4963 = vadd.f32 %v4950, %v4962
    %v4964 = vpop.f32.mrf.mxu0
    %4965 = vdwg.mxu0
    %4966 = vmatpush.bf16.msra.mxu0 %v4520
    %4967 = vmatpush.bf16.msra.mxu0 %v4516
    %4968 = vmatpush.bf16.msra.mxu0 %v4512
    %4969 = vmatpush.bf16.msra.mxu0 %v4508
    %4970 = vmatpush.bf16.msra.mxu0 %v4504
    %4971 = vmatpush.bf16.msra.mxu0 %v4500
    %4972 = vmatpush.bf16.msra.mxu0 %v4496
    %4973 = vmatpush.bf16.msra.mxu0 %v4492
    %4974 = vmatmul.bf16.gmra.mxu0 %v3388
    %v4975 = vpop.f32.mrf.mxu0
    %v4976 = vadd.f32 %v4963, %v4975
    %v4977 = vpop.f32.mrf.mxu0
    %4978 = vdwg.mxu0
    %4979 = vmatpush.bf16.msra.mxu0 %v4552
    %4980 = vmatpush.bf16.msra.mxu0 %v4548
    %4981 = vmatpush.bf16.msra.mxu0 %v4544
    %4982 = vmatpush.bf16.msra.mxu0 %v4540
    %4983 = vmatpush.bf16.msra.mxu0 %v4536
    %4984 = vmatpush.bf16.msra.mxu0 %v4532
    %4985 = vmatpush.bf16.msra.mxu0 %v4528
    %4986 = vmatpush.bf16.msra.mxu0 %v4524
    %4987 = vmatmul.bf16.gmra.mxu0 %v3389
    %v4988 = vpop.f32.mrf.mxu0
    %v4989 = vadd.f32 %v4976, %v4988
    %v4990 = vpop.f32.mrf.mxu0
    %4991 = vdwg.mxu0
    %4992 = vmatpush.bf16.msra.mxu0 %v4584
    %4993 = vmatpush.bf16.msra.mxu0 %v4580
    %4994 = vmatpush.bf16.msra.mxu0 %v4576
    %4995 = vmatpush.bf16.msra.mxu0 %v4572
    %4996 = vmatpush.bf16.msra.mxu0 %v4568
    %4997 = vmatpush.bf16.msra.mxu0 %v4564
    %4998 = vmatpush.bf16.msra.mxu0 %v4560
    %4999 = vmatpush.bf16.msra.mxu0 %v4556
    %5000 = vmatmul.bf16.gmra.mxu0 %v3390
    %v5001 = vpop.f32.mrf.mxu0
    %v5002 = vadd.f32 %v4989, %v5001
    %v5003 = vpop.f32.mrf.mxu0
    %5004 = vdwg.mxu0
    %5005 = vmatpush.bf16.msra.mxu0 %v4616
    %5006 = vmatpush.bf16.msra.mxu0 %v4612
    %5007 = vmatpush.bf16.msra.mxu0 %v4608
    %5008 = vmatpush.bf16.msra.mxu0 %v4604
    %5009 = vmatpush.bf16.msra.mxu0 %v4600
    %5010 = vmatpush.bf16.msra.mxu0 %v4596
    %5011 = vmatpush.bf16.msra.mxu0 %v4592
    %5012 = vmatpush.bf16.msra.mxu0 %v4588
    %5013 = vmatmul.bf16.gmra.mxu0 %v3391
    %v5014 = vpop.f32.mrf.mxu0
    %v5015 = vadd.f32 %v5002, %v5014
    %v5016 = vpop.f32.mrf.mxu0
    %5017 = vdwg.mxu0
    %5018 = vmatpush.bf16.msra.mxu0 %v4648
    %5019 = vmatpush.bf16.msra.mxu0 %v4644
    %5020 = vmatpush.bf16.msra.mxu0 %v4640
    %5021 = vmatpush.bf16.msra.mxu0 %v4636
    %5022 = vmatpush.bf16.msra.mxu0 %v4632
    %5023 = vmatpush.bf16.msra.mxu0 %v4628
    %5024 = vmatpush.bf16.msra.mxu0 %v4624
    %5025 = vmatpush.bf16.msra.mxu0 %v4620
    %5026 = vmatmul.bf16.gmra.mxu0 %v3392
    %v5027 = vpop.f32.mrf.mxu0
    %v5028 = vadd.f32 %v5015, %v5027
    %v5029 = vpop.f32.mrf.mxu0
    %5030 = vdwg.mxu0
    %5031 = vmatpush.bf16.msra.mxu0 %v4680
    %5032 = vmatpush.bf16.msra.mxu0 %v4676
    %5033 = vmatpush.bf16.msra.mxu0 %v4672
    %5034 = vmatpush.bf16.msra.mxu0 %v4668
    %5035 = vmatpush.bf16.msra.mxu0 %v4664
    %5036 = vmatpush.bf16.msra.mxu0 %v4660
    %5037 = vmatpush.bf16.msra.mxu0 %v4656
    %5038 = vmatpush.bf16.msra.mxu0 %v4652
    %5039 = vmatmul.bf16.gmra.mxu0 %v3393
    %v5040 = vpop.f32.mrf.mxu0
    %v5041 = vadd.f32 %v5028, %v5040
    %v5042 = vpop.f32.mrf.mxu0
    %5043 = vdwg.mxu0
    %5044 = vmatpush.bf16.msra.mxu0 %v4457
    %5045 = vmatpush.bf16.msra.mxu0 %v4453
    %5046 = vmatpush.bf16.msra.mxu0 %v4449
    %5047 = vmatpush.bf16.msra.mxu0 %v4445
    %5048 = vmatpush.bf16.msra.mxu0 %v4441
    %5049 = vmatpush.bf16.msra.mxu0 %v4437
    %5050 = vmatpush.bf16.msra.mxu0 %v4433
    %5051 = vmatpush.bf16.msra.mxu0 %v4429
    %5052 = vmatmul.bf16.gmra.mxu0 %v3386
    %v5053 = vpop.f32.mrf.mxu0
    %v5054 = vadd.f32 %v3653, %v5053
    %v5055 = vpop.f32.mrf.mxu0
    %5056 = vdwg.mxu0
    %5057 = vmatpush.bf16.msra.mxu0 %v4489
    %5058 = vmatpush.bf16.msra.mxu0 %v4485
    %5059 = vmatpush.bf16.msra.mxu0 %v4481
    %5060 = vmatpush.bf16.msra.mxu0 %v4477
    %5061 = vmatpush.bf16.msra.mxu0 %v4473
    %5062 = vmatpush.bf16.msra.mxu0 %v4469
    %5063 = vmatpush.bf16.msra.mxu0 %v4465
    %5064 = vmatpush.bf16.msra.mxu0 %v4461
    %5065 = vmatmul.bf16.gmra.mxu0 %v3387
    %v5066 = vpop.f32.mrf.mxu0
    %v5067 = vadd.f32 %v5054, %v5066
    %v5068 = vpop.f32.mrf.mxu0
    %5069 = vdwg.mxu0
    %5070 = vmatpush.bf16.msra.mxu0 %v4521
    %5071 = vmatpush.bf16.msra.mxu0 %v4517
    %5072 = vmatpush.bf16.msra.mxu0 %v4513
    %5073 = vmatpush.bf16.msra.mxu0 %v4509
    %5074 = vmatpush.bf16.msra.mxu0 %v4505
    %5075 = vmatpush.bf16.msra.mxu0 %v4501
    %5076 = vmatpush.bf16.msra.mxu0 %v4497
    %5077 = vmatpush.bf16.msra.mxu0 %v4493
    %5078 = vmatmul.bf16.gmra.mxu0 %v3388
    %v5079 = vpop.f32.mrf.mxu0
    %v5080 = vadd.f32 %v5067, %v5079
    %v5081 = vpop.f32.mrf.mxu0
    %5082 = vdwg.mxu0
    %5083 = vmatpush.bf16.msra.mxu0 %v4553
    %5084 = vmatpush.bf16.msra.mxu0 %v4549
    %5085 = vmatpush.bf16.msra.mxu0 %v4545
    %5086 = vmatpush.bf16.msra.mxu0 %v4541
    %5087 = vmatpush.bf16.msra.mxu0 %v4537
    %5088 = vmatpush.bf16.msra.mxu0 %v4533
    %5089 = vmatpush.bf16.msra.mxu0 %v4529
    %5090 = vmatpush.bf16.msra.mxu0 %v4525
    %5091 = vmatmul.bf16.gmra.mxu0 %v3389
    %v5092 = vpop.f32.mrf.mxu0
    %v5093 = vadd.f32 %v5080, %v5092
    %v5094 = vpop.f32.mrf.mxu0
    %5095 = vdwg.mxu0
    %5096 = vmatpush.bf16.msra.mxu0 %v4585
    %5097 = vmatpush.bf16.msra.mxu0 %v4581
    %5098 = vmatpush.bf16.msra.mxu0 %v4577
    %5099 = vmatpush.bf16.msra.mxu0 %v4573
    %5100 = vmatpush.bf16.msra.mxu0 %v4569
    %5101 = vmatpush.bf16.msra.mxu0 %v4565
    %5102 = vmatpush.bf16.msra.mxu0 %v4561
    %5103 = vmatpush.bf16.msra.mxu0 %v4557
    %5104 = vmatmul.bf16.gmra.mxu0 %v3390
    %v5105 = vpop.f32.mrf.mxu0
    %v5106 = vadd.f32 %v5093, %v5105
    %v5107 = vpop.f32.mrf.mxu0
    %5108 = vdwg.mxu0
    %5109 = vmatpush.bf16.msra.mxu0 %v4617
    %5110 = vmatpush.bf16.msra.mxu0 %v4613
    %5111 = vmatpush.bf16.msra.mxu0 %v4609
    %5112 = vmatpush.bf16.msra.mxu0 %v4605
    %5113 = vmatpush.bf16.msra.mxu0 %v4601
    %5114 = vmatpush.bf16.msra.mxu0 %v4597
    %5115 = vmatpush.bf16.msra.mxu0 %v4593
    %5116 = vmatpush.bf16.msra.mxu0 %v4589
    %5117 = vmatmul.bf16.gmra.mxu0 %v3391
    %v5118 = vpop.f32.mrf.mxu0
    %v5119 = vadd.f32 %v5106, %v5118
    %v5120 = vpop.f32.mrf.mxu0
    %5121 = vdwg.mxu0
    %5122 = vmatpush.bf16.msra.mxu0 %v4649
    %5123 = vmatpush.bf16.msra.mxu0 %v4645
    %5124 = vmatpush.bf16.msra.mxu0 %v4641
    %5125 = vmatpush.bf16.msra.mxu0 %v4637
    %5126 = vmatpush.bf16.msra.mxu0 %v4633
    %5127 = vmatpush.bf16.msra.mxu0 %v4629
    %5128 = vmatpush.bf16.msra.mxu0 %v4625
    %5129 = vmatpush.bf16.msra.mxu0 %v4621
    %5130 = vmatmul.bf16.gmra.mxu0 %v3392
    %v5131 = vpop.f32.mrf.mxu0
    %v5132 = vadd.f32 %v5119, %v5131
    %v5133 = vpop.f32.mrf.mxu0
    %5134 = vdwg.mxu0
    %5135 = vmatpush.bf16.msra.mxu0 %v4681
    %5136 = vmatpush.bf16.msra.mxu0 %v4677
    %5137 = vmatpush.bf16.msra.mxu0 %v4673
    %5138 = vmatpush.bf16.msra.mxu0 %v4669
    %5139 = vmatpush.bf16.msra.mxu0 %v4665
    %5140 = vmatpush.bf16.msra.mxu0 %v4661
    %5141 = vmatpush.bf16.msra.mxu0 %v4657
    %5142 = vmatpush.bf16.msra.mxu0 %v4653
    %5143 = vmatmul.bf16.gmra.mxu0 %v3393
    %v5144 = vpop.f32.mrf.mxu0
    %v5145 = vadd.f32 %v5132, %v5144
    %v5146 = vpop.f32.mrf.mxu0
    %5147 = vdwg.mxu0
    %5148 = vmatpush.bf16.msra.mxu0 %v4458
    %5149 = vmatpush.bf16.msra.mxu0 %v4454
    %5150 = vmatpush.bf16.msra.mxu0 %v4450
    %5151 = vmatpush.bf16.msra.mxu0 %v4446
    %5152 = vmatpush.bf16.msra.mxu0 %v4442
    %5153 = vmatpush.bf16.msra.mxu0 %v4438
    %5154 = vmatpush.bf16.msra.mxu0 %v4434
    %5155 = vmatpush.bf16.msra.mxu0 %v4430
    %5156 = vmatmul.bf16.gmra.mxu0 %v3386
    %v5157 = vpop.f32.mrf.mxu0
    %v5158 = vadd.f32 %v3654, %v5157
    %v5159 = vpop.f32.mrf.mxu0
    %5160 = vdwg.mxu0
    %5161 = vmatpush.bf16.msra.mxu0 %v4490
    %5162 = vmatpush.bf16.msra.mxu0 %v4486
    %5163 = vmatpush.bf16.msra.mxu0 %v4482
    %5164 = vmatpush.bf16.msra.mxu0 %v4478
    %5165 = vmatpush.bf16.msra.mxu0 %v4474
    %5166 = vmatpush.bf16.msra.mxu0 %v4470
    %5167 = vmatpush.bf16.msra.mxu0 %v4466
    %5168 = vmatpush.bf16.msra.mxu0 %v4462
    %5169 = vmatmul.bf16.gmra.mxu0 %v3387
    %v5170 = vpop.f32.mrf.mxu0
    %v5171 = vadd.f32 %v5158, %v5170
    %v5172 = vpop.f32.mrf.mxu0
    %5173 = vdwg.mxu0
    %5174 = vmatpush.bf16.msra.mxu0 %v4522
    %5175 = vmatpush.bf16.msra.mxu0 %v4518
    %5176 = vmatpush.bf16.msra.mxu0 %v4514
    %5177 = vmatpush.bf16.msra.mxu0 %v4510
    %5178 = vmatpush.bf16.msra.mxu0 %v4506
    %5179 = vmatpush.bf16.msra.mxu0 %v4502
    %5180 = vmatpush.bf16.msra.mxu0 %v4498
    %5181 = vmatpush.bf16.msra.mxu0 %v4494
    %5182 = vmatmul.bf16.gmra.mxu0 %v3388
    %v5183 = vpop.f32.mrf.mxu0
    %v5184 = vadd.f32 %v5171, %v5183
    %v5185 = vpop.f32.mrf.mxu0
    %5186 = vdwg.mxu0
    %5187 = vmatpush.bf16.msra.mxu0 %v4554
    %5188 = vmatpush.bf16.msra.mxu0 %v4550
    %5189 = vmatpush.bf16.msra.mxu0 %v4546
    %5190 = vmatpush.bf16.msra.mxu0 %v4542
    %5191 = vmatpush.bf16.msra.mxu0 %v4538
    %5192 = vmatpush.bf16.msra.mxu0 %v4534
    %5193 = vmatpush.bf16.msra.mxu0 %v4530
    %5194 = vmatpush.bf16.msra.mxu0 %v4526
    %5195 = vmatmul.bf16.gmra.mxu0 %v3389
    %v5196 = vpop.f32.mrf.mxu0
    %v5197 = vadd.f32 %v5184, %v5196
    %v5198 = vpop.f32.mrf.mxu0
    %5199 = vdwg.mxu0
    %5200 = vmatpush.bf16.msra.mxu0 %v4586
    %5201 = vmatpush.bf16.msra.mxu0 %v4582
    %5202 = vmatpush.bf16.msra.mxu0 %v4578
    %5203 = vmatpush.bf16.msra.mxu0 %v4574
    %5204 = vmatpush.bf16.msra.mxu0 %v4570
    %5205 = vmatpush.bf16.msra.mxu0 %v4566
    %5206 = vmatpush.bf16.msra.mxu0 %v4562
    %5207 = vmatpush.bf16.msra.mxu0 %v4558
    %5208 = vmatmul.bf16.gmra.mxu0 %v3390
    %v5209 = vpop.f32.mrf.mxu0
    %v5210 = vadd.f32 %v5197, %v5209
    %v5211 = vpop.f32.mrf.mxu0
    %5212 = vdwg.mxu0
    %5213 = vmatpush.bf16.msra.mxu0 %v4618
    %5214 = vmatpush.bf16.msra.mxu0 %v4614
    %5215 = vmatpush.bf16.msra.mxu0 %v4610
    %5216 = vmatpush.bf16.msra.mxu0 %v4606
    %5217 = vmatpush.bf16.msra.mxu0 %v4602
    %5218 = vmatpush.bf16.msra.mxu0 %v4598
    %5219 = vmatpush.bf16.msra.mxu0 %v4594
    %5220 = vmatpush.bf16.msra.mxu0 %v4590
    %5221 = vmatmul.bf16.gmra.mxu0 %v3391
    %v5222 = vpop.f32.mrf.mxu0
    %v5223 = vadd.f32 %v5210, %v5222
    %v5224 = vpop.f32.mrf.mxu0
    %5225 = vdwg.mxu0
    %5226 = vmatpush.bf16.msra.mxu0 %v4650
    %5227 = vmatpush.bf16.msra.mxu0 %v4646
    %5228 = vmatpush.bf16.msra.mxu0 %v4642
    %5229 = vmatpush.bf16.msra.mxu0 %v4638
    %5230 = vmatpush.bf16.msra.mxu0 %v4634
    %5231 = vmatpush.bf16.msra.mxu0 %v4630
    %5232 = vmatpush.bf16.msra.mxu0 %v4626
    %5233 = vmatpush.bf16.msra.mxu0 %v4622
    %5234 = vmatmul.bf16.gmra.mxu0 %v3392
    %v5235 = vpop.f32.mrf.mxu0
    %v5236 = vadd.f32 %v5223, %v5235
    %v5237 = vpop.f32.mrf.mxu0
    %5238 = vdwg.mxu0
    %5239 = vmatpush.bf16.msra.mxu0 %v4682
    %5240 = vmatpush.bf16.msra.mxu0 %v4678
    %5241 = vmatpush.bf16.msra.mxu0 %v4674
    %5242 = vmatpush.bf16.msra.mxu0 %v4670
    %5243 = vmatpush.bf16.msra.mxu0 %v4666
    %5244 = vmatpush.bf16.msra.mxu0 %v4662
    %5245 = vmatpush.bf16.msra.mxu0 %v4658
    %5246 = vmatpush.bf16.msra.mxu0 %v4654
    %5247 = vmatmul.bf16.gmra.mxu0 %v3393
    %v5248 = vpop.f32.mrf.mxu0
    %v5249 = vadd.f32 %v5236, %v5248
    %v5250 = vpop.f32.mrf.mxu0
    %5251 = vdwg.mxu0
    %5252 = vmatpush.bf16.msra.mxu0 %v4459
    %5253 = vmatpush.bf16.msra.mxu0 %v4455
    %5254 = vmatpush.bf16.msra.mxu0 %v4451
    %5255 = vmatpush.bf16.msra.mxu0 %v4447
    %5256 = vmatpush.bf16.msra.mxu0 %v4443
    %5257 = vmatpush.bf16.msra.mxu0 %v4439
    %5258 = vmatpush.bf16.msra.mxu0 %v4435
    %5259 = vmatpush.bf16.msra.mxu0 %v4431
    %5260 = vmatmul.bf16.gmra.mxu0 %v3386
    %v5261 = vpop.f32.mrf.mxu0
    %v5262 = vadd.f32 %v3655, %v5261
    %v5263 = vpop.f32.mrf.mxu0
    %5264 = vdwg.mxu0
    %5265 = vmatpush.bf16.msra.mxu0 %v4491
    %5266 = vmatpush.bf16.msra.mxu0 %v4487
    %5267 = vmatpush.bf16.msra.mxu0 %v4483
    %5268 = vmatpush.bf16.msra.mxu0 %v4479
    %5269 = vmatpush.bf16.msra.mxu0 %v4475
    %5270 = vmatpush.bf16.msra.mxu0 %v4471
    %5271 = vmatpush.bf16.msra.mxu0 %v4467
    %5272 = vmatpush.bf16.msra.mxu0 %v4463
    %5273 = vmatmul.bf16.gmra.mxu0 %v3387
    %v5274 = vpop.f32.mrf.mxu0
    %v5275 = vadd.f32 %v5262, %v5274
    %v5276 = vpop.f32.mrf.mxu0
    %5277 = vdwg.mxu0
    %5278 = vmatpush.bf16.msra.mxu0 %v4523
    %5279 = vmatpush.bf16.msra.mxu0 %v4519
    %5280 = vmatpush.bf16.msra.mxu0 %v4515
    %5281 = vmatpush.bf16.msra.mxu0 %v4511
    %5282 = vmatpush.bf16.msra.mxu0 %v4507
    %5283 = vmatpush.bf16.msra.mxu0 %v4503
    %5284 = vmatpush.bf16.msra.mxu0 %v4499
    %5285 = vmatpush.bf16.msra.mxu0 %v4495
    %5286 = vmatmul.bf16.gmra.mxu0 %v3388
    %v5287 = vpop.f32.mrf.mxu0
    %v5288 = vadd.f32 %v5275, %v5287
    %v5289 = vpop.f32.mrf.mxu0
    %5290 = vdwg.mxu0
    %5291 = vmatpush.bf16.msra.mxu0 %v4555
    %5292 = vmatpush.bf16.msra.mxu0 %v4551
    %5293 = vmatpush.bf16.msra.mxu0 %v4547
    %5294 = vmatpush.bf16.msra.mxu0 %v4543
    %5295 = vmatpush.bf16.msra.mxu0 %v4539
    %5296 = vmatpush.bf16.msra.mxu0 %v4535
    %5297 = vmatpush.bf16.msra.mxu0 %v4531
    %5298 = vmatpush.bf16.msra.mxu0 %v4527
    %5299 = vmatmul.bf16.gmra.mxu0 %v3389
    %v5300 = vpop.f32.mrf.mxu0
    %v5301 = vadd.f32 %v5288, %v5300
    %v5302 = vpop.f32.mrf.mxu0
    %5303 = vdwg.mxu0
    %5304 = vmatpush.bf16.msra.mxu0 %v4587
    %5305 = vmatpush.bf16.msra.mxu0 %v4583
    %5306 = vmatpush.bf16.msra.mxu0 %v4579
    %5307 = vmatpush.bf16.msra.mxu0 %v4575
    %5308 = vmatpush.bf16.msra.mxu0 %v4571
    %5309 = vmatpush.bf16.msra.mxu0 %v4567
    %5310 = vmatpush.bf16.msra.mxu0 %v4563
    %5311 = vmatpush.bf16.msra.mxu0 %v4559
    %5312 = vmatmul.bf16.gmra.mxu0 %v3390
    %v5313 = vpop.f32.mrf.mxu0
    %v5314 = vadd.f32 %v5301, %v5313
    %v5315 = vpop.f32.mrf.mxu0
    %5316 = vdwg.mxu0
    %5317 = vmatpush.bf16.msra.mxu0 %v4619
    %5318 = vmatpush.bf16.msra.mxu0 %v4615
    %5319 = vmatpush.bf16.msra.mxu0 %v4611
    %5320 = vmatpush.bf16.msra.mxu0 %v4607
    %5321 = vmatpush.bf16.msra.mxu0 %v4603
    %5322 = vmatpush.bf16.msra.mxu0 %v4599
    %5323 = vmatpush.bf16.msra.mxu0 %v4595
    %5324 = vmatpush.bf16.msra.mxu0 %v4591
    %5325 = vmatmul.bf16.gmra.mxu0 %v3391
    %v5326 = vpop.f32.mrf.mxu0
    %v5327 = vadd.f32 %v5314, %v5326
    %v5328 = vpop.f32.mrf.mxu0
    %5329 = vdwg.mxu0
    %5330 = vmatpush.bf16.msra.mxu0 %v4651
    %5331 = vmatpush.bf16.msra.mxu0 %v4647
    %5332 = vmatpush.bf16.msra.mxu0 %v4643
    %5333 = vmatpush.bf16.msra.mxu0 %v4639
    %5334 = vmatpush.bf16.msra.mxu0 %v4635
    %5335 = vmatpush.bf16.msra.mxu0 %v4631
    %5336 = vmatpush.bf16.msra.mxu0 %v4627
    %5337 = vmatpush.bf16.msra.mxu0 %v4623
    %5338 = vmatmul.bf16.gmra.mxu0 %v3392
    %v5339 = vpop.f32.mrf.mxu0
    %v5340 = vadd.f32 %v5327, %v5339
    %v5341 = vpop.f32.mrf.mxu0
    %5342 = vdwg.mxu0
    %5343 = vmatpush.bf16.msra.mxu0 %v4683
    %5344 = vmatpush.bf16.msra.mxu0 %v4679
    %5345 = vmatpush.bf16.msra.mxu0 %v4675
    %5346 = vmatpush.bf16.msra.mxu0 %v4671
    %5347 = vmatpush.bf16.msra.mxu0 %v4667
    %5348 = vmatpush.bf16.msra.mxu0 %v4663
    %5349 = vmatpush.bf16.msra.mxu0 %v4659
    %5350 = vmatpush.bf16.msra.mxu0 %v4655
    %5351 = vmatmul.bf16.gmra.mxu0 %v3393
    %v5352 = vpop.f32.mrf.mxu0
    %v5353 = vadd.f32 %v5340, %v5352
    %v5354 = vpop.f32.mrf.mxu0
    %5355 = vdwg.mxu0
    %vm5356 = vcmp.gt.f32.partialorder %v5041, 0.0
    %vm5357 = vcmp.gt.f32.partialorder %v5145, 0.0
    %vm5358 = vcmp.gt.f32.partialorder %v5249, 0.0
    %vm5359 = vcmp.gt.f32.partialorder %v5353, 0.0
    %v5360 = vmul.f32 %v5041, 0.2
    %v5361 = vmul.f32 %v5145, 0.2
    %v5362 = vmul.f32 %v5249, 0.2
    %v5363 = vmul.f32 %v5353, 0.2
    %v5364 = vsel %vm5356, %v5041, %v5360
    %v5365 = vsel %vm5357, %v5145, %v5361
    %v5366 = vsel %vm5358, %v5249, %v5362
    %v5367 = vsel %vm5359, %v5353, %v5363
    %v5368 = vld [vmem:[#allocation7] sm:$0xff]
    %v5369 = vld [vmem:[#allocation7 + $0x8] sm:$0xff]
    %v5370 = vld [vmem:[#allocation7 + $0x10] sm:$0xff]
    %v5371 = vld [vmem:[#allocation7 + $0x18] sm:$0xff]
    %vm5372 = vcmp.ge.f32.partialorder %v5368, 0.3
    %vm5373 = vcmp.ge.f32.partialorder %v5369, 0.3
    %vm5374 = vcmp.ge.f32.partialorder %v5370, 0.3
    %vm5375 = vcmp.ge.f32.partialorder %v5371, 0.3
    %v5376 = vmul.f32 %v5364, 1.4285715
    %v5377 = vmul.f32 %v5365, 1.4285715
    %v5378 = vmul.f32 %v5366, 1.4285715
    %v5379 = vmul.f32 %v5367, 1.4285715
    %v5380 = vsel %vm5372, %v5376, 0.0
    %v5381 = vsel %vm5373, %v5377, 0.0
    %v5382 = vsel %vm5374, %v5378, 0.0
    %v5383 = vsel %vm5375, %v5379, 0.0
    %v5384 = vpack.c.bf16 %v5380, %v5380
    %v5385 = vpack.c.bf16 %v5381, %v5381
    %v5386 = vpack.c.bf16 %v5382, %v5382
    %v5387 = vpack.c.bf16 %v5383, %v5383
    %v5388 = vld [vmem:[#allocation16] sm:$0xff]
    %v5389 = vld [vmem:[#allocation16 + $0x8] sm:$0xff]
    %v5390 = vld [vmem:[#allocation16 + $0x10] sm:$0xff]
    %v5391 = vld [vmem:[#allocation16 + $0x18] sm:$0xff]
    %v5392 = vld [vmem:[#allocation16 + $0x20] sm:$0xff]
    %v5393 = vld [vmem:[#allocation16 + $0x28] sm:$0xff]
    %v5394 = vld [vmem:[#allocation16 + $0x30] sm:$0xff]
    %v5395 = vld [vmem:[#allocation16 + $0x38] sm:$0xff]
    %v5396 = vld [vmem:[#allocation16 + $0x40] sm:$0xff]
    %v5397 = vld [vmem:[#allocation16 + $0x48] sm:$0xff]
    %v5398 = vld [vmem:[#allocation16 + $0x50] sm:$0xff]
    %v5399 = vld [vmem:[#allocation16 + $0x58] sm:$0xff]
    %v5400 = vld [vmem:[#allocation16 + $0x60] sm:$0xff]
    %v5401 = vld [vmem:[#allocation16 + $0x68] sm:$0xff]
    %v5402 = vld [vmem:[#allocation16 + $0x70] sm:$0xff]
    %v5403 = vld [vmem:[#allocation16 + $0x78] sm:$0xff]
    %v5404 = vld [vmem:[#allocation16 + $0x80] sm:$0xff]
    %v5405 = vld [vmem:[#allocation16 + $0x88] sm:$0xff]
    %v5406 = vld [vmem:[#allocation16 + $0x90] sm:$0xff]
    %v5407 = vld [vmem:[#allocation16 + $0x98] sm:$0xff]
    %v5408 = vld [vmem:[#allocation16 + $0xa0] sm:$0xff]
    %v5409 = vld [vmem:[#allocation16 + $0xa8] sm:$0xff]
    %v5410 = vld [vmem:[#allocation16 + $0xb0] sm:$0xff]
    %v5411 = vld [vmem:[#allocation16 + $0xb8] sm:$0xff]
    %v5412 = vld [vmem:[#allocation16 + $0xc0] sm:$0xff]
    %v5413 = vld [vmem:[#allocation16 + $0xc8] sm:$0xff]
    %v5414 = vld [vmem:[#allocation16 + $0xd0] sm:$0xff]
    %v5415 = vld [vmem:[#allocation16 + $0xd8] sm:$0xff]
    %v5416 = vld [vmem:[#allocation16 + $0xe0] sm:$0xff]
    %v5417 = vld [vmem:[#allocation16 + $0xe8] sm:$0xff]
    %v5418 = vld [vmem:[#allocation16 + $0xf0] sm:$0xff]
    %v5419 = vld [vmem:[#allocation16 + $0xf8] sm:$0xff]
    %v5420 = vld [vmem:[#allocation16 + $0x100] sm:$0xff]
    %v5421 = vld [vmem:[#allocation16 + $0x108] sm:$0xff]
    %v5422 = vld [vmem:[#allocation16 + $0x110] sm:$0xff]
    %v5423 = vld [vmem:[#allocation16 + $0x118] sm:$0xff]
    %v5424 = vld [vmem:[#allocation16 + $0x120] sm:$0xff]
    %v5425 = vld [vmem:[#allocation16 + $0x128] sm:$0xff]
    %v5426 = vld [vmem:[#allocation16 + $0x130] sm:$0xff]
    %v5427 = vld [vmem:[#allocation16 + $0x138] sm:$0xff]
    %v5428 = vld [vmem:[#allocation16 + $0x140] sm:$0xff]
    %v5429 = vld [vmem:[#allocation16 + $0x148] sm:$0xff]
    %v5430 = vld [vmem:[#allocation16 + $0x150] sm:$0xff]
    %v5431 = vld [vmem:[#allocation16 + $0x158] sm:$0xff]
    %v5432 = vld [vmem:[#allocation16 + $0x160] sm:$0xff]
    %v5433 = vld [vmem:[#allocation16 + $0x168] sm:$0xff]
    %v5434 = vld [vmem:[#allocation16 + $0x170] sm:$0xff]
    %v5435 = vld [vmem:[#allocation16 + $0x178] sm:$0xff]
    %v5436 = vld [vmem:[#allocation16 + $0x180] sm:$0xff]
    %v5437 = vld [vmem:[#allocation16 + $0x188] sm:$0xff]
    %v5438 = vld [vmem:[#allocation16 + $0x190] sm:$0xff]
    %v5439 = vld [vmem:[#allocation16 + $0x198] sm:$0xff]
    %v5440 = vld [vmem:[#allocation16 + $0x1a0] sm:$0xff]
    %v5441 = vld [vmem:[#allocation16 + $0x1a8] sm:$0xff]
    %v5442 = vld [vmem:[#allocation16 + $0x1b0] sm:$0xff]
    %v5443 = vld [vmem:[#allocation16 + $0x1b8] sm:$0xff]
    %v5444 = vld [vmem:[#allocation16 + $0x1c0] sm:$0xff]
    %v5445 = vld [vmem:[#allocation16 + $0x1c8] sm:$0xff]
    %v5446 = vld [vmem:[#allocation16 + $0x1d0] sm:$0xff]
    %v5447 = vld [vmem:[#allocation16 + $0x1d8] sm:$0xff]
    %v5448 = vld [vmem:[#allocation16 + $0x1e0] sm:$0xff]
    %v5449 = vld [vmem:[#allocation16 + $0x1e8] sm:$0xff]
    %v5450 = vld [vmem:[#allocation16 + $0x1f0] sm:$0xff]
    %v5451 = vld [vmem:[#allocation16 + $0x1f8] sm:$0xff]
    %v5452 = vld [vmem:[#allocation17] sm:$0x3]
    %v5454 = vperm.slane %v5452, 0
    %v5455 = vperm.slane %v5452, 1
    %v5522 = vunpack.c.l.b16 %v5388
    %v5523 = vunpack.c.h.b16 %v5388
    %v5524 = vunpack.c.l.b16 %v5389
    %v5525 = vunpack.c.h.b16 %v5389
    %v5526 = vunpack.c.l.b16 %v5390
    %v5527 = vunpack.c.h.b16 %v5390
    %v5528 = vunpack.c.l.b16 %v5391
    %v5529 = vunpack.c.h.b16 %v5391
    %v5530 = vunpack.c.l.b16 %v5392
    %v5531 = vunpack.c.h.b16 %v5392
    %v5532 = vunpack.c.l.b16 %v5393
    %v5533 = vunpack.c.h.b16 %v5393
    %v5534 = vunpack.c.l.b16 %v5394
    %v5535 = vunpack.c.h.b16 %v5394
    %v5536 = vunpack.c.l.b16 %v5395
    %v5537 = vunpack.c.h.b16 %v5395
    %v5538 = vunpack.c.l.b16 %v5396
    %v5539 = vunpack.c.h.b16 %v5396
    %v5540 = vunpack.c.l.b16 %v5397
    %v5541 = vunpack.c.h.b16 %v5397
    %v5542 = vunpack.c.l.b16 %v5398
    %v5543 = vunpack.c.h.b16 %v5398
    %v5544 = vunpack.c.l.b16 %v5399
    %v5545 = vunpack.c.h.b16 %v5399
    %v5546 = vunpack.c.l.b16 %v5400
    %v5547 = vunpack.c.h.b16 %v5400
    %v5548 = vunpack.c.l.b16 %v5401
    %v5549 = vunpack.c.h.b16 %v5401
    %v5550 = vunpack.c.l.b16 %v5402
    %v5551 = vunpack.c.h.b16 %v5402
    %v5552 = vunpack.c.l.b16 %v5403
    %v5553 = vunpack.c.h.b16 %v5403
    %v5554 = vunpack.c.l.b16 %v5404
    %v5555 = vunpack.c.h.b16 %v5404
    %v5556 = vunpack.c.l.b16 %v5405
    %v5557 = vunpack.c.h.b16 %v5405
    %v5558 = vunpack.c.l.b16 %v5406
    %v5559 = vunpack.c.h.b16 %v5406
    %v5560 = vunpack.c.l.b16 %v5407
    %v5561 = vunpack.c.h.b16 %v5407
    %v5562 = vunpack.c.l.b16 %v5408
    %v5563 = vunpack.c.h.b16 %v5408
    %v5564 = vunpack.c.l.b16 %v5409
    %v5565 = vunpack.c.h.b16 %v5409
    %v5566 = vunpack.c.l.b16 %v5410
    %v5567 = vunpack.c.h.b16 %v5410
    %v5568 = vunpack.c.l.b16 %v5411
    %v5569 = vunpack.c.h.b16 %v5411
    %v5570 = vunpack.c.l.b16 %v5412
    %v5571 = vunpack.c.h.b16 %v5412
    %v5572 = vunpack.c.l.b16 %v5413
    %v5573 = vunpack.c.h.b16 %v5413
    %v5574 = vunpack.c.l.b16 %v5414
    %v5575 = vunpack.c.h.b16 %v5414
    %v5576 = vunpack.c.l.b16 %v5415
    %v5577 = vunpack.c.h.b16 %v5415
    %v5578 = vunpack.c.l.b16 %v5416
    %v5579 = vunpack.c.h.b16 %v5416
    %v5580 = vunpack.c.l.b16 %v5417
    %v5581 = vunpack.c.h.b16 %v5417
    %v5582 = vunpack.c.l.b16 %v5418
    %v5583 = vunpack.c.h.b16 %v5418
    %v5584 = vunpack.c.l.b16 %v5419
    %v5585 = vunpack.c.h.b16 %v5419
    %v5586 = vunpack.c.l.b16 %v5420
    %v5587 = vunpack.c.h.b16 %v5420
    %v5588 = vunpack.c.l.b16 %v5421
    %v5589 = vunpack.c.h.b16 %v5421
    %v5590 = vunpack.c.l.b16 %v5422
    %v5591 = vunpack.c.h.b16 %v5422
    %v5592 = vunpack.c.l.b16 %v5423
    %v5593 = vunpack.c.h.b16 %v5423
    %v5594 = vunpack.c.l.b16 %v5424
    %v5595 = vunpack.c.h.b16 %v5424
    %v5596 = vunpack.c.l.b16 %v5425
    %v5597 = vunpack.c.h.b16 %v5425
    %v5598 = vunpack.c.l.b16 %v5426
    %v5599 = vunpack.c.h.b16 %v5426
    %v5600 = vunpack.c.l.b16 %v5427
    %v5601 = vunpack.c.h.b16 %v5427
    %v5602 = vunpack.c.l.b16 %v5428
    %v5603 = vunpack.c.h.b16 %v5428
    %v5604 = vunpack.c.l.b16 %v5429
    %v5605 = vunpack.c.h.b16 %v5429
    %v5606 = vunpack.c.l.b16 %v5430
    %v5607 = vunpack.c.h.b16 %v5430
    %v5608 = vunpack.c.l.b16 %v5431
    %v5609 = vunpack.c.h.b16 %v5431
    %v5610 = vunpack.c.l.b16 %v5432
    %v5611 = vunpack.c.h.b16 %v5432
    %v5612 = vunpack.c.l.b16 %v5433
    %v5613 = vunpack.c.h.b16 %v5433
    %v5614 = vunpack.c.l.b16 %v5434
    %v5615 = vunpack.c.h.b16 %v5434
    %v5616 = vunpack.c.l.b16 %v5435
    %v5617 = vunpack.c.h.b16 %v5435
    %v5618 = vunpack.c.l.b16 %v5436
    %v5619 = vunpack.c.h.b16 %v5436
    %v5620 = vunpack.c.l.b16 %v5437
    %v5621 = vunpack.c.h.b16 %v5437
    %v5622 = vunpack.c.l.b16 %v5438
    %v5623 = vunpack.c.h.b16 %v5438
    %v5624 = vunpack.c.l.b16 %v5439
    %v5625 = vunpack.c.h.b16 %v5439
    %v5626 = vunpack.c.l.b16 %v5440
    %v5627 = vunpack.c.h.b16 %v5440
    %v5628 = vunpack.c.l.b16 %v5441
    %v5629 = vunpack.c.h.b16 %v5441
    %v5630 = vunpack.c.l.b16 %v5442
    %v5631 = vunpack.c.h.b16 %v5442
    %v5632 = vunpack.c.l.b16 %v5443
    %v5633 = vunpack.c.h.b16 %v5443
    %v5634 = vunpack.c.l.b16 %v5444
    %v5635 = vunpack.c.h.b16 %v5444
    %v5636 = vunpack.c.l.b16 %v5445
    %v5637 = vunpack.c.h.b16 %v5445
    %v5638 = vunpack.c.l.b16 %v5446
    %v5639 = vunpack.c.h.b16 %v5446
    %v5640 = vunpack.c.l.b16 %v5447
    %v5641 = vunpack.c.h.b16 %v5447
    %v5642 = vunpack.c.l.b16 %v5448
    %v5643 = vunpack.c.h.b16 %v5448
    %v5644 = vunpack.c.l.b16 %v5449
    %v5645 = vunpack.c.h.b16 %v5449
    %v5646 = vunpack.c.l.b16 %v5450
    %v5647 = vunpack.c.h.b16 %v5450
    %v5648 = vunpack.c.l.b16 %v5451
    %v5649 = vunpack.c.h.b16 %v5451
    %v5650 = vpack.c.b16 %v5524, %v5522
    %v5651 = vpack.c.b16 %v5525, %v5523
    %v5652 = vpack.c.b16 %v5528, %v5526
    %v5653 = vpack.c.b16 %v5529, %v5527
    %v5654 = vpack.c.b16 %v5532, %v5530
    %v5655 = vpack.c.b16 %v5533, %v5531
    %v5656 = vpack.c.b16 %v5536, %v5534
    %v5657 = vpack.c.b16 %v5537, %v5535
    %v5658 = vpack.c.b16 %v5540, %v5538
    %v5659 = vpack.c.b16 %v5541, %v5539
    %v5660 = vpack.c.b16 %v5544, %v5542
    %v5661 = vpack.c.b16 %v5545, %v5543
    %v5662 = vpack.c.b16 %v5548, %v5546
    %v5663 = vpack.c.b16 %v5549, %v5547
    %v5664 = vpack.c.b16 %v5552, %v5550
    %v5665 = vpack.c.b16 %v5553, %v5551
    %v5666 = vpack.c.b16 %v5556, %v5554
    %v5667 = vpack.c.b16 %v5557, %v5555
    %v5668 = vpack.c.b16 %v5560, %v5558
    %v5669 = vpack.c.b16 %v5561, %v5559
    %v5670 = vpack.c.b16 %v5564, %v5562
    %v5671 = vpack.c.b16 %v5565, %v5563
    %v5672 = vpack.c.b16 %v5568, %v5566
    %v5673 = vpack.c.b16 %v5569, %v5567
    %v5674 = vpack.c.b16 %v5572, %v5570
    %v5675 = vpack.c.b16 %v5573, %v5571
    %v5676 = vpack.c.b16 %v5576, %v5574
    %v5677 = vpack.c.b16 %v5577, %v5575
    %v5678 = vpack.c.b16 %v5580, %v5578
    %v5679 = vpack.c.b16 %v5581, %v5579
    %v5680 = vpack.c.b16 %v5584, %v5582
    %v5681 = vpack.c.b16 %v5585, %v5583
    %v5682 = vpack.c.b16 %v5588, %v5586
    %v5683 = vpack.c.b16 %v5589, %v5587
    %v5684 = vpack.c.b16 %v5592, %v5590
    %v5685 = vpack.c.b16 %v5593, %v5591
    %v5686 = vpack.c.b16 %v5596, %v5594
    %v5687 = vpack.c.b16 %v5597, %v5595
    %v5688 = vpack.c.b16 %v5600, %v5598
    %v5689 = vpack.c.b16 %v5601, %v5599
    %v5690 = vpack.c.b16 %v5604, %v5602
    %v5691 = vpack.c.b16 %v5605, %v5603
    %v5692 = vpack.c.b16 %v5608, %v5606
    %v5693 = vpack.c.b16 %v5609, %v5607
    %v5694 = vpack.c.b16 %v5612, %v5610
    %v5695 = vpack.c.b16 %v5613, %v5611
    %v5696 = vpack.c.b16 %v5616, %v5614
    %v5697 = vpack.c.b16 %v5617, %v5615
    %v5698 = vpack.c.b16 %v5620, %v5618
    %v5699 = vpack.c.b16 %v5621, %v5619
    %v5700 = vpack.c.b16 %v5624, %v5622
    %v5701 = vpack.c.b16 %v5625, %v5623
    %v5702 = vpack.c.b16 %v5628, %v5626
    %v5703 = vpack.c.b16 %v5629, %v5627
    %v5704 = vpack.c.b16 %v5632, %v5630
    %v5705 = vpack.c.b16 %v5633, %v5631
    %v5706 = vpack.c.b16 %v5636, %v5634
    %v5707 = vpack.c.b16 %v5637, %v5635
    %v5708 = vpack.c.b16 %v5640, %v5638
    %v5709 = vpack.c.b16 %v5641, %v5639
    %v5710 = vpack.c.b16 %v5644, %v5642
    %v5711 = vpack.c.b16 %v5645, %v5643
    %v5712 = vpack.c.b16 %v5648, %v5646
    %v5713 = vpack.c.b16 %v5649, %v5647
    %5778 = vmatpush.bf16.msra.mxu0 %v5664
    %5779 = vmatpush.bf16.msra.mxu0 %v5662
    %5780 = vmatpush.bf16.msra.mxu0 %v5660
    %5781 = vmatpush.bf16.msra.mxu0 %v5658
    %5782 = vmatpush.bf16.msra.mxu0 %v5656
    %5783 = vmatpush.bf16.msra.mxu0 %v5654
    %5784 = vmatpush.bf16.msra.mxu0 %v5652
    %5785 = vmatpush.bf16.msra.mxu0 %v5650
    %5786 = vmatmul.bf16.gmra.mxu0 %v5384
    %v5787 = vpop.f32.mrf.mxu0
    %v5788 = vadd.f32 %v5454, %v5787
    %v5789 = vpop.f32.mrf.mxu0
    %5790 = vdwg.mxu0
    %5791 = vmatpush.bf16.msra.mxu0 %v5680
    %5792 = vmatpush.bf16.msra.mxu0 %v5678
    %5793 = vmatpush.bf16.msra.mxu0 %v5676
    %5794 = vmatpush.bf16.msra.mxu0 %v5674
    %5795 = vmatpush.bf16.msra.mxu0 %v5672
    %5796 = vmatpush.bf16.msra.mxu0 %v5670
    %5797 = vmatpush.bf16.msra.mxu0 %v5668
    %5798 = vmatpush.bf16.msra.mxu0 %v5666
    %5799 = vmatmul.bf16.gmra.mxu0 %v5385
    %v5800 = vpop.f32.mrf.mxu0
    %v5801 = vadd.f32 %v5788, %v5800
    %v5802 = vpop.f32.mrf.mxu0
    %5803 = vdwg.mxu0
    %5804 = vmatpush.bf16.msra.mxu0 %v5696
    %5805 = vmatpush.bf16.msra.mxu0 %v5694
    %5806 = vmatpush.bf16.msra.mxu0 %v5692
    %5807 = vmatpush.bf16.msra.mxu0 %v5690
    %5808 = vmatpush.bf16.msra.mxu0 %v5688
    %5809 = vmatpush.bf16.msra.mxu0 %v5686
    %5810 = vmatpush.bf16.msra.mxu0 %v5684
    %5811 = vmatpush.bf16.msra.mxu0 %v5682
    %5812 = vmatmul.bf16.gmra.mxu0 %v5386
    %v5813 = vpop.f32.mrf.mxu0
    %v5814 = vadd.f32 %v5801, %v5813
    %v5815 = vpop.f32.mrf.mxu0
    %5816 = vdwg.mxu0
    %5817 = vmatpush.bf16.msra.mxu0 %v5712
    %5818 = vmatpush.bf16.msra.mxu0 %v5710
    %5819 = vmatpush.bf16.msra.mxu0 %v5708
    %5820 = vmatpush.bf16.msra.mxu0 %v5706
    %5821 = vmatpush.bf16.msra.mxu0 %v5704
    %5822 = vmatpush.bf16.msra.mxu0 %v5702
    %5823 = vmatpush.bf16.msra.mxu0 %v5700
    %5824 = vmatpush.bf16.msra.mxu0 %v5698
    %5825 = vmatmul.bf16.gmra.mxu0 %v5387
    %v5826 = vpop.f32.mrf.mxu0
    %v5827 = vadd.f32 %v5814, %v5826
    %v5828 = vpop.f32.mrf.mxu0
    %5829 = vdwg.mxu0
    %5830 = vmatpush.bf16.msra.mxu0 %v5665
    %5831 = vmatpush.bf16.msra.mxu0 %v5663
    %5832 = vmatpush.bf16.msra.mxu0 %v5661
    %5833 = vmatpush.bf16.msra.mxu0 %v5659
    %5834 = vmatpush.bf16.msra.mxu0 %v5657
    %5835 = vmatpush.bf16.msra.mxu0 %v5655
    %5836 = vmatpush.bf16.msra.mxu0 %v5653
    %5837 = vmatpush.bf16.msra.mxu0 %v5651
    %5838 = vmatmul.bf16.gmra.mxu0 %v5384
    %v5839 = vpop.f32.mrf.mxu0
    %v5840 = vadd.f32 %v5455, %v5839
    %v5841 = vpop.f32.mrf.mxu0
    %5842 = vdwg.mxu0
    %5843 = vmatpush.bf16.msra.mxu0 %v5681
    %5844 = vmatpush.bf16.msra.mxu0 %v5679
    %5845 = vmatpush.bf16.msra.mxu0 %v5677
    %5846 = vmatpush.bf16.msra.mxu0 %v5675
    %5847 = vmatpush.bf16.msra.mxu0 %v5673
    %5848 = vmatpush.bf16.msra.mxu0 %v5671
    %5849 = vmatpush.bf16.msra.mxu0 %v5669
    %5850 = vmatpush.bf16.msra.mxu0 %v5667
    %5851 = vmatmul.bf16.gmra.mxu0 %v5385
    %v5852 = vpop.f32.mrf.mxu0
    %v5853 = vadd.f32 %v5840, %v5852
    %v5854 = vpop.f32.mrf.mxu0
    %5855 = vdwg.mxu0
    %5856 = vmatpush.bf16.msra.mxu0 %v5697
    %5857 = vmatpush.bf16.msra.mxu0 %v5695
    %5858 = vmatpush.bf16.msra.mxu0 %v5693
    %5859 = vmatpush.bf16.msra.mxu0 %v5691
    %5860 = vmatpush.bf16.msra.mxu0 %v5689
    %5861 = vmatpush.bf16.msra.mxu0 %v5687
    %5862 = vmatpush.bf16.msra.mxu0 %v5685
    %5863 = vmatpush.bf16.msra.mxu0 %v5683
    %5864 = vmatmul.bf16.gmra.mxu0 %v5386
    %v5865 = vpop.f32.mrf.mxu0
    %v5866 = vadd.f32 %v5853, %v5865
    %v5867 = vpop.f32.mrf.mxu0
    %5868 = vdwg.mxu0
    %5869 = vmatpush.bf16.msra.mxu0 %v5713
    %5870 = vmatpush.bf16.msra.mxu0 %v5711
    %5871 = vmatpush.bf16.msra.mxu0 %v5709
    %5872 = vmatpush.bf16.msra.mxu0 %v5707
    %5873 = vmatpush.bf16.msra.mxu0 %v5705
    %5874 = vmatpush.bf16.msra.mxu0 %v5703
    %5875 = vmatpush.bf16.msra.mxu0 %v5701
    %5876 = vmatpush.bf16.msra.mxu0 %v5699
    %5877 = vmatmul.bf16.gmra.mxu0 %v5387
    %v5878 = vpop.f32.mrf.mxu0
    %v5879 = vadd.f32 %v5866, %v5878
    %v5880 = vpop.f32.mrf.mxu0
    %5881 = vdwg.mxu0
    %vm5882 = vcmp.gt.f32.partialorder %v5827, 0.0
    %vm5883 = vcmp.gt.f32.partialorder %v5879, 0.0
    %v5884 = vmul.f32 %v5827, 0.2
    %v5885 = vmul.f32 %v5879, 0.2
    %v5886 = vsel %vm5882, %v5827, %v5884
    %v5887 = vsel %vm5883, %v5879, %v5885
    %v5888 = vld [vmem:[#allocation8] sm:$0xff]
    %v5889 = vld [vmem:[#allocation8 + $0x8] sm:$0xff]
    %vm5890 = vcmp.ge.f32.partialorder %v5888, 0.3
    %vm5891 = vcmp.ge.f32.partialorder %v5889, 0.3
    %v5892 = vmul.f32 %v5886, 1.4285715
    %v5893 = vmul.f32 %v5887, 1.4285715
    %v5894 = vsel %vm5890, %v5892, 0.0
    %v5895 = vsel %vm5891, %v5893, 0.0
    %v5896 = vpack.c.bf16 %v5894, %v5894
    %v5897 = vpack.c.bf16 %v5895, %v5895
    %v5898 = vld [vmem:[#allocation19] sm:$0xf]
    %v5899 = vld [vmem:[#allocation19 + $0x4] sm:$0xf]
    %v5900 = vld [vmem:[#allocation19 + $0x8] sm:$0xf]
    %v5901 = vld [vmem:[#allocation19 + $0xc] sm:$0xf]
    %v5902 = vld [vmem:[#allocation19 + $0x10] sm:$0xf]
    %v5903 = vld [vmem:[#allocation19 + $0x14] sm:$0xf]
    %v5904 = vld [vmem:[#allocation19 + $0x18] sm:$0xf]
    %v5905 = vld [vmem:[#allocation19 + $0x1c] sm:$0xf]
    %v5906 = vld [vmem:[#allocation19 + $0x20] sm:$0xf]
    %v5907 = vld [vmem:[#allocation19 + $0x24] sm:$0xf]
    %v5908 = vld [vmem:[#allocation19 + $0x28] sm:$0xf]
    %v5909 = vld [vmem:[#allocation19 + $0x2c] sm:$0xf]
    %v5910 = vld [vmem:[#allocation19 + $0x30] sm:$0xf]
    %v5911 = vld [vmem:[#allocation19 + $0x34] sm:$0xf]
    %v5912 = vld [vmem:[#allocation19 + $0x38] sm:$0xf]
    %v5913 = vld [vmem:[#allocation19 + $0x3c] sm:$0xf]
    %v5914 = vld [vmem:[#allocation19 + $0x40] sm:$0xf]
    %v5915 = vld [vmem:[#allocation19 + $0x44] sm:$0xf]
    %v5916 = vld [vmem:[#allocation19 + $0x48] sm:$0xf]
    %v5917 = vld [vmem:[#allocation19 + $0x4c] sm:$0xf]
    %v5918 = vld [vmem:[#allocation19 + $0x50] sm:$0xf]
    %v5919 = vld [vmem:[#allocation19 + $0x54] sm:$0xf]
    %v5920 = vld [vmem:[#allocation19 + $0x58] sm:$0xf]
    %v5921 = vld [vmem:[#allocation19 + $0x5c] sm:$0xf]
    %v5922 = vld [vmem:[#allocation19 + $0x60] sm:$0xf]
    %v5923 = vld [vmem:[#allocation19 + $0x64] sm:$0xf]
    %v5924 = vld [vmem:[#allocation19 + $0x68] sm:$0xf]
    %v5925 = vld [vmem:[#allocation19 + $0x6c] sm:$0xf]
    %v5926 = vld [vmem:[#allocation19 + $0x70] sm:$0xf]
    %v5927 = vld [vmem:[#allocation19 + $0x74] sm:$0xf]
    %v5928 = vld [vmem:[#allocation19 + $0x78] sm:$0xf]
    %v5929 = vld [vmem:[#allocation19 + $0x7c] sm:$0xf]
    %v5930 = vld [vmem:[#allocation20] sm:$0x1]
    %v5932 = vperm.slane %v5930, 0
    %v5966 = vunpack.c.l.b16 %v5898
    %v5967 = vunpack.c.l.b16 %v5899
    %v5968 = vunpack.c.l.b16 %v5900
    %v5969 = vunpack.c.l.b16 %v5901
    %v5970 = vunpack.c.l.b16 %v5902
    %v5971 = vunpack.c.l.b16 %v5903
    %v5972 = vunpack.c.l.b16 %v5904
    %v5973 = vunpack.c.l.b16 %v5905
    %v5974 = vunpack.c.l.b16 %v5906
    %v5975 = vunpack.c.l.b16 %v5907
    %v5976 = vunpack.c.l.b16 %v5908
    %v5977 = vunpack.c.l.b16 %v5909
    %v5978 = vunpack.c.l.b16 %v5910
    %v5979 = vunpack.c.l.b16 %v5911
    %v5980 = vunpack.c.l.b16 %v5912
    %v5981 = vunpack.c.l.b16 %v5913
    %v5982 = vunpack.c.l.b16 %v5914
    %v5983 = vunpack.c.l.b16 %v5915
    %v5984 = vunpack.c.l.b16 %v5916
    %v5985 = vunpack.c.l.b16 %v5917
    %v5986 = vunpack.c.l.b16 %v5918
    %v5987 = vunpack.c.l.b16 %v5919
    %v5988 = vunpack.c.l.b16 %v5920
    %v5989 = vunpack.c.l.b16 %v5921
    %v5990 = vunpack.c.l.b16 %v5922
    %v5991 = vunpack.c.l.b16 %v5923
    %v5992 = vunpack.c.l.b16 %v5924
    %v5993 = vunpack.c.l.b16 %v5925
    %v5994 = vunpack.c.l.b16 %v5926
    %v5995 = vunpack.c.l.b16 %v5927
    %v5996 = vunpack.c.l.b16 %v5928
    %v5997 = vunpack.c.l.b16 %v5929
    %v5998 = vpack.c.b16 %v5967, %v5966
    %v5999 = vpack.c.b16 %v5969, %v5968
    %v6000 = vpack.c.b16 %v5971, %v5970
    %v6001 = vpack.c.b16 %v5973, %v5972
    %v6002 = vpack.c.b16 %v5975, %v5974
    %v6003 = vpack.c.b16 %v5977, %v5976
    %v6004 = vpack.c.b16 %v5979, %v5978
    %v6005 = vpack.c.b16 %v5981, %v5980
    %v6006 = vpack.c.b16 %v5983, %v5982
    %v6007 = vpack.c.b16 %v5985, %v5984
    %v6008 = vpack.c.b16 %v5987, %v5986
    %v6009 = vpack.c.b16 %v5989, %v5988
    %v6010 = vpack.c.b16 %v5991, %v5990
    %v6011 = vpack.c.b16 %v5993, %v5992
    %v6012 = vpack.c.b16 %v5995, %v5994
    %v6013 = vpack.c.b16 %v5997, %v5996
    %6030 = vmatpush.bf16.msra.mxu0 %v6005
    %6031 = vmatpush.bf16.msra.mxu0 %v6004
    %6032 = vmatpush.bf16.msra.mxu0 %v6003
    %6033 = vmatpush.bf16.msra.mxu0 %v6002
    %6034 = vmatpush.bf16.msra.mxu0 %v6001
    %6035 = vmatpush.bf16.msra.mxu0 %v6000
    %6036 = vmatpush.bf16.msra.mxu0 %v5999
    %6037 = vmatpush.bf16.msra.mxu0 %v5998
    %6038 = vmatmul.bf16.gmra.mxu0 %v5896
    %v6039 = vpop.f32.mrf.mxu0
    %v6040 = vadd.f32 %v5932, %v6039
    %v6041 = vpop.f32.mrf.mxu0
    %6042 = vdwg.mxu0
    %6043 = vmatpush.bf16.msra.mxu0 %v6013
    %6044 = vmatpush.bf16.msra.mxu0 %v6012
    %6045 = vmatpush.bf16.msra.mxu0 %v6011
    %6046 = vmatpush.bf16.msra.mxu0 %v6010
    %6047 = vmatpush.bf16.msra.mxu0 %v6009
    %6048 = vmatpush.bf16.msra.mxu0 %v6008
    %6049 = vmatpush.bf16.msra.mxu0 %v6007
    %6050 = vmatpush.bf16.msra.mxu0 %v6006
    %6051 = vmatmul.bf16.gmra.mxu0 %v5897
    %v6052 = vpop.f32.mrf.mxu0
    %v6053 = vadd.f32 %v6040, %v6052
    %v6054 = vpop.f32.mrf.mxu0
    %6055 = vdwg.mxu0
    %v6056 = vxor.u32 %v6053, 2147483648
    %v6057 = vmul.f32 %v6056, 1.442695
    %v6058 = vpow.pop %v6057
    %v6059 = vadd.f32 %v6058, 1.0
    %v6060 = vrcp.pop %v6059
    %v6061 = vmul.f32 %v6059, %v6060
    %v6062 = vsub.f32 1.0, %v6061
    %v6063 = vmul.f32 %v6060, %v6062
    %v6064 = vadd.f32 %v6060, %v6063
    %vm6065 = vweird.f32 %v6059
    %vm6066 = vweird.f32 %v6060
    %vm6067 = vmor %vm6065, %vm6066
    %v6068 = vsel %vm6067, %v6060, %v6064
    %v6069 = vand.u32 2147483647, %v6059
    %vm6070 = vcmp.eq.f32.partialorder %v6069, 8.507059e+37
    %v6071 = vand.u32 %v6059, 2147483648
    %v6072 = vor.u32 1.1754944e-38, %v6071
    %v6073 = vsel %vm6070, %v6072, %v6068
    %v6074 = vmul.f32 1.0, %v6073
    %6075 = vst [vmem:[#allocation22] sm:$0xff] %v6074
    // Predicated region
    $region98: #{tpu_custom_call.1} parent=1 // pred_check
      _
    $region99: #{tpu_custom_call.1} parent=1 // pred_check_branch
      %6077 = sbr.rel (0) target = $region101
    $region100: #{tpu_custom_call.1} parent=1 // pred_region
      %6079 = vsyncadd [#allocation4], 0
      %s6081 = sshll.u32 [#allocation22], 4
      %s6082 = int_to_ptr.vmem [resolvable:$true] %s6081
      %s6083 = sshll.u32 %s12, 4
      %s6084 = int_to_ptr.hbm [resolvable:$true] %s6083
      %6086 = dma.vmem_to_hbm [thread:$0]  %s6082, 128, %s6084, [#allocation4]
    $region101: #{tpu_custom_call.1} parent=1 // pred_fallthru
      _
    // Predicated region
    $region102: #{tpu_custom_call.1} parent=1 // pred_check
      _
    $region103: #{tpu_custom_call.1} parent=1 // pred_check_branch
      %6088 = sbr.rel (0) target = $region105
    $region104: #{tpu_custom_call.1} parent=1 // pred_region
      %6090 = dma.done [#allocation4], 128
    $region105: #{tpu_custom_call.1} parent=1 // pred_fallthru
      _
    %6091 = vsyncpa [#allocation3], 1
    %6092 = vsyncpa [#allocation6], 1
    %6093 = vsyncpa [#allocation9], 1
    %6094 = vsyncpa [#allocation12], 1
    %6095 = vsyncpa [#allocation15], 1
    %6096 = vsyncpa [#allocation18], 1
    %6097 = vsyncpa [#allocation21], 1
    %6098 = vsyncpa [#allocation4], 1

</llo_original>
